<compile_context>
chip_gen: v7x
topology: tpu7x:2x2x1
jax: 0.10.0
libtpu: 0.0.40
codegen_flags: <defaults>
</compile_context>

<pallas_src>
import functools

import jax
import jax.numpy as jnp
from jax import lax
from jax.experimental import pallas as pl
from jax.experimental.pallas import tpu as pltpu


def _make_kernel(H: int, W: int, B_tile: int, C: int, F: int):
    Hp, Wp = H + 2, W + 2
    HpWp = Hp * Wp
    M = B_tile * HpWp  # rows of the flattened padded slab handled per step

    def kernel(x_ref, wconv_ref, shift_ref, pool_ref,
               whead_ref, bhead_ref, pred_ref, feat_ref):
        # x_ref: (M, C) = flattened, zero-padded NHWC feature maps of one tile.
        x = x_ref[...]

        # im2col via 8 sublane rotations (XLU) -- no strided slice copies.
        # Tap (dh, dw) needs x_flat[p + (dh-1)*Wp + (dw-1)]; wrap-around only
        # corrupts halo rows, which the pooling matrix zeroes out.
        pieces = []
        for dh in range(3):
            for dw in range(3):
                off = (dh - 1) * Wp + (dw - 1)
                shift = (-off) % M
                pieces.append(x if shift == 0 else
                              pltpu.roll(x, shift=shift, axis=0))
        patches = jnp.concatenate(pieces, axis=1)            # (M, 9*C)

        # Single fused conv matmul, K = 9*C, f32 accumulation on the MXU.
        # BN scale is pre-folded into wconv columns, so this already yields
        # conv(x) * scale.
        conv = jnp.dot(patches, wconv_ref[...],
                       preferred_element_type=jnp.float32)    # (M, C) f32

        # BatchNorm shift + ReLU, kept in f32 (scale already folded above).
        y = jnp.maximum(conv + shift_ref[...], 0.0)

        # Fused masked global-average pool as a matmul:
        # pool_ref[b, p] = 1/(H*W) at interior positions of image b, else 0.
        feat = jnp.dot(pool_ref[...], y,
                       preferred_element_type=jnp.float32)    # (B_tile, C)
        feat_ref[...] = feat

        # Head: Linear + Sigmoid, once per batch tile.
        logits = jnp.dot(feat, whead_ref[...],
                         preferred_element_type=jnp.float32) + bhead_ref[...]
        pred_ref[...] = jax.nn.sigmoid(logits)

    return kernel


@functools.partial(jax.jit, static_argnames=("batch_tile", "conv_dtype"))
def regressor_forward(x_nchw, w_conv_hwio, bn_scale, bn_shift, w_head, b_head,
                      *, batch_tile: int = 8, conv_dtype=jnp.float32):
    """x_nchw: (N, C, H, W). Returns (predictions (N, F), features (N, C)).

    conv_dtype: dtype for the conv input/weights fed to the MXU. Use
    jnp.bfloat16 on v6e/v7x to halve HBM traffic; accumulation and all
    post-matmul elementwise math stay in f32.
    """
    N, C, H, W = x_nchw.shape
    F = w_head.shape[1]
    Hp, Wp = H + 2, W + 2
    HpWp = Hp * Wp

    # Batch tiling: whole batch in one step when small; otherwise tiles of
    # `batch_tile` (kept a multiple of 8 so 2-D block shapes satisfy the
    # (8, 128) tiling rule when the grid has more than one step).
    if N <= batch_tile:
        B_tile, Nt = N, N
    else:
        B_tile = batch_tile
        Nt = pl.cdiv(N, B_tile) * B_tile

    # NCHW -> NHWC, pad batch + 1-px spatial halo, flatten to (Nt*HpWp, C).
    # TODO(synk): accept NHWC input and zero-fill the halo inside the kernel to
    # avoid this extra HBM pass for very large feature maps.
    x_nhwc = jnp.transpose(x_nchw, (0, 2, 3, 1)).astype(jnp.float32)
    x_pad = jnp.pad(x_nhwc, ((0, Nt - N), (1, 1), (1, 1), (0, 0)))
    x_flat = x_pad.reshape(Nt * HpWp, C).astype(conv_dtype)

    # Conv weights HWIO -> (9*C, C); row order (dh, dw, cin) matches the
    # in-kernel tap/lane concat order. Fold the per-channel BN scale into the
    # output-channel columns (done in f32, then cast) so the kernel skips a
    # full-slab VPU multiply.
    # TODO(synk): for very large C on v7x (64 MiB VMEM) tile Cout with an extra
    # grid axis instead of loading the full (9C, C) weight block.
    w_flat = (w_conv_hwio.reshape(9 * C, C).astype(jnp.float32)
              * bn_scale.reshape(1, C).astype(jnp.float32)).astype(conv_dtype)

    shift2d = bn_shift.reshape(1, C).astype(jnp.float32)
    whead = w_head.astype(jnp.float32)
    bhead2d = b_head.reshape(1, F).astype(jnp.float32)

    # Pooling matrix for one batch tile: 1/(H*W) at interior padded positions
    # of image b, 0 elsewhere (also masks the roll wrap-around garbage).
    M = B_tile * HpWp
    pos = jnp.arange(M)
    b_of = pos // HpWp
    sp = pos % HpWp
    hh = sp // Wp
    ww = sp % Wp
    interior = (hh >= 1) & (hh <= H) & (ww >= 1) & (ww <= W)
    pool_mat = ((jnp.arange(B_tile)[:, None] == b_of[None, :])
                & interior[None, :]).astype(jnp.float32) / float(H * W)

    kernel = _make_kernel(H, W, B_tile, C, F)
    grid = (Nt // B_tile,)

    preds, feats = pl.pallas_call(
        kernel,
        out_shape=(
            jax.ShapeDtypeStruct((Nt, F), jnp.float32),
            jax.ShapeDtypeStruct((Nt, C), jnp.float32),
        ),
        grid_spec=pltpu.PrefetchScalarGridSpec(
            num_scalar_prefetch=0,
            grid=grid,
            in_specs=[
                pl.BlockSpec((M, C), lambda i: (i, 0)),          # x slab
                pl.BlockSpec((9 * C, C), lambda i: (0, 0)),      # conv weights (BN-scaled)
                pl.BlockSpec((1, C), lambda i: (0, 0)),          # bn shift
                pl.BlockSpec((B_tile, M), lambda i: (0, 0)),     # pool matrix
                pl.BlockSpec((C, F), lambda i: (0, 0)),          # head weight
                pl.BlockSpec((1, F), lambda i: (0, 0)),          # head bias
            ],
            out_specs=[
                pl.BlockSpec((B_tile, F), lambda i: (i, 0)),
                pl.BlockSpec((B_tile, C), lambda i: (i, 0)),
            ],
        ),
        compiler_params=pltpu.CompilerParams(
            dimension_semantics=("parallel",)),
    )(x_flat, w_flat, shift2d, pool_mat, whead, bhead2d)
    return preds[:N], feats[:N]


def _reference(x_nchw, w_conv_hwio, bn_scale, bn_shift, w_head, b_head):
    # Plain-JAX reference for validation.
    x_nhwc = jnp.transpose(x_nchw, (0, 2, 3, 1))
    conv = lax.conv_general_dilated(
        x_nhwc, w_conv_hwio, window_strides=(1, 1), padding="SAME",
        dimension_numbers=("NHWC", "HWIO", "NHWC"))
    y = jnp.maximum(conv * bn_scale + bn_shift, 0.0)
    feats = jnp.mean(y, axis=(1, 2))
    preds = jax.nn.sigmoid(feats @ w_head + b_head)
    return preds, feats


if __name__ == "__main__":
    # Small, deterministic setup (identity backbone -> input is the feature map).
    N, C, H, W = 2, 4, 16, 16       # backbone.out_features = C
    num_factors = 3

    key = jax.random.PRNGKey(0)
    k_x, k_conv, k_gamma, k_beta, k_mean, k_var, k_wh, k_bh = jax.random.split(key, 8)

    x = jax.random.normal(k_x, (N, C, H, W), dtype=jnp.float32)

    # Conv2d(C, C, 3, 1, 1) weight (HWIO); conv bias folded into the BN shift.
    w_conv = jax.random.normal(k_conv, (3, 3, C, C), dtype=jnp.float32) * 0.1
    conv_bias = jnp.zeros((C,), jnp.float32)

    # BatchNorm2d inference parameters (deterministic synthetic values).
    gamma = 1.0 + 0.1 * jax.random.normal(k_gamma, (C,), dtype=jnp.float32)
    beta = 0.1 * jax.random.normal(k_beta, (C,), dtype=jnp.float32)
    running_mean = 0.1 * jax.random.normal(k_mean, (C,), dtype=jnp.float32)
    running_var = 1.0 + 0.1 * jax.random.uniform(k_var, (C,), dtype=jnp.float32)
    eps = 1e-5
    bn_scale = gamma / jnp.sqrt(running_var + eps)
    bn_shift = beta - (running_mean - conv_bias) * bn_scale

    # Head: Linear(C, num_factors)
    w_head = jax.random.normal(k_wh, (C, num_factors), dtype=jnp.float32) * 0.5
    b_head = 0.1 * jax.random.normal(k_bh, (num_factors,), dtype=jnp.float32)

    preds, feats = regressor_forward(x, w_conv, bn_scale, bn_shift, w_head, b_head)
    preds = jax.block_until_ready(preds)
    feats = jax.block_until_ready(feats)

    ref_preds, ref_feats = _reference(x, w_conv, bn_scale, bn_shift, w_head, b_head)
    assert preds.shape == (N, num_factors) and feats.shape == (N, C)
    assert jnp.allclose(preds, ref_preds, rtol=1e-3, atol=1e-5)
    assert jnp.allclose(feats, ref_feats, rtol=1e-3, atol=1e-5)

    print("KERNEL_OK")
</pallas_src>

<mosaic_0001>
module attributes {stable_mosaic.version = 11 : i64} {
  func.func @kernel(%arg0: i32, %arg1: memref<648x4xf32, #tpu.memory_space<vmem>>, %arg2: memref<36x4xf32, #tpu.memory_space<vmem>>, %arg3: memref<1x4xf32, #tpu.memory_space<vmem>>, %arg4: memref<2x648xf32, #tpu.memory_space<vmem>>, %arg5: memref<4x3xf32, #tpu.memory_space<vmem>>, %arg6: memref<1x3xf32, #tpu.memory_space<vmem>>, %arg7: memref<2x3xf32, #tpu.memory_space<vmem>>, %arg8: memref<2x4xf32, #tpu.memory_space<vmem>>) attributes {dimension_semantics = [#tpu.dimension_semantics<parallel>], iteration_bounds = array<i64: 1>, scalar_prefetch = 0 : i64, scratch_operands = 0 : i64, tpu.core_type = #tpu.core_type<tc>, window_params = [{transform_indices = @transform_0, window_bounds = array<i64: 648, 4>}, {pipeline_mode = #tpu.pipeline_mode<synchronous>, transform_indices = @transform_1, window_bounds = array<i64: 36, 4>}, {pipeline_mode = #tpu.pipeline_mode<synchronous>, transform_indices = @transform_2, window_bounds = array<i64: 1, 4>}, {pipeline_mode = #tpu.pipeline_mode<synchronous>, transform_indices = @transform_3, window_bounds = array<i64: 2, 648>}, {pipeline_mode = #tpu.pipeline_mode<synchronous>, transform_indices = @transform_4, window_bounds = array<i64: 4, 3>}, {pipeline_mode = #tpu.pipeline_mode<synchronous>, transform_indices = @transform_5, window_bounds = array<i64: 1, 3>}, {transform_indices = @transform_6, window_bounds = array<i64: 2, 3>}, {transform_indices = @transform_7, window_bounds = array<i64: 2, 4>}]} {
    %c0 = arith.constant 0 : index
    %c0_0 = arith.constant 0 : index
    %0 = vector.load %arg1[%c0, %c0_0] : memref<648x4xf32, #tpu.memory_space<vmem>>, vector<648x4xf32>
    %c19_i32 = arith.constant 19 : i32
    %1 = tpu.dynamic_rotate %0 by %c19_i32 dim 0 : vector<648x4xf32>, i32 -> vector<648x4xf32>
    %c18_i32 = arith.constant 18 : i32
    %2 = tpu.dynamic_rotate %0 by %c18_i32 dim 0 : vector<648x4xf32>, i32 -> vector<648x4xf32>
    %c17_i32 = arith.constant 17 : i32
    %3 = tpu.dynamic_rotate %0 by %c17_i32 dim 0 : vector<648x4xf32>, i32 -> vector<648x4xf32>
    %c1_i32 = arith.constant 1 : i32
    %4 = tpu.dynamic_rotate %0 by %c1_i32 dim 0 : vector<648x4xf32>, i32 -> vector<648x4xf32>
    %c647_i32 = arith.constant 647 : i32
    %5 = tpu.dynamic_rotate %0 by %c647_i32 dim 0 : vector<648x4xf32>, i32 -> vector<648x4xf32>
    %c631_i32 = arith.constant 631 : i32
    %6 = tpu.dynamic_rotate %0 by %c631_i32 dim 0 : vector<648x4xf32>, i32 -> vector<648x4xf32>
    %c630_i32 = arith.constant 630 : i32
    %7 = tpu.dynamic_rotate %0 by %c630_i32 dim 0 : vector<648x4xf32>, i32 -> vector<648x4xf32>
    %c629_i32 = arith.constant 629 : i32
    %8 = tpu.dynamic_rotate %0 by %c629_i32 dim 0 : vector<648x4xf32>, i32 -> vector<648x4xf32>
    %9 = tpu.concatenate %1, %2, %3, %4, %0, %5, %6, %7, %8 in 1 : vector<648x4xf32>, vector<648x4xf32>, vector<648x4xf32>, vector<648x4xf32>, vector<648x4xf32>, vector<648x4xf32>, vector<648x4xf32>, vector<648x4xf32>, vector<648x4xf32> -> vector<648x36xf32>
    %c0_1 = arith.constant 0 : index
    %c0_2 = arith.constant 0 : index
    %10 = vector.load %arg2[%c0_1, %c0_2] : memref<36x4xf32, #tpu.memory_space<vmem>>, vector<36x4xf32>
    %cst = arith.constant dense<0.000000e+00> : vector<648x4xf32>
    %11 = tpu.matmul %9, %10, %cst {dimension_numbers = #tpu.dot_dimension_numbers<[1], [0], [0], [1], [0, 0, 1, 1], [], []>} : vector<648x36xf32>, vector<36x4xf32>, vector<648x4xf32> -> vector<648x4xf32>
    %c0_3 = arith.constant 0 : index
    %c0_4 = arith.constant 0 : index
    %12 = vector.load %arg3[%c0_3, %c0_4] : memref<1x4xf32, #tpu.memory_space<vmem>>, vector<1x4xf32>
    %13 = vector.broadcast %12 : vector<1x4xf32> to vector<648x4xf32>
    %14 = arith.addf %11, %13 : vector<648x4xf32>
    %cst_5 = arith.constant 0.000000e+00 : f32
    %15 = vector.broadcast %cst_5 : f32 to vector<648x4xf32>
    %16 = arith.maximumf %14, %15 : vector<648x4xf32>
    %c0_6 = arith.constant 0 : index
    %c0_7 = arith.constant 0 : index
    %17 = vector.load %arg4[%c0_6, %c0_7] : memref<2x648xf32, #tpu.memory_space<vmem>>, vector<2x648xf32>
    %cst_8 = arith.constant dense<0.000000e+00> : vector<2x4xf32>
    %18 = tpu.matmul %17, %16, %cst_8 {dimension_numbers = #tpu.dot_dimension_numbers<[1], [0], [0], [1], [0, 0, 1, 1], [], []>} : vector<2x648xf32>, vector<648x4xf32>, vector<2x4xf32> -> vector<2x4xf32>
    %c0_9 = arith.constant 0 : index
    %c0_10 = arith.constant 0 : index
    %19 = vector.load %arg8[%c0_9, %c0_10] : memref<2x4xf32, #tpu.memory_space<vmem>>, vector<2x4xf32>
    tpu.vector_store %arg8[%c0_9, %c0_10], %18 {strides = array<i32>} : memref<2x4xf32, #tpu.memory_space<vmem>>, vector<2x4xf32>,
    %c0_11 = arith.constant 0 : index
    %c0_12 = arith.constant 0 : index
    %20 = vector.load %arg5[%c0_11, %c0_12] : memref<4x3xf32, #tpu.memory_space<vmem>>, vector<4x3xf32>
    %cst_13 = arith.constant dense<0.000000e+00> : vector<2x3xf32>
    %21 = tpu.matmul %18, %20, %cst_13 {dimension_numbers = #tpu.dot_dimension_numbers<[1], [0], [0], [1], [0, 0, 1, 1], [], []>} : vector<2x4xf32>, vector<4x3xf32>, vector<2x3xf32> -> vector<2x3xf32>
    %c0_14 = arith.constant 0 : index
    %c0_15 = arith.constant 0 : index
    %22 = vector.load %arg6[%c0_14, %c0_15] : memref<1x3xf32, #tpu.memory_space<vmem>>, vector<1x3xf32>
    %23 = vector.broadcast %22 : vector<1x3xf32> to vector<2x3xf32>
    %24 = arith.addf %21, %23 : vector<2x3xf32>
    %25 = arith.negf %24 : vector<2x3xf32>
    %26 = math.exp %25 : vector<2x3xf32>
    %cst_16 = arith.constant 1.000000e+00 : f32
    %27 = vector.broadcast %cst_16 : f32 to vector<2x3xf32>
    %28 = arith.addf %27, %26 : vector<2x3xf32>
    %29 = arith.divf %27, %28 : vector<2x3xf32>
    %c0_17 = arith.constant 0 : index
    %c0_18 = arith.constant 0 : index
    %30 = vector.load %arg7[%c0_17, %c0_18] : memref<2x3xf32, #tpu.memory_space<vmem>>, vector<2x3xf32>
    tpu.vector_store %arg7[%c0_17, %c0_18], %29 {strides = array<i32>} : memref<2x3xf32, #tpu.memory_space<vmem>>, vector<2x3xf32>,
    return
  }
  func.func @transform_0(%arg0: i32) -> (i32, i32) {
    %c0_i32 = arith.constant 0 : i32
    %c0_i32_0 = arith.constant 0 : i32
    return %arg0, %c0_i32 : i32, i32
  }
  func.func @transform_1(%arg0: i32) -> (i32, i32) {
    %c0_i32 = arith.constant 0 : i32
    %c0_i32_0 = arith.constant 0 : i32
    %c0_i32_1 = arith.constant 0 : i32
    return %c0_i32, %c0_i32_0 : i32, i32
  }
  func.func @transform_2(%arg0: i32) -> (i32, i32) {
    %c0_i32 = arith.constant 0 : i32
    %c0_i32_0 = arith.constant 0 : i32
    %c0_i32_1 = arith.constant 0 : i32
    return %c0_i32, %c0_i32_0 : i32, i32
  }
  func.func @transform_3(%arg0: i32) -> (i32, i32) {
    %c0_i32 = arith.constant 0 : i32
    %c0_i32_0 = arith.constant 0 : i32
    %c0_i32_1 = arith.constant 0 : i32
    return %c0_i32, %c0_i32_0 : i32, i32
  }
  func.func @transform_4(%arg0: i32) -> (i32, i32) {
    %c0_i32 = arith.constant 0 : i32
    %c0_i32_0 = arith.constant 0 : i32
    %c0_i32_1 = arith.constant 0 : i32
    return %c0_i32, %c0_i32_0 : i32, i32
  }
  func.func @transform_5(%arg0: i32) -> (i32, i32) {
    %c0_i32 = arith.constant 0 : i32
    %c0_i32_0 = arith.constant 0 : i32
    %c0_i32_1 = arith.constant 0 : i32
    return %c0_i32, %c0_i32_0 : i32, i32
  }
  func.func @transform_6(%arg0: i32) -> (i32, i32) {
    %c0_i32 = arith.constant 0 : i32
    %c0_i32_0 = arith.constant 0 : i32
    return %arg0, %c0_i32 : i32, i32
  }
  func.func @transform_7(%arg0: i32) -> (i32, i32) {
    %c0_i32 = arith.constant 0 : i32
    %c0_i32_0 = arith.constant 0 : i32
    return %arg0, %c0_i32 : i32, i32
  }
}

</mosaic_0001>

<llo_original>
// kernel: regressor_forward.1
$region0: #{regressor_forward.1}
  #allocation0 [shape = 'u32[]', space=smem, size = 0x4, offset = 0x4, fixed_abs, tag = 'smem constant byte address 0x4 - core index']
  #allocation1 [shape = 'u32[144,128]{1,0:T(1,128)}', space=vmem, size = 0x12000, scoped, tag = 'internal scratch']
  %s0 = inlined_call_operand.vmem [shape: f32[648,4], index: 0, kind: input, shape index: {}]
  %s1 = inlined_call_operand.vmem [shape: f32[36,4], index: 1, kind: input, shape index: {}]
  %s2 = inlined_call_operand.vmem [shape: f32[1,4], index: 2, kind: input, shape index: {}]
  %s3 = inlined_call_operand.vmem [shape: f32[2,648], index: 3, kind: input, shape index: {}]
  %s4 = inlined_call_operand.vmem [shape: f32[4,3], index: 4, kind: input, shape index: {}]
  %s5 = inlined_call_operand.vmem [shape: f32[1,3], index: 5, kind: input, shape index: {}]
  %s6 = inlined_call_operand.hbm [shape: f32[2,3], index: 6, kind: output, shape index: {0}]
  %s7 = inlined_call_operand.hbm [shape: f32[2,4], index: 7, kind: output, shape index: {1}]
  %8 = xla_tuple %s6, %s7
  %s9 = sld [smem:[#allocation0]]
  $region42: #{regressor_forward.1} parent=0
    _
  %s11 = ssub.s32 1, %s9
  %s12 = scalar_select 0, %s11, %s9
  $region1: #{regressor_forward.1} parent=0
    #allocation2 [shape = 'u8[1024]{0}', space=vmem, size = 0x400, scoped, tag = 'output window, operand 0, single buffered']
    #allocation3 [shape = 's32[1]{0}', space=sflag, size = 0x4, scoped, tag = 'scoped memory for regressor_forward.1']
    #allocation4 [shape = 'u8[1024]{0}', space=vmem, size = 0x400, scoped, tag = 'output window, operand 1, single buffered']
    #allocation5 [shape = 's32[1]{0}', space=sflag, size = 0x4, scoped, tag = 'scoped memory for regressor_forward.1']
    %13 = vsyncpa [#allocation3], 0
    %14 = vsyncpa [#allocation5], 0
    // Predicated region
    $region2: #{regressor_forward.1} parent=1 // pred_check
      _
    $region3: #{regressor_forward.1} parent=1 // pred_check_branch
      %16 = sbr.rel (0) target = $region5
    $region4: #{regressor_forward.1} parent=1 // pred_region
      _
    $region5: #{regressor_forward.1} parent=1 // pred_fallthru
      _
    // Predicated region
    $region6: #{regressor_forward.1} parent=1 // pred_check
      _
    $region7: #{regressor_forward.1} parent=1 // pred_check_branch
      %18 = sbr.rel (0) target = $region9
    $region8: #{regressor_forward.1} parent=1 // pred_region
      _
    $region9: #{regressor_forward.1} parent=1 // pred_fallthru
      _
    // Predicated region
    $region10: #{regressor_forward.1} parent=1 // pred_check
      _
    $region11: #{regressor_forward.1} parent=1 // pred_check_branch
      %20 = sbr.rel (0) target = $region13
    $region12: #{regressor_forward.1} parent=1 // pred_region
      _
    $region13: #{regressor_forward.1} parent=1 // pred_fallthru
      _
    // Predicated region
    $region14: #{regressor_forward.1} parent=1 // pred_check
      _
    $region15: #{regressor_forward.1} parent=1 // pred_check_branch
      %22 = sbr.rel (0) target = $region17
    $region16: #{regressor_forward.1} parent=1 // pred_region
      _
    $region17: #{regressor_forward.1} parent=1 // pred_fallthru
      _
    // Predicated region
    $region18: #{regressor_forward.1} parent=1 // pred_check
      _
    $region19: #{regressor_forward.1} parent=1 // pred_check_branch
      %24 = sbr.rel (0) target = $region21
    $region20: #{regressor_forward.1} parent=1 // pred_region
      _
    $region21: #{regressor_forward.1} parent=1 // pred_fallthru
      _
    // Predicated region
    $region22: #{regressor_forward.1} parent=1 // pred_check
      _
    $region23: #{regressor_forward.1} parent=1 // pred_check_branch
      %26 = sbr.rel (0) target = $region25
    $region24: #{regressor_forward.1} parent=1 // pred_region
      _
    $region25: #{regressor_forward.1} parent=1 // pred_fallthru
      _
    %v27 = vld [vmem:[%s0] sm:$0xff]
    %v28 = vld [vmem:[%s0 + $0x8] sm:$0xff]
    %v29 = vld [vmem:[%s0 + $0x10] sm:$0xff]
    %v30 = vld [vmem:[%s0 + $0x18] sm:$0xff]
    %v31 = vld [vmem:[%s0 + $0x20] sm:$0xff]
    %v32 = vld [vmem:[%s0 + $0x28] sm:$0xff]
    %v33 = vld [vmem:[%s0 + $0x30] sm:$0xff]
    %v34 = vld [vmem:[%s0 + $0x38] sm:$0xff]
    %v35 = vld [vmem:[%s0 + $0x40] sm:$0xff]
    %v36 = vld [vmem:[%s0 + $0x48] sm:$0xff]
    %v37 = vld [vmem:[%s0 + $0x50] sm:$0xff]
    %v38 = vld [vmem:[%s0 + $0x58] sm:$0xff]
    %v39 = vld [vmem:[%s0 + $0x60] sm:$0xff]
    %v40 = vld [vmem:[%s0 + $0x68] sm:$0xff]
    %v41 = vld [vmem:[%s0 + $0x70] sm:$0xff]
    %v42 = vld [vmem:[%s0 + $0x78] sm:$0xff]
    %v43 = vld [vmem:[%s0 + $0x80] sm:$0xff]
    %v44 = vld [vmem:[%s0 + $0x88] sm:$0xff]
    %v45 = vld [vmem:[%s0 + $0x90] sm:$0xff]
    %v46 = vld [vmem:[%s0 + $0x98] sm:$0xff]
    %v47 = vld [vmem:[%s0 + $0xa0] sm:$0xff]
    %v48 = vld [vmem:[%s0 + $0xa8] sm:$0xff]
    %v49 = vld [vmem:[%s0 + $0xb0] sm:$0xff]
    %v50 = vld [vmem:[%s0 + $0xb8] sm:$0xff]
    %v51 = vld [vmem:[%s0 + $0xc0] sm:$0xff]
    %v52 = vld [vmem:[%s0 + $0xc8] sm:$0xff]
    %v53 = vld [vmem:[%s0 + $0xd0] sm:$0xff]
    %v54 = vld [vmem:[%s0 + $0xd8] sm:$0xff]
    %v55 = vld [vmem:[%s0 + $0xe0] sm:$0xff]
    %v56 = vld [vmem:[%s0 + $0xe8] sm:$0xff]
    %v57 = vld [vmem:[%s0 + $0xf0] sm:$0xff]
    %v58 = vld [vmem:[%s0 + $0xf8] sm:$0xff]
    %v59 = vld [vmem:[%s0 + $0x100] sm:$0xff]
    %v60 = vld [vmem:[%s0 + $0x108] sm:$0xff]
    %v61 = vld [vmem:[%s0 + $0x110] sm:$0xff]
    %v62 = vld [vmem:[%s0 + $0x118] sm:$0xff]
    %v63 = vld [vmem:[%s0 + $0x120] sm:$0xff]
    %v64 = vld [vmem:[%s0 + $0x128] sm:$0xff]
    %v65 = vld [vmem:[%s0 + $0x130] sm:$0xff]
    %v66 = vld [vmem:[%s0 + $0x138] sm:$0xff]
    %v67 = vld [vmem:[%s0 + $0x140] sm:$0xff]
    %v68 = vld [vmem:[%s0 + $0x148] sm:$0xff]
    %v69 = vld [vmem:[%s0 + $0x150] sm:$0xff]
    %v70 = vld [vmem:[%s0 + $0x158] sm:$0xff]
    %v71 = vld [vmem:[%s0 + $0x160] sm:$0xff]
    %v72 = vld [vmem:[%s0 + $0x168] sm:$0xff]
    %v73 = vld [vmem:[%s0 + $0x170] sm:$0xff]
    %v74 = vld [vmem:[%s0 + $0x178] sm:$0xff]
    %v75 = vld [vmem:[%s0 + $0x180] sm:$0xff]
    %v76 = vld [vmem:[%s0 + $0x188] sm:$0xff]
    %v77 = vld [vmem:[%s0 + $0x190] sm:$0xff]
    %v78 = vld [vmem:[%s0 + $0x198] sm:$0xff]
    %v79 = vld [vmem:[%s0 + $0x1a0] sm:$0xff]
    %v80 = vld [vmem:[%s0 + $0x1a8] sm:$0xff]
    %v81 = vld [vmem:[%s0 + $0x1b0] sm:$0xff]
    %v82 = vld [vmem:[%s0 + $0x1b8] sm:$0xff]
    %v83 = vld [vmem:[%s0 + $0x1c0] sm:$0xff]
    %v84 = vld [vmem:[%s0 + $0x1c8] sm:$0xff]
    %v85 = vld [vmem:[%s0 + $0x1d0] sm:$0xff]
    %v86 = vld [vmem:[%s0 + $0x1d8] sm:$0xff]
    %v87 = vld [vmem:[%s0 + $0x1e0] sm:$0xff]
    %v88 = vld [vmem:[%s0 + $0x1e8] sm:$0xff]
    %v89 = vld [vmem:[%s0 + $0x1f0] sm:$0xff]
    %v90 = vld [vmem:[%s0 + $0x1f8] sm:$0xff]
    %v91 = vld [vmem:[%s0 + $0x200] sm:$0xff]
    %v92 = vld [vmem:[%s0 + $0x208] sm:$0xff]
    %v93 = vld [vmem:[%s0 + $0x210] sm:$0xff]
    %v94 = vld [vmem:[%s0 + $0x218] sm:$0xff]
    %v95 = vld [vmem:[%s0 + $0x220] sm:$0xff]
    %v96 = vld [vmem:[%s0 + $0x228] sm:$0xff]
    %v97 = vld [vmem:[%s0 + $0x230] sm:$0xff]
    %v98 = vld [vmem:[%s0 + $0x238] sm:$0xff]
    %v99 = vld [vmem:[%s0 + $0x240] sm:$0xff]
    %v100 = vld [vmem:[%s0 + $0x248] sm:$0xff]
    %v101 = vld [vmem:[%s0 + $0x250] sm:$0xff]
    %v102 = vld [vmem:[%s0 + $0x258] sm:$0xff]
    %v103 = vld [vmem:[%s0 + $0x260] sm:$0xff]
    %v104 = vld [vmem:[%s0 + $0x268] sm:$0xff]
    %v105 = vld [vmem:[%s0 + $0x270] sm:$0xff]
    %v106 = vld [vmem:[%s0 + $0x278] sm:$0xff]
    %v107 = vld [vmem:[%s0 + $0x280] sm:$0xff]
    %v108 = vrot.slane %v27, 5
    %v109 = vrot.slane %v28, 5
    %v110 = vrot.slane %v29, 5
    %v111 = vrot.slane %v30, 5
    %v112 = vrot.slane %v31, 5
    %v113 = vrot.slane %v32, 5
    %v114 = vrot.slane %v33, 5
    %v115 = vrot.slane %v34, 5
    %v116 = vrot.slane %v35, 5
    %v117 = vrot.slane %v36, 5
    %v118 = vrot.slane %v37, 5
    %v119 = vrot.slane %v38, 5
    %v120 = vrot.slane %v39, 5
    %v121 = vrot.slane %v40, 5
    %v122 = vrot.slane %v41, 5
    %v123 = vrot.slane %v42, 5
    %v124 = vrot.slane %v43, 5
    %v125 = vrot.slane %v44, 5
    %v126 = vrot.slane %v45, 5
    %v127 = vrot.slane %v46, 5
    %v128 = vrot.slane %v47, 5
    %v129 = vrot.slane %v48, 5
    %v130 = vrot.slane %v49, 5
    %v131 = vrot.slane %v50, 5
    %v132 = vrot.slane %v51, 5
    %v133 = vrot.slane %v52, 5
    %v134 = vrot.slane %v53, 5
    %v135 = vrot.slane %v54, 5
    %v136 = vrot.slane %v55, 5
    %v137 = vrot.slane %v56, 5
    %v138 = vrot.slane %v57, 5
    %v139 = vrot.slane %v58, 5
    %v140 = vrot.slane %v59, 5
    %v141 = vrot.slane %v60, 5
    %v142 = vrot.slane %v61, 5
    %v143 = vrot.slane %v62, 5
    %v144 = vrot.slane %v63, 5
    %v145 = vrot.slane %v64, 5
    %v146 = vrot.slane %v65, 5
    %v147 = vrot.slane %v66, 5
    %v148 = vrot.slane %v67, 5
    %v149 = vrot.slane %v68, 5
    %v150 = vrot.slane %v69, 5
    %v151 = vrot.slane %v70, 5
    %v152 = vrot.slane %v71, 5
    %v153 = vrot.slane %v72, 5
    %v154 = vrot.slane %v73, 5
    %v155 = vrot.slane %v74, 5
    %v156 = vrot.slane %v75, 5
    %v157 = vrot.slane %v76, 5
    %v158 = vrot.slane %v77, 5
    %v159 = vrot.slane %v78, 5
    %v160 = vrot.slane %v79, 5
    %v161 = vrot.slane %v80, 5
    %v162 = vrot.slane %v81, 5
    %v163 = vrot.slane %v82, 5
    %v164 = vrot.slane %v83, 5
    %v165 = vrot.slane %v84, 5
    %v166 = vrot.slane %v85, 5
    %v167 = vrot.slane %v86, 5
    %v168 = vrot.slane %v87, 5
    %v169 = vrot.slane %v88, 5
    %v170 = vrot.slane %v89, 5
    %v171 = vrot.slane %v90, 5
    %v172 = vrot.slane %v91, 5
    %v173 = vrot.slane %v92, 5
    %v174 = vrot.slane %v93, 5
    %v175 = vrot.slane %v94, 5
    %v176 = vrot.slane %v95, 5
    %v177 = vrot.slane %v96, 5
    %v178 = vrot.slane %v97, 5
    %v179 = vrot.slane %v98, 5
    %v180 = vrot.slane %v99, 5
    %v181 = vrot.slane %v100, 5
    %v182 = vrot.slane %v101, 5
    %v183 = vrot.slane %v102, 5
    %v184 = vrot.slane %v103, 5
    %v185 = vrot.slane %v104, 5
    %v186 = vrot.slane %v105, 5
    %v187 = vrot.slane %v106, 5
    %v188 = vrot.slane %v107, 5
    %v189 = vlaneseq
    %v190 = vshrl.u32 %v189, 7
    %vm191 = vcmp.lt.s32.totalorder %v190, 3
    %v192 = vsel %vm191, %v187, %v188
    %v193 = vsel %vm191, %v186, %v187
    %v194 = vsel %vm191, %v185, %v186
    %v195 = vsel %vm191, %v184, %v185
    %v196 = vsel %vm191, %v183, %v184
    %v197 = vsel %vm191, %v182, %v183
    %v198 = vsel %vm191, %v181, %v182
    %v199 = vsel %vm191, %v180, %v181
    %v200 = vsel %vm191, %v179, %v180
    %v201 = vsel %vm191, %v178, %v179
    %v202 = vsel %vm191, %v177, %v178
    %v203 = vsel %vm191, %v176, %v177
    %v204 = vsel %vm191, %v175, %v176
    %v205 = vsel %vm191, %v174, %v175
    %v206 = vsel %vm191, %v173, %v174
    %v207 = vsel %vm191, %v172, %v173
    %v208 = vsel %vm191, %v171, %v172
    %v209 = vsel %vm191, %v170, %v171
    %v210 = vsel %vm191, %v169, %v170
    %v211 = vsel %vm191, %v168, %v169
    %v212 = vsel %vm191, %v167, %v168
    %v213 = vsel %vm191, %v166, %v167
    %v214 = vsel %vm191, %v165, %v166
    %v215 = vsel %vm191, %v164, %v165
    %v216 = vsel %vm191, %v163, %v164
    %v217 = vsel %vm191, %v162, %v163
    %v218 = vsel %vm191, %v161, %v162
    %v219 = vsel %vm191, %v160, %v161
    %v220 = vsel %vm191, %v159, %v160
    %v221 = vsel %vm191, %v158, %v159
    %v222 = vsel %vm191, %v157, %v158
    %v223 = vsel %vm191, %v156, %v157
    %v224 = vsel %vm191, %v155, %v156
    %v225 = vsel %vm191, %v154, %v155
    %v226 = vsel %vm191, %v153, %v154
    %v227 = vsel %vm191, %v152, %v153
    %v228 = vsel %vm191, %v151, %v152
    %v229 = vsel %vm191, %v150, %v151
    %v230 = vsel %vm191, %v149, %v150
    %v231 = vsel %vm191, %v148, %v149
    %v232 = vsel %vm191, %v147, %v148
    %v233 = vsel %vm191, %v146, %v147
    %v234 = vsel %vm191, %v145, %v146
    %v235 = vsel %vm191, %v144, %v145
    %v236 = vsel %vm191, %v143, %v144
    %v237 = vsel %vm191, %v142, %v143
    %v238 = vsel %vm191, %v141, %v142
    %v239 = vsel %vm191, %v140, %v141
    %v240 = vsel %vm191, %v139, %v140
    %v241 = vsel %vm191, %v138, %v139
    %v242 = vsel %vm191, %v137, %v138
    %v243 = vsel %vm191, %v136, %v137
    %v244 = vsel %vm191, %v135, %v136
    %v245 = vsel %vm191, %v134, %v135
    %v246 = vsel %vm191, %v133, %v134
    %v247 = vsel %vm191, %v132, %v133
    %v248 = vsel %vm191, %v131, %v132
    %v249 = vsel %vm191, %v130, %v131
    %v250 = vsel %vm191, %v129, %v130
    %v251 = vsel %vm191, %v128, %v129
    %v252 = vsel %vm191, %v127, %v128
    %v253 = vsel %vm191, %v126, %v127
    %v254 = vsel %vm191, %v125, %v126
    %v255 = vsel %vm191, %v124, %v125
    %v256 = vsel %vm191, %v123, %v124
    %v257 = vsel %vm191, %v122, %v123
    %v258 = vsel %vm191, %v121, %v122
    %v259 = vsel %vm191, %v120, %v121
    %v260 = vsel %vm191, %v119, %v120
    %v261 = vsel %vm191, %v118, %v119
    %v262 = vsel %vm191, %v117, %v118
    %v263 = vsel %vm191, %v116, %v117
    %v264 = vsel %vm191, %v115, %v116
    %v265 = vsel %vm191, %v114, %v115
    %v266 = vsel %vm191, %v113, %v114
    %v267 = vsel %vm191, %v112, %v113
    %v268 = vsel %vm191, %v111, %v112
    %v269 = vsel %vm191, %v110, %v111
    %v270 = vsel %vm191, %v109, %v110
    %v271 = vsel %vm191, %v108, %v109
    %v272 = vsel %vm191, %v188, %v108
    %v273 = vrot.slane %v27, 6
    %v274 = vrot.slane %v28, 6
    %v275 = vrot.slane %v29, 6
    %v276 = vrot.slane %v30, 6
    %v277 = vrot.slane %v31, 6
    %v278 = vrot.slane %v32, 6
    %v279 = vrot.slane %v33, 6
    %v280 = vrot.slane %v34, 6
    %v281 = vrot.slane %v35, 6
    %v282 = vrot.slane %v36, 6
    %v283 = vrot.slane %v37, 6
    %v284 = vrot.slane %v38, 6
    %v285 = vrot.slane %v39, 6
    %v286 = vrot.slane %v40, 6
    %v287 = vrot.slane %v41, 6
    %v288 = vrot.slane %v42, 6
    %v289 = vrot.slane %v43, 6
    %v290 = vrot.slane %v44, 6
    %v291 = vrot.slane %v45, 6
    %v292 = vrot.slane %v46, 6
    %v293 = vrot.slane %v47, 6
    %v294 = vrot.slane %v48, 6
    %v295 = vrot.slane %v49, 6
    %v296 = vrot.slane %v50, 6
    %v297 = vrot.slane %v51, 6
    %v298 = vrot.slane %v52, 6
    %v299 = vrot.slane %v53, 6
    %v300 = vrot.slane %v54, 6
    %v301 = vrot.slane %v55, 6
    %v302 = vrot.slane %v56, 6
    %v303 = vrot.slane %v57, 6
    %v304 = vrot.slane %v58, 6
    %v305 = vrot.slane %v59, 6
    %v306 = vrot.slane %v60, 6
    %v307 = vrot.slane %v61, 6
    %v308 = vrot.slane %v62, 6
    %v309 = vrot.slane %v63, 6
    %v310 = vrot.slane %v64, 6
    %v311 = vrot.slane %v65, 6
    %v312 = vrot.slane %v66, 6
    %v313 = vrot.slane %v67, 6
    %v314 = vrot.slane %v68, 6
    %v315 = vrot.slane %v69, 6
    %v316 = vrot.slane %v70, 6
    %v317 = vrot.slane %v71, 6
    %v318 = vrot.slane %v72, 6
    %v319 = vrot.slane %v73, 6
    %v320 = vrot.slane %v74, 6
    %v321 = vrot.slane %v75, 6
    %v322 = vrot.slane %v76, 6
    %v323 = vrot.slane %v77, 6
    %v324 = vrot.slane %v78, 6
    %v325 = vrot.slane %v79, 6
    %v326 = vrot.slane %v80, 6
    %v327 = vrot.slane %v81, 6
    %v328 = vrot.slane %v82, 6
    %v329 = vrot.slane %v83, 6
    %v330 = vrot.slane %v84, 6
    %v331 = vrot.slane %v85, 6
    %v332 = vrot.slane %v86, 6
    %v333 = vrot.slane %v87, 6
    %v334 = vrot.slane %v88, 6
    %v335 = vrot.slane %v89, 6
    %v336 = vrot.slane %v90, 6
    %v337 = vrot.slane %v91, 6
    %v338 = vrot.slane %v92, 6
    %v339 = vrot.slane %v93, 6
    %v340 = vrot.slane %v94, 6
    %v341 = vrot.slane %v95, 6
    %v342 = vrot.slane %v96, 6
    %v343 = vrot.slane %v97, 6
    %v344 = vrot.slane %v98, 6
    %v345 = vrot.slane %v99, 6
    %v346 = vrot.slane %v100, 6
    %v347 = vrot.slane %v101, 6
    %v348 = vrot.slane %v102, 6
    %v349 = vrot.slane %v103, 6
    %v350 = vrot.slane %v104, 6
    %v351 = vrot.slane %v105, 6
    %v352 = vrot.slane %v106, 6
    %v353 = vrot.slane %v107, 6
    %vm354 = vcmp.lt.s32.totalorder %v190, 2
    %v355 = vsel %vm354, %v352, %v353
    %v356 = vsel %vm354, %v351, %v352
    %v357 = vsel %vm354, %v350, %v351
    %v358 = vsel %vm354, %v349, %v350
    %v359 = vsel %vm354, %v348, %v349
    %v360 = vsel %vm354, %v347, %v348
    %v361 = vsel %vm354, %v346, %v347
    %v362 = vsel %vm354, %v345, %v346
    %v363 = vsel %vm354, %v344, %v345
    %v364 = vsel %vm354, %v343, %v344
    %v365 = vsel %vm354, %v342, %v343
    %v366 = vsel %vm354, %v341, %v342
    %v367 = vsel %vm354, %v340, %v341
    %v368 = vsel %vm354, %v339, %v340
    %v369 = vsel %vm354, %v338, %v339
    %v370 = vsel %vm354, %v337, %v338
    %v371 = vsel %vm354, %v336, %v337
    %v372 = vsel %vm354, %v335, %v336
    %v373 = vsel %vm354, %v334, %v335
    %v374 = vsel %vm354, %v333, %v334
    %v375 = vsel %vm354, %v332, %v333
    %v376 = vsel %vm354, %v331, %v332
    %v377 = vsel %vm354, %v330, %v331
    %v378 = vsel %vm354, %v329, %v330
    %v379 = vsel %vm354, %v328, %v329
    %v380 = vsel %vm354, %v327, %v328
    %v381 = vsel %vm354, %v326, %v327
    %v382 = vsel %vm354, %v325, %v326
    %v383 = vsel %vm354, %v324, %v325
    %v384 = vsel %vm354, %v323, %v324
    %v385 = vsel %vm354, %v322, %v323
    %v386 = vsel %vm354, %v321, %v322
    %v387 = vsel %vm354, %v320, %v321
    %v388 = vsel %vm354, %v319, %v320
    %v389 = vsel %vm354, %v318, %v319
    %v390 = vsel %vm354, %v317, %v318
    %v391 = vsel %vm354, %v316, %v317
    %v392 = vsel %vm354, %v315, %v316
    %v393 = vsel %vm354, %v314, %v315
    %v394 = vsel %vm354, %v313, %v314
    %v395 = vsel %vm354, %v312, %v313
    %v396 = vsel %vm354, %v311, %v312
    %v397 = vsel %vm354, %v310, %v311
    %v398 = vsel %vm354, %v309, %v310
    %v399 = vsel %vm354, %v308, %v309
    %v400 = vsel %vm354, %v307, %v308
    %v401 = vsel %vm354, %v306, %v307
    %v402 = vsel %vm354, %v305, %v306
    %v403 = vsel %vm354, %v304, %v305
    %v404 = vsel %vm354, %v303, %v304
    %v405 = vsel %vm354, %v302, %v303
    %v406 = vsel %vm354, %v301, %v302
    %v407 = vsel %vm354, %v300, %v301
    %v408 = vsel %vm354, %v299, %v300
    %v409 = vsel %vm354, %v298, %v299
    %v410 = vsel %vm354, %v297, %v298
    %v411 = vsel %vm354, %v296, %v297
    %v412 = vsel %vm354, %v295, %v296
    %v413 = vsel %vm354, %v294, %v295
    %v414 = vsel %vm354, %v293, %v294
    %v415 = vsel %vm354, %v292, %v293
    %v416 = vsel %vm354, %v291, %v292
    %v417 = vsel %vm354, %v290, %v291
    %v418 = vsel %vm354, %v289, %v290
    %v419 = vsel %vm354, %v288, %v289
    %v420 = vsel %vm354, %v287, %v288
    %v421 = vsel %vm354, %v286, %v287
    %v422 = vsel %vm354, %v285, %v286
    %v423 = vsel %vm354, %v284, %v285
    %v424 = vsel %vm354, %v283, %v284
    %v425 = vsel %vm354, %v282, %v283
    %v426 = vsel %vm354, %v281, %v282
    %v427 = vsel %vm354, %v280, %v281
    %v428 = vsel %vm354, %v279, %v280
    %v429 = vsel %vm354, %v278, %v279
    %v430 = vsel %vm354, %v277, %v278
    %v431 = vsel %vm354, %v276, %v277
    %v432 = vsel %vm354, %v275, %v276
    %v433 = vsel %vm354, %v274, %v275
    %v434 = vsel %vm354, %v273, %v274
    %v435 = vsel %vm354, %v353, %v273
    %v436 = vrot.slane %v27, 7
    %v437 = vrot.slane %v28, 7
    %v438 = vrot.slane %v29, 7
    %v439 = vrot.slane %v30, 7
    %v440 = vrot.slane %v31, 7
    %v441 = vrot.slane %v32, 7
    %v442 = vrot.slane %v33, 7
    %v443 = vrot.slane %v34, 7
    %v444 = vrot.slane %v35, 7
    %v445 = vrot.slane %v36, 7
    %v446 = vrot.slane %v37, 7
    %v447 = vrot.slane %v38, 7
    %v448 = vrot.slane %v39, 7
    %v449 = vrot.slane %v40, 7
    %v450 = vrot.slane %v41, 7
    %v451 = vrot.slane %v42, 7
    %v452 = vrot.slane %v43, 7
    %v453 = vrot.slane %v44, 7
    %v454 = vrot.slane %v45, 7
    %v455 = vrot.slane %v46, 7
    %v456 = vrot.slane %v47, 7
    %v457 = vrot.slane %v48, 7
    %v458 = vrot.slane %v49, 7
    %v459 = vrot.slane %v50, 7
    %v460 = vrot.slane %v51, 7
    %v461 = vrot.slane %v52, 7
    %v462 = vrot.slane %v53, 7
    %v463 = vrot.slane %v54, 7
    %v464 = vrot.slane %v55, 7
    %v465 = vrot.slane %v56, 7
    %v466 = vrot.slane %v57, 7
    %v467 = vrot.slane %v58, 7
    %v468 = vrot.slane %v59, 7
    %v469 = vrot.slane %v60, 7
    %v470 = vrot.slane %v61, 7
    %v471 = vrot.slane %v62, 7
    %v472 = vrot.slane %v63, 7
    %v473 = vrot.slane %v64, 7
    %v474 = vrot.slane %v65, 7
    %v475 = vrot.slane %v66, 7
    %v476 = vrot.slane %v67, 7
    %v477 = vrot.slane %v68, 7
    %v478 = vrot.slane %v69, 7
    %v479 = vrot.slane %v70, 7
    %v480 = vrot.slane %v71, 7
    %v481 = vrot.slane %v72, 7
    %v482 = vrot.slane %v73, 7
    %v483 = vrot.slane %v74, 7
    %v484 = vrot.slane %v75, 7
    %v485 = vrot.slane %v76, 7
    %v486 = vrot.slane %v77, 7
    %v487 = vrot.slane %v78, 7
    %v488 = vrot.slane %v79, 7
    %v489 = vrot.slane %v80, 7
    %v490 = vrot.slane %v81, 7
    %v491 = vrot.slane %v82, 7
    %v492 = vrot.slane %v83, 7
    %v493 = vrot.slane %v84, 7
    %v494 = vrot.slane %v85, 7
    %v495 = vrot.slane %v86, 7
    %v496 = vrot.slane %v87, 7
    %v497 = vrot.slane %v88, 7
    %v498 = vrot.slane %v89, 7
    %v499 = vrot.slane %v90, 7
    %v500 = vrot.slane %v91, 7
    %v501 = vrot.slane %v92, 7
    %v502 = vrot.slane %v93, 7
    %v503 = vrot.slane %v94, 7
    %v504 = vrot.slane %v95, 7
    %v505 = vrot.slane %v96, 7
    %v506 = vrot.slane %v97, 7
    %v507 = vrot.slane %v98, 7
    %v508 = vrot.slane %v99, 7
    %v509 = vrot.slane %v100, 7
    %v510 = vrot.slane %v101, 7
    %v511 = vrot.slane %v102, 7
    %v512 = vrot.slane %v103, 7
    %v513 = vrot.slane %v104, 7
    %v514 = vrot.slane %v105, 7
    %v515 = vrot.slane %v106, 7
    %v516 = vrot.slane %v107, 7
    %vm517 = vcmp.lt.s32.totalorder %v190, 1
    %v518 = vsel %vm517, %v515, %v516
    %v519 = vsel %vm517, %v514, %v515
    %v520 = vsel %vm517, %v513, %v514
    %v521 = vsel %vm517, %v512, %v513
    %v522 = vsel %vm517, %v511, %v512
    %v523 = vsel %vm517, %v510, %v511
    %v524 = vsel %vm517, %v509, %v510
    %v525 = vsel %vm517, %v508, %v509
    %v526 = vsel %vm517, %v507, %v508
    %v527 = vsel %vm517, %v506, %v507
    %v528 = vsel %vm517, %v505, %v506
    %v529 = vsel %vm517, %v504, %v505
    %v530 = vsel %vm517, %v503, %v504
    %v531 = vsel %vm517, %v502, %v503
    %v532 = vsel %vm517, %v501, %v502
    %v533 = vsel %vm517, %v500, %v501
    %v534 = vsel %vm517, %v499, %v500
    %v535 = vsel %vm517, %v498, %v499
    %v536 = vsel %vm517, %v497, %v498
    %v537 = vsel %vm517, %v496, %v497
    %v538 = vsel %vm517, %v495, %v496
    %v539 = vsel %vm517, %v494, %v495
    %v540 = vsel %vm517, %v493, %v494
    %v541 = vsel %vm517, %v492, %v493
    %v542 = vsel %vm517, %v491, %v492
    %v543 = vsel %vm517, %v490, %v491
    %v544 = vsel %vm517, %v489, %v490
    %v545 = vsel %vm517, %v488, %v489
    %v546 = vsel %vm517, %v487, %v488
    %v547 = vsel %vm517, %v486, %v487
    %v548 = vsel %vm517, %v485, %v486
    %v549 = vsel %vm517, %v484, %v485
    %v550 = vsel %vm517, %v483, %v484
    %v551 = vsel %vm517, %v482, %v483
    %v552 = vsel %vm517, %v481, %v482
    %v553 = vsel %vm517, %v480, %v481
    %v554 = vsel %vm517, %v479, %v480
    %v555 = vsel %vm517, %v478, %v479
    %v556 = vsel %vm517, %v477, %v478
    %v557 = vsel %vm517, %v476, %v477
    %v558 = vsel %vm517, %v475, %v476
    %v559 = vsel %vm517, %v474, %v475
    %v560 = vsel %vm517, %v473, %v474
    %v561 = vsel %vm517, %v472, %v473
    %v562 = vsel %vm517, %v471, %v472
    %v563 = vsel %vm517, %v470, %v471
    %v564 = vsel %vm517, %v469, %v470
    %v565 = vsel %vm517, %v468, %v469
    %v566 = vsel %vm517, %v467, %v468
    %v567 = vsel %vm517, %v466, %v467
    %v568 = vsel %vm517, %v465, %v466
    %v569 = vsel %vm517, %v464, %v465
    %v570 = vsel %vm517, %v463, %v464
    %v571 = vsel %vm517, %v462, %v463
    %v572 = vsel %vm517, %v461, %v462
    %v573 = vsel %vm517, %v460, %v461
    %v574 = vsel %vm517, %v459, %v460
    %v575 = vsel %vm517, %v458, %v459
    %v576 = vsel %vm517, %v457, %v458
    %v577 = vsel %vm517, %v456, %v457
    %v578 = vsel %vm517, %v455, %v456
    %v579 = vsel %vm517, %v454, %v455
    %v580 = vsel %vm517, %v453, %v454
    %v581 = vsel %vm517, %v452, %v453
    %v582 = vsel %vm517, %v451, %v452
    %v583 = vsel %vm517, %v450, %v451
    %v584 = vsel %vm517, %v449, %v450
    %v585 = vsel %vm517, %v448, %v449
    %v586 = vsel %vm517, %v447, %v448
    %v587 = vsel %vm517, %v446, %v447
    %v588 = vsel %vm517, %v445, %v446
    %v589 = vsel %vm517, %v444, %v445
    %v590 = vsel %vm517, %v443, %v444
    %v591 = vsel %vm517, %v442, %v443
    %v592 = vsel %vm517, %v441, %v442
    %v593 = vsel %vm517, %v440, %v441
    %v594 = vsel %vm517, %v439, %v440
    %v595 = vsel %vm517, %v438, %v439
    %v596 = vsel %vm517, %v437, %v438
    %v597 = vsel %vm517, %v436, %v437
    %v598 = vsel %vm517, %v516, %v436
    %v599 = vrot.slane %v27, 1
    %v600 = vrot.slane %v28, 1
    %v601 = vrot.slane %v29, 1
    %v602 = vrot.slane %v30, 1
    %v603 = vrot.slane %v31, 1
    %v604 = vrot.slane %v32, 1
    %v605 = vrot.slane %v33, 1
    %v606 = vrot.slane %v34, 1
    %v607 = vrot.slane %v35, 1
    %v608 = vrot.slane %v36, 1
    %v609 = vrot.slane %v37, 1
    %v610 = vrot.slane %v38, 1
    %v611 = vrot.slane %v39, 1
    %v612 = vrot.slane %v40, 1
    %v613 = vrot.slane %v41, 1
    %v614 = vrot.slane %v42, 1
    %v615 = vrot.slane %v43, 1
    %v616 = vrot.slane %v44, 1
    %v617 = vrot.slane %v45, 1
    %v618 = vrot.slane %v46, 1
    %v619 = vrot.slane %v47, 1
    %v620 = vrot.slane %v48, 1
    %v621 = vrot.slane %v49, 1
    %v622 = vrot.slane %v50, 1
    %v623 = vrot.slane %v51, 1
    %v624 = vrot.slane %v52, 1
    %v625 = vrot.slane %v53, 1
    %v626 = vrot.slane %v54, 1
    %v627 = vrot.slane %v55, 1
    %v628 = vrot.slane %v56, 1
    %v629 = vrot.slane %v57, 1
    %v630 = vrot.slane %v58, 1
    %v631 = vrot.slane %v59, 1
    %v632 = vrot.slane %v60, 1
    %v633 = vrot.slane %v61, 1
    %v634 = vrot.slane %v62, 1
    %v635 = vrot.slane %v63, 1
    %v636 = vrot.slane %v64, 1
    %v637 = vrot.slane %v65, 1
    %v638 = vrot.slane %v66, 1
    %v639 = vrot.slane %v67, 1
    %v640 = vrot.slane %v68, 1
    %v641 = vrot.slane %v69, 1
    %v642 = vrot.slane %v70, 1
    %v643 = vrot.slane %v71, 1
    %v644 = vrot.slane %v72, 1
    %v645 = vrot.slane %v73, 1
    %v646 = vrot.slane %v74, 1
    %v647 = vrot.slane %v75, 1
    %v648 = vrot.slane %v76, 1
    %v649 = vrot.slane %v77, 1
    %v650 = vrot.slane %v78, 1
    %v651 = vrot.slane %v79, 1
    %v652 = vrot.slane %v80, 1
    %v653 = vrot.slane %v81, 1
    %v654 = vrot.slane %v82, 1
    %v655 = vrot.slane %v83, 1
    %v656 = vrot.slane %v84, 1
    %v657 = vrot.slane %v85, 1
    %v658 = vrot.slane %v86, 1
    %v659 = vrot.slane %v87, 1
    %v660 = vrot.slane %v88, 1
    %v661 = vrot.slane %v89, 1
    %v662 = vrot.slane %v90, 1
    %v663 = vrot.slane %v91, 1
    %v664 = vrot.slane %v92, 1
    %v665 = vrot.slane %v93, 1
    %v666 = vrot.slane %v94, 1
    %v667 = vrot.slane %v95, 1
    %v668 = vrot.slane %v96, 1
    %v669 = vrot.slane %v97, 1
    %v670 = vrot.slane %v98, 1
    %v671 = vrot.slane %v99, 1
    %v672 = vrot.slane %v100, 1
    %v673 = vrot.slane %v101, 1
    %v674 = vrot.slane %v102, 1
    %v675 = vrot.slane %v103, 1
    %v676 = vrot.slane %v104, 1
    %v677 = vrot.slane %v105, 1
    %v678 = vrot.slane %v106, 1
    %v679 = vrot.slane %v107, 1
    %vm680 = vcmp.lt.s32.totalorder %v190, 7
    %v681 = vsel %vm680, %v678, %v679
    %v682 = vsel %vm680, %v677, %v678
    %v683 = vsel %vm680, %v676, %v677
    %v684 = vsel %vm680, %v675, %v676
    %v685 = vsel %vm680, %v674, %v675
    %v686 = vsel %vm680, %v673, %v674
    %v687 = vsel %vm680, %v672, %v673
    %v688 = vsel %vm680, %v671, %v672
    %v689 = vsel %vm680, %v670, %v671
    %v690 = vsel %vm680, %v669, %v670
    %v691 = vsel %vm680, %v668, %v669
    %v692 = vsel %vm680, %v667, %v668
    %v693 = vsel %vm680, %v666, %v667
    %v694 = vsel %vm680, %v665, %v666
    %v695 = vsel %vm680, %v664, %v665
    %v696 = vsel %vm680, %v663, %v664
    %v697 = vsel %vm680, %v662, %v663
    %v698 = vsel %vm680, %v661, %v662
    %v699 = vsel %vm680, %v660, %v661
    %v700 = vsel %vm680, %v659, %v660
    %v701 = vsel %vm680, %v658, %v659
    %v702 = vsel %vm680, %v657, %v658
    %v703 = vsel %vm680, %v656, %v657
    %v704 = vsel %vm680, %v655, %v656
    %v705 = vsel %vm680, %v654, %v655
    %v706 = vsel %vm680, %v653, %v654
    %v707 = vsel %vm680, %v652, %v653
    %v708 = vsel %vm680, %v651, %v652
    %v709 = vsel %vm680, %v650, %v651
    %v710 = vsel %vm680, %v649, %v650
    %v711 = vsel %vm680, %v648, %v649
    %v712 = vsel %vm680, %v647, %v648
    %v713 = vsel %vm680, %v646, %v647
    %v714 = vsel %vm680, %v645, %v646
    %v715 = vsel %vm680, %v644, %v645
    %v716 = vsel %vm680, %v643, %v644
    %v717 = vsel %vm680, %v642, %v643
    %v718 = vsel %vm680, %v641, %v642
    %v719 = vsel %vm680, %v640, %v641
    %v720 = vsel %vm680, %v639, %v640
    %v721 = vsel %vm680, %v638, %v639
    %v722 = vsel %vm680, %v637, %v638
    %v723 = vsel %vm680, %v636, %v637
    %v724 = vsel %vm680, %v635, %v636
    %v725 = vsel %vm680, %v634, %v635
    %v726 = vsel %vm680, %v633, %v634
    %v727 = vsel %vm680, %v632, %v633
    %v728 = vsel %vm680, %v631, %v632
    %v729 = vsel %vm680, %v630, %v631
    %v730 = vsel %vm680, %v629, %v630
    %v731 = vsel %vm680, %v628, %v629
    %v732 = vsel %vm680, %v627, %v628
    %v733 = vsel %vm680, %v626, %v627
    %v734 = vsel %vm680, %v625, %v626
    %v735 = vsel %vm680, %v624, %v625
    %v736 = vsel %vm680, %v623, %v624
    %v737 = vsel %vm680, %v622, %v623
    %v738 = vsel %vm680, %v621, %v622
    %v739 = vsel %vm680, %v620, %v621
    %v740 = vsel %vm680, %v619, %v620
    %v741 = vsel %vm680, %v618, %v619
    %v742 = vsel %vm680, %v617, %v618
    %v743 = vsel %vm680, %v616, %v617
    %v744 = vsel %vm680, %v615, %v616
    %v745 = vsel %vm680, %v614, %v615
    %v746 = vsel %vm680, %v613, %v614
    %v747 = vsel %vm680, %v612, %v613
    %v748 = vsel %vm680, %v611, %v612
    %v749 = vsel %vm680, %v610, %v611
    %v750 = vsel %vm680, %v609, %v610
    %v751 = vsel %vm680, %v608, %v609
    %v752 = vsel %vm680, %v607, %v608
    %v753 = vsel %vm680, %v606, %v607
    %v754 = vsel %vm680, %v605, %v606
    %v755 = vsel %vm680, %v604, %v605
    %v756 = vsel %vm680, %v603, %v604
    %v757 = vsel %vm680, %v602, %v603
    %v758 = vsel %vm680, %v601, %v602
    %v759 = vsel %vm680, %v600, %v601
    %v760 = vsel %vm680, %v599, %v600
    %v761 = vsel %vm680, %v679, %v599
    %v762 = vrot.slane %v27, 2
    %v763 = vrot.slane %v28, 2
    %v764 = vrot.slane %v29, 2
    %v765 = vrot.slane %v30, 2
    %v766 = vrot.slane %v31, 2
    %v767 = vrot.slane %v32, 2
    %v768 = vrot.slane %v33, 2
    %v769 = vrot.slane %v34, 2
    %v770 = vrot.slane %v35, 2
    %v771 = vrot.slane %v36, 2
    %v772 = vrot.slane %v37, 2
    %v773 = vrot.slane %v38, 2
    %v774 = vrot.slane %v39, 2
    %v775 = vrot.slane %v40, 2
    %v776 = vrot.slane %v41, 2
    %v777 = vrot.slane %v42, 2
    %v778 = vrot.slane %v43, 2
    %v779 = vrot.slane %v44, 2
    %v780 = vrot.slane %v45, 2
    %v781 = vrot.slane %v46, 2
    %v782 = vrot.slane %v47, 2
    %v783 = vrot.slane %v48, 2
    %v784 = vrot.slane %v49, 2
    %v785 = vrot.slane %v50, 2
    %v786 = vrot.slane %v51, 2
    %v787 = vrot.slane %v52, 2
    %v788 = vrot.slane %v53, 2
    %v789 = vrot.slane %v54, 2
    %v790 = vrot.slane %v55, 2
    %v791 = vrot.slane %v56, 2
    %v792 = vrot.slane %v57, 2
    %v793 = vrot.slane %v58, 2
    %v794 = vrot.slane %v59, 2
    %v795 = vrot.slane %v60, 2
    %v796 = vrot.slane %v61, 2
    %v797 = vrot.slane %v62, 2
    %v798 = vrot.slane %v63, 2
    %v799 = vrot.slane %v64, 2
    %v800 = vrot.slane %v65, 2
    %v801 = vrot.slane %v66, 2
    %v802 = vrot.slane %v67, 2
    %v803 = vrot.slane %v68, 2
    %v804 = vrot.slane %v69, 2
    %v805 = vrot.slane %v70, 2
    %v806 = vrot.slane %v71, 2
    %v807 = vrot.slane %v72, 2
    %v808 = vrot.slane %v73, 2
    %v809 = vrot.slane %v74, 2
    %v810 = vrot.slane %v75, 2
    %v811 = vrot.slane %v76, 2
    %v812 = vrot.slane %v77, 2
    %v813 = vrot.slane %v78, 2
    %v814 = vrot.slane %v79, 2
    %v815 = vrot.slane %v80, 2
    %v816 = vrot.slane %v81, 2
    %v817 = vrot.slane %v82, 2
    %v818 = vrot.slane %v83, 2
    %v819 = vrot.slane %v84, 2
    %v820 = vrot.slane %v85, 2
    %v821 = vrot.slane %v86, 2
    %v822 = vrot.slane %v87, 2
    %v823 = vrot.slane %v88, 2
    %v824 = vrot.slane %v89, 2
    %v825 = vrot.slane %v90, 2
    %v826 = vrot.slane %v91, 2
    %v827 = vrot.slane %v92, 2
    %v828 = vrot.slane %v93, 2
    %v829 = vrot.slane %v94, 2
    %v830 = vrot.slane %v95, 2
    %v831 = vrot.slane %v96, 2
    %v832 = vrot.slane %v97, 2
    %v833 = vrot.slane %v98, 2
    %v834 = vrot.slane %v99, 2
    %v835 = vrot.slane %v100, 2
    %v836 = vrot.slane %v101, 2
    %v837 = vrot.slane %v102, 2
    %v838 = vrot.slane %v103, 2
    %v839 = vrot.slane %v104, 2
    %v840 = vrot.slane %v105, 2
    %v841 = vrot.slane %v106, 2
    %v842 = vrot.slane %v107, 2
    %vm843 = vcmp.lt.s32.totalorder %v190, 6
    %v844 = vsel %vm843, %v841, %v842
    %v845 = vsel %vm843, %v840, %v841
    %v846 = vsel %vm843, %v839, %v840
    %v847 = vsel %vm843, %v838, %v839
    %v848 = vsel %vm843, %v837, %v838
    %v849 = vsel %vm843, %v836, %v837
    %v850 = vsel %vm843, %v835, %v836
    %v851 = vsel %vm843, %v834, %v835
    %v852 = vsel %vm843, %v833, %v834
    %v853 = vsel %vm843, %v832, %v833
    %v854 = vsel %vm843, %v831, %v832
    %v855 = vsel %vm843, %v830, %v831
    %v856 = vsel %vm843, %v829, %v830
    %v857 = vsel %vm843, %v828, %v829
    %v858 = vsel %vm843, %v827, %v828
    %v859 = vsel %vm843, %v826, %v827
    %v860 = vsel %vm843, %v825, %v826
    %v861 = vsel %vm843, %v824, %v825
    %v862 = vsel %vm843, %v823, %v824
    %v863 = vsel %vm843, %v822, %v823
    %v864 = vsel %vm843, %v821, %v822
    %v865 = vsel %vm843, %v820, %v821
    %v866 = vsel %vm843, %v819, %v820
    %v867 = vsel %vm843, %v818, %v819
    %v868 = vsel %vm843, %v817, %v818
    %v869 = vsel %vm843, %v816, %v817
    %v870 = vsel %vm843, %v815, %v816
    %v871 = vsel %vm843, %v814, %v815
    %v872 = vsel %vm843, %v813, %v814
    %v873 = vsel %vm843, %v812, %v813
    %v874 = vsel %vm843, %v811, %v812
    %v875 = vsel %vm843, %v810, %v811
    %v876 = vsel %vm843, %v809, %v810
    %v877 = vsel %vm843, %v808, %v809
    %v878 = vsel %vm843, %v807, %v808
    %v879 = vsel %vm843, %v806, %v807
    %v880 = vsel %vm843, %v805, %v806
    %v881 = vsel %vm843, %v804, %v805
    %v882 = vsel %vm843, %v803, %v804
    %v883 = vsel %vm843, %v802, %v803
    %v884 = vsel %vm843, %v801, %v802
    %v885 = vsel %vm843, %v800, %v801
    %v886 = vsel %vm843, %v799, %v800
    %v887 = vsel %vm843, %v798, %v799
    %v888 = vsel %vm843, %v797, %v798
    %v889 = vsel %vm843, %v796, %v797
    %v890 = vsel %vm843, %v795, %v796
    %v891 = vsel %vm843, %v794, %v795
    %v892 = vsel %vm843, %v793, %v794
    %v893 = vsel %vm843, %v792, %v793
    %v894 = vsel %vm843, %v791, %v792
    %v895 = vsel %vm843, %v790, %v791
    %v896 = vsel %vm843, %v789, %v790
    %v897 = vsel %vm843, %v788, %v789
    %v898 = vsel %vm843, %v787, %v788
    %v899 = vsel %vm843, %v786, %v787
    %v900 = vsel %vm843, %v785, %v786
    %v901 = vsel %vm843, %v784, %v785
    %v902 = vsel %vm843, %v783, %v784
    %v903 = vsel %vm843, %v782, %v783
    %v904 = vsel %vm843, %v781, %v782
    %v905 = vsel %vm843, %v780, %v781
    %v906 = vsel %vm843, %v779, %v780
    %v907 = vsel %vm843, %v778, %v779
    %v908 = vsel %vm843, %v777, %v778
    %v909 = vsel %vm843, %v776, %v777
    %v910 = vsel %vm843, %v775, %v776
    %v911 = vsel %vm843, %v774, %v775
    %v912 = vsel %vm843, %v773, %v774
    %v913 = vsel %vm843, %v772, %v773
    %v914 = vsel %vm843, %v771, %v772
    %v915 = vsel %vm843, %v770, %v771
    %v916 = vsel %vm843, %v769, %v770
    %v917 = vsel %vm843, %v768, %v769
    %v918 = vsel %vm843, %v767, %v768
    %v919 = vsel %vm843, %v766, %v767
    %v920 = vsel %vm843, %v765, %v766
    %v921 = vsel %vm843, %v764, %v765
    %v922 = vsel %vm843, %v763, %v764
    %v923 = vsel %vm843, %v762, %v763
    %v924 = vsel %vm843, %v842, %v762
    %v925 = vrot.slane %v27, 3
    %v926 = vrot.slane %v28, 3
    %v927 = vrot.slane %v29, 3
    %v928 = vrot.slane %v30, 3
    %v929 = vrot.slane %v31, 3
    %v930 = vrot.slane %v32, 3
    %v931 = vrot.slane %v33, 3
    %v932 = vrot.slane %v34, 3
    %v933 = vrot.slane %v35, 3
    %v934 = vrot.slane %v36, 3
    %v935 = vrot.slane %v37, 3
    %v936 = vrot.slane %v38, 3
    %v937 = vrot.slane %v39, 3
    %v938 = vrot.slane %v40, 3
    %v939 = vrot.slane %v41, 3
    %v940 = vrot.slane %v42, 3
    %v941 = vrot.slane %v43, 3
    %v942 = vrot.slane %v44, 3
    %v943 = vrot.slane %v45, 3
    %v944 = vrot.slane %v46, 3
    %v945 = vrot.slane %v47, 3
    %v946 = vrot.slane %v48, 3
    %v947 = vrot.slane %v49, 3
    %v948 = vrot.slane %v50, 3
    %v949 = vrot.slane %v51, 3
    %v950 = vrot.slane %v52, 3
    %v951 = vrot.slane %v53, 3
    %v952 = vrot.slane %v54, 3
    %v953 = vrot.slane %v55, 3
    %v954 = vrot.slane %v56, 3
    %v955 = vrot.slane %v57, 3
    %v956 = vrot.slane %v58, 3
    %v957 = vrot.slane %v59, 3
    %v958 = vrot.slane %v60, 3
    %v959 = vrot.slane %v61, 3
    %v960 = vrot.slane %v62, 3
    %v961 = vrot.slane %v63, 3
    %v962 = vrot.slane %v64, 3
    %v963 = vrot.slane %v65, 3
    %v964 = vrot.slane %v66, 3
    %v965 = vrot.slane %v67, 3
    %v966 = vrot.slane %v68, 3
    %v967 = vrot.slane %v69, 3
    %v968 = vrot.slane %v70, 3
    %v969 = vrot.slane %v71, 3
    %v970 = vrot.slane %v72, 3
    %v971 = vrot.slane %v73, 3
    %v972 = vrot.slane %v74, 3
    %v973 = vrot.slane %v75, 3
    %v974 = vrot.slane %v76, 3
    %v975 = vrot.slane %v77, 3
    %v976 = vrot.slane %v78, 3
    %v977 = vrot.slane %v79, 3
    %v978 = vrot.slane %v80, 3
    %v979 = vrot.slane %v81, 3
    %v980 = vrot.slane %v82, 3
    %v981 = vrot.slane %v83, 3
    %v982 = vrot.slane %v84, 3
    %v983 = vrot.slane %v85, 3
    %v984 = vrot.slane %v86, 3
    %v985 = vrot.slane %v87, 3
    %v986 = vrot.slane %v88, 3
    %v987 = vrot.slane %v89, 3
    %v988 = vrot.slane %v90, 3
    %v989 = vrot.slane %v91, 3
    %v990 = vrot.slane %v92, 3
    %v991 = vrot.slane %v93, 3
    %v992 = vrot.slane %v94, 3
    %v993 = vrot.slane %v95, 3
    %v994 = vrot.slane %v96, 3
    %v995 = vrot.slane %v97, 3
    %v996 = vrot.slane %v98, 3
    %v997 = vrot.slane %v99, 3
    %v998 = vrot.slane %v100, 3
    %v999 = vrot.slane %v101, 3
    %v1000 = vrot.slane %v102, 3
    %v1001 = vrot.slane %v103, 3
    %v1002 = vrot.slane %v104, 3
    %v1003 = vrot.slane %v105, 3
    %v1004 = vrot.slane %v106, 3
    %v1005 = vrot.slane %v107, 3
    %vm1006 = vcmp.lt.s32.totalorder %v190, 5
    %v1007 = vsel %vm1006, %v1004, %v1005
    %v1008 = vsel %vm1006, %v1003, %v1004
    %v1009 = vsel %vm1006, %v1002, %v1003
    %v1010 = vsel %vm1006, %v1001, %v1002
    %v1011 = vsel %vm1006, %v1000, %v1001
    %v1012 = vsel %vm1006, %v999, %v1000
    %v1013 = vsel %vm1006, %v998, %v999
    %v1014 = vsel %vm1006, %v997, %v998
    %v1015 = vsel %vm1006, %v996, %v997
    %v1016 = vsel %vm1006, %v995, %v996
    %v1017 = vsel %vm1006, %v994, %v995
    %v1018 = vsel %vm1006, %v993, %v994
    %v1019 = vsel %vm1006, %v992, %v993
    %v1020 = vsel %vm1006, %v991, %v992
    %v1021 = vsel %vm1006, %v990, %v991
    %v1022 = vsel %vm1006, %v989, %v990
    %v1023 = vsel %vm1006, %v988, %v989
    %v1024 = vsel %vm1006, %v987, %v988
    %v1025 = vsel %vm1006, %v986, %v987
    %v1026 = vsel %vm1006, %v985, %v986
    %v1027 = vsel %vm1006, %v984, %v985
    %v1028 = vsel %vm1006, %v983, %v984
    %v1029 = vsel %vm1006, %v982, %v983
    %v1030 = vsel %vm1006, %v981, %v982
    %v1031 = vsel %vm1006, %v980, %v981
    %v1032 = vsel %vm1006, %v979, %v980
    %v1033 = vsel %vm1006, %v978, %v979
    %v1034 = vsel %vm1006, %v977, %v978
    %v1035 = vsel %vm1006, %v976, %v977
    %v1036 = vsel %vm1006, %v975, %v976
    %v1037 = vsel %vm1006, %v974, %v975
    %v1038 = vsel %vm1006, %v973, %v974
    %v1039 = vsel %vm1006, %v972, %v973
    %v1040 = vsel %vm1006, %v971, %v972
    %v1041 = vsel %vm1006, %v970, %v971
    %v1042 = vsel %vm1006, %v969, %v970
    %v1043 = vsel %vm1006, %v968, %v969
    %v1044 = vsel %vm1006, %v967, %v968
    %v1045 = vsel %vm1006, %v966, %v967
    %v1046 = vsel %vm1006, %v965, %v966
    %v1047 = vsel %vm1006, %v964, %v965
    %v1048 = vsel %vm1006, %v963, %v964
    %v1049 = vsel %vm1006, %v962, %v963
    %v1050 = vsel %vm1006, %v961, %v962
    %v1051 = vsel %vm1006, %v960, %v961
    %v1052 = vsel %vm1006, %v959, %v960
    %v1053 = vsel %vm1006, %v958, %v959
    %v1054 = vsel %vm1006, %v957, %v958
    %v1055 = vsel %vm1006, %v956, %v957
    %v1056 = vsel %vm1006, %v955, %v956
    %v1057 = vsel %vm1006, %v954, %v955
    %v1058 = vsel %vm1006, %v953, %v954
    %v1059 = vsel %vm1006, %v952, %v953
    %v1060 = vsel %vm1006, %v951, %v952
    %v1061 = vsel %vm1006, %v950, %v951
    %v1062 = vsel %vm1006, %v949, %v950
    %v1063 = vsel %vm1006, %v948, %v949
    %v1064 = vsel %vm1006, %v947, %v948
    %v1065 = vsel %vm1006, %v946, %v947
    %v1066 = vsel %vm1006, %v945, %v946
    %v1067 = vsel %vm1006, %v944, %v945
    %v1068 = vsel %vm1006, %v943, %v944
    %v1069 = vsel %vm1006, %v942, %v943
    %v1070 = vsel %vm1006, %v941, %v942
    %v1071 = vsel %vm1006, %v940, %v941
    %v1072 = vsel %vm1006, %v939, %v940
    %v1073 = vsel %vm1006, %v938, %v939
    %v1074 = vsel %vm1006, %v937, %v938
    %v1075 = vsel %vm1006, %v936, %v937
    %v1076 = vsel %vm1006, %v935, %v936
    %v1077 = vsel %vm1006, %v934, %v935
    %v1078 = vsel %vm1006, %v933, %v934
    %v1079 = vsel %vm1006, %v932, %v933
    %v1080 = vsel %vm1006, %v931, %v932
    %v1081 = vsel %vm1006, %v930, %v931
    %v1082 = vsel %vm1006, %v929, %v930
    %v1083 = vsel %vm1006, %v928, %v929
    %v1084 = vsel %vm1006, %v927, %v928
    %v1085 = vsel %vm1006, %v926, %v927
    %v1086 = vsel %vm1006, %v925, %v926
    %v1087 = vsel %vm1006, %v1005, %v925
    %1169 = vrot.lane.b32.xlu0 %v356, 4
    %v1170 = vpop.permute.xlu0 %1169
    %1171 = vrot.lane.b32.xlu0 %v355, 4
    %v1172 = vpop.permute.xlu0 %1171
    %1173 = vrot.lane.b32.xlu0 %v435, 4
    %v1174 = vpop.permute.xlu0 %1173
    %1175 = vrot.lane.b32.xlu0 %v434, 4
    %v1176 = vpop.permute.xlu0 %1175
    %1177 = vrot.lane.b32.xlu0 %v433, 4
    %v1178 = vpop.permute.xlu0 %1177
    %1179 = vrot.lane.b32.xlu0 %v432, 4
    %v1180 = vpop.permute.xlu0 %1179
    %1181 = vrot.lane.b32.xlu0 %v431, 4
    %v1182 = vpop.permute.xlu0 %1181
    %1183 = vrot.lane.b32.xlu0 %v430, 4
    %v1184 = vpop.permute.xlu0 %1183
    %1185 = vrot.lane.b32.xlu0 %v429, 4
    %v1186 = vpop.permute.xlu0 %1185
    %1187 = vrot.lane.b32.xlu0 %v428, 4
    %v1188 = vpop.permute.xlu0 %1187
    %1189 = vrot.lane.b32.xlu0 %v427, 4
    %v1190 = vpop.permute.xlu0 %1189
    %1191 = vrot.lane.b32.xlu0 %v426, 4
    %v1192 = vpop.permute.xlu0 %1191
    %1193 = vrot.lane.b32.xlu0 %v425, 4
    %v1194 = vpop.permute.xlu0 %1193
    %1195 = vrot.lane.b32.xlu0 %v424, 4
    %v1196 = vpop.permute.xlu0 %1195
    %1197 = vrot.lane.b32.xlu0 %v423, 4
    %v1198 = vpop.permute.xlu0 %1197
    %1199 = vrot.lane.b32.xlu0 %v422, 4
    %v1200 = vpop.permute.xlu0 %1199
    %1201 = vrot.lane.b32.xlu0 %v421, 4
    %v1202 = vpop.permute.xlu0 %1201
    %1203 = vrot.lane.b32.xlu0 %v420, 4
    %v1204 = vpop.permute.xlu0 %1203
    %1205 = vrot.lane.b32.xlu0 %v419, 4
    %v1206 = vpop.permute.xlu0 %1205
    %1207 = vrot.lane.b32.xlu0 %v418, 4
    %v1208 = vpop.permute.xlu0 %1207
    %1209 = vrot.lane.b32.xlu0 %v417, 4
    %v1210 = vpop.permute.xlu0 %1209
    %1211 = vrot.lane.b32.xlu0 %v416, 4
    %v1212 = vpop.permute.xlu0 %1211
    %1213 = vrot.lane.b32.xlu0 %v415, 4
    %v1214 = vpop.permute.xlu0 %1213
    %1215 = vrot.lane.b32.xlu0 %v414, 4
    %v1216 = vpop.permute.xlu0 %1215
    %1217 = vrot.lane.b32.xlu0 %v413, 4
    %v1218 = vpop.permute.xlu0 %1217
    %1219 = vrot.lane.b32.xlu0 %v412, 4
    %v1220 = vpop.permute.xlu0 %1219
    %1221 = vrot.lane.b32.xlu0 %v411, 4
    %v1222 = vpop.permute.xlu0 %1221
    %1223 = vrot.lane.b32.xlu0 %v410, 4
    %v1224 = vpop.permute.xlu0 %1223
    %1225 = vrot.lane.b32.xlu0 %v409, 4
    %v1226 = vpop.permute.xlu0 %1225
    %1227 = vrot.lane.b32.xlu0 %v408, 4
    %v1228 = vpop.permute.xlu0 %1227
    %1229 = vrot.lane.b32.xlu0 %v407, 4
    %v1230 = vpop.permute.xlu0 %1229
    %1231 = vrot.lane.b32.xlu0 %v406, 4
    %v1232 = vpop.permute.xlu0 %1231
    %1233 = vrot.lane.b32.xlu0 %v405, 4
    %v1234 = vpop.permute.xlu0 %1233
    %1235 = vrot.lane.b32.xlu0 %v404, 4
    %v1236 = vpop.permute.xlu0 %1235
    %1237 = vrot.lane.b32.xlu0 %v403, 4
    %v1238 = vpop.permute.xlu0 %1237
    %1239 = vrot.lane.b32.xlu0 %v402, 4
    %v1240 = vpop.permute.xlu0 %1239
    %1241 = vrot.lane.b32.xlu0 %v401, 4
    %v1242 = vpop.permute.xlu0 %1241
    %1243 = vrot.lane.b32.xlu0 %v400, 4
    %v1244 = vpop.permute.xlu0 %1243
    %1245 = vrot.lane.b32.xlu0 %v399, 4
    %v1246 = vpop.permute.xlu0 %1245
    %1247 = vrot.lane.b32.xlu0 %v398, 4
    %v1248 = vpop.permute.xlu0 %1247
    %1249 = vrot.lane.b32.xlu0 %v397, 4
    %v1250 = vpop.permute.xlu0 %1249
    %1251 = vrot.lane.b32.xlu0 %v396, 4
    %v1252 = vpop.permute.xlu0 %1251
    %1253 = vrot.lane.b32.xlu0 %v395, 4
    %v1254 = vpop.permute.xlu0 %1253
    %1255 = vrot.lane.b32.xlu0 %v394, 4
    %v1256 = vpop.permute.xlu0 %1255
    %1257 = vrot.lane.b32.xlu0 %v393, 4
    %v1258 = vpop.permute.xlu0 %1257
    %1259 = vrot.lane.b32.xlu0 %v392, 4
    %v1260 = vpop.permute.xlu0 %1259
    %1261 = vrot.lane.b32.xlu0 %v391, 4
    %v1262 = vpop.permute.xlu0 %1261
    %1263 = vrot.lane.b32.xlu0 %v390, 4
    %v1264 = vpop.permute.xlu0 %1263
    %1265 = vrot.lane.b32.xlu0 %v389, 4
    %v1266 = vpop.permute.xlu0 %1265
    %1267 = vrot.lane.b32.xlu0 %v388, 4
    %v1268 = vpop.permute.xlu0 %1267
    %1269 = vrot.lane.b32.xlu0 %v387, 4
    %v1270 = vpop.permute.xlu0 %1269
    %1271 = vrot.lane.b32.xlu0 %v386, 4
    %v1272 = vpop.permute.xlu0 %1271
    %1273 = vrot.lane.b32.xlu0 %v385, 4
    %v1274 = vpop.permute.xlu0 %1273
    %1275 = vrot.lane.b32.xlu0 %v384, 4
    %v1276 = vpop.permute.xlu0 %1275
    %1277 = vrot.lane.b32.xlu0 %v383, 4
    %v1278 = vpop.permute.xlu0 %1277
    %1279 = vrot.lane.b32.xlu0 %v382, 4
    %v1280 = vpop.permute.xlu0 %1279
    %1281 = vrot.lane.b32.xlu0 %v381, 4
    %v1282 = vpop.permute.xlu0 %1281
    %1283 = vrot.lane.b32.xlu0 %v380, 4
    %v1284 = vpop.permute.xlu0 %1283
    %1285 = vrot.lane.b32.xlu0 %v379, 4
    %v1286 = vpop.permute.xlu0 %1285
    %1287 = vrot.lane.b32.xlu0 %v378, 4
    %v1288 = vpop.permute.xlu0 %1287
    %1289 = vrot.lane.b32.xlu0 %v377, 4
    %v1290 = vpop.permute.xlu0 %1289
    %1291 = vrot.lane.b32.xlu0 %v376, 4
    %v1292 = vpop.permute.xlu0 %1291
    %1293 = vrot.lane.b32.xlu0 %v375, 4
    %v1294 = vpop.permute.xlu0 %1293
    %1295 = vrot.lane.b32.xlu0 %v374, 4
    %v1296 = vpop.permute.xlu0 %1295
    %1297 = vrot.lane.b32.xlu0 %v373, 4
    %v1298 = vpop.permute.xlu0 %1297
    %1299 = vrot.lane.b32.xlu0 %v372, 4
    %v1300 = vpop.permute.xlu0 %1299
    %1301 = vrot.lane.b32.xlu0 %v371, 4
    %v1302 = vpop.permute.xlu0 %1301
    %1303 = vrot.lane.b32.xlu0 %v370, 4
    %v1304 = vpop.permute.xlu0 %1303
    %1305 = vrot.lane.b32.xlu0 %v369, 4
    %v1306 = vpop.permute.xlu0 %1305
    %1307 = vrot.lane.b32.xlu0 %v368, 4
    %v1308 = vpop.permute.xlu0 %1307
    %1309 = vrot.lane.b32.xlu0 %v367, 4
    %v1310 = vpop.permute.xlu0 %1309
    %1311 = vrot.lane.b32.xlu0 %v366, 4
    %v1312 = vpop.permute.xlu0 %1311
    %1313 = vrot.lane.b32.xlu0 %v365, 4
    %v1314 = vpop.permute.xlu0 %1313
    %1315 = vrot.lane.b32.xlu0 %v364, 4
    %v1316 = vpop.permute.xlu0 %1315
    %1317 = vrot.lane.b32.xlu0 %v363, 4
    %v1318 = vpop.permute.xlu0 %1317
    %1319 = vrot.lane.b32.xlu0 %v362, 4
    %v1320 = vpop.permute.xlu0 %1319
    %1321 = vrot.lane.b32.xlu0 %v361, 4
    %v1322 = vpop.permute.xlu0 %1321
    %1323 = vrot.lane.b32.xlu0 %v360, 4
    %v1324 = vpop.permute.xlu0 %1323
    %1325 = vrot.lane.b32.xlu0 %v359, 4
    %v1326 = vpop.permute.xlu0 %1325
    %1327 = vrot.lane.b32.xlu0 %v358, 4
    %v1328 = vpop.permute.xlu0 %1327
    %1329 = vrot.lane.b32.xlu0 %v357, 4
    %v1330 = vpop.permute.xlu0 %1329
    %1493 = vrot.lane.b32.xlu0 %v519, 8
    %v1494 = vpop.permute.xlu0 %1493
    %1495 = vrot.lane.b32.xlu0 %v518, 8
    %v1496 = vpop.permute.xlu0 %1495
    %1497 = vrot.lane.b32.xlu0 %v598, 8
    %v1498 = vpop.permute.xlu0 %1497
    %1499 = vrot.lane.b32.xlu0 %v597, 8
    %v1500 = vpop.permute.xlu0 %1499
    %1501 = vrot.lane.b32.xlu0 %v596, 8
    %v1502 = vpop.permute.xlu0 %1501
    %1503 = vrot.lane.b32.xlu0 %v595, 8
    %v1504 = vpop.permute.xlu0 %1503
    %1505 = vrot.lane.b32.xlu0 %v594, 8
    %v1506 = vpop.permute.xlu0 %1505
    %1507 = vrot.lane.b32.xlu0 %v593, 8
    %v1508 = vpop.permute.xlu0 %1507
    %1509 = vrot.lane.b32.xlu0 %v592, 8
    %v1510 = vpop.permute.xlu0 %1509
    %1511 = vrot.lane.b32.xlu0 %v591, 8
    %v1512 = vpop.permute.xlu0 %1511
    %1513 = vrot.lane.b32.xlu0 %v590, 8
    %v1514 = vpop.permute.xlu0 %1513
    %1515 = vrot.lane.b32.xlu0 %v589, 8
    %v1516 = vpop.permute.xlu0 %1515
    %1517 = vrot.lane.b32.xlu0 %v588, 8
    %v1518 = vpop.permute.xlu0 %1517
    %1519 = vrot.lane.b32.xlu0 %v587, 8
    %v1520 = vpop.permute.xlu0 %1519
    %1521 = vrot.lane.b32.xlu0 %v586, 8
    %v1522 = vpop.permute.xlu0 %1521
    %1523 = vrot.lane.b32.xlu0 %v585, 8
    %v1524 = vpop.permute.xlu0 %1523
    %1525 = vrot.lane.b32.xlu0 %v584, 8
    %v1526 = vpop.permute.xlu0 %1525
    %1527 = vrot.lane.b32.xlu0 %v583, 8
    %v1528 = vpop.permute.xlu0 %1527
    %1529 = vrot.lane.b32.xlu0 %v582, 8
    %v1530 = vpop.permute.xlu0 %1529
    %1531 = vrot.lane.b32.xlu0 %v581, 8
    %v1532 = vpop.permute.xlu0 %1531
    %1533 = vrot.lane.b32.xlu0 %v580, 8
    %v1534 = vpop.permute.xlu0 %1533
    %1535 = vrot.lane.b32.xlu0 %v579, 8
    %v1536 = vpop.permute.xlu0 %1535
    %1537 = vrot.lane.b32.xlu0 %v578, 8
    %v1538 = vpop.permute.xlu0 %1537
    %1539 = vrot.lane.b32.xlu0 %v577, 8
    %v1540 = vpop.permute.xlu0 %1539
    %1541 = vrot.lane.b32.xlu0 %v576, 8
    %v1542 = vpop.permute.xlu0 %1541
    %1543 = vrot.lane.b32.xlu0 %v575, 8
    %v1544 = vpop.permute.xlu0 %1543
    %1545 = vrot.lane.b32.xlu0 %v574, 8
    %v1546 = vpop.permute.xlu0 %1545
    %1547 = vrot.lane.b32.xlu0 %v573, 8
    %v1548 = vpop.permute.xlu0 %1547
    %1549 = vrot.lane.b32.xlu0 %v572, 8
    %v1550 = vpop.permute.xlu0 %1549
    %1551 = vrot.lane.b32.xlu0 %v571, 8
    %v1552 = vpop.permute.xlu0 %1551
    %1553 = vrot.lane.b32.xlu0 %v570, 8
    %v1554 = vpop.permute.xlu0 %1553
    %1555 = vrot.lane.b32.xlu0 %v569, 8
    %v1556 = vpop.permute.xlu0 %1555
    %1557 = vrot.lane.b32.xlu0 %v568, 8
    %v1558 = vpop.permute.xlu0 %1557
    %1559 = vrot.lane.b32.xlu0 %v567, 8
    %v1560 = vpop.permute.xlu0 %1559
    %1561 = vrot.lane.b32.xlu0 %v566, 8
    %v1562 = vpop.permute.xlu0 %1561
    %1563 = vrot.lane.b32.xlu0 %v565, 8
    %v1564 = vpop.permute.xlu0 %1563
    %1565 = vrot.lane.b32.xlu0 %v564, 8
    %v1566 = vpop.permute.xlu0 %1565
    %1567 = vrot.lane.b32.xlu0 %v563, 8
    %v1568 = vpop.permute.xlu0 %1567
    %1569 = vrot.lane.b32.xlu0 %v562, 8
    %v1570 = vpop.permute.xlu0 %1569
    %1571 = vrot.lane.b32.xlu0 %v561, 8
    %v1572 = vpop.permute.xlu0 %1571
    %1573 = vrot.lane.b32.xlu0 %v560, 8
    %v1574 = vpop.permute.xlu0 %1573
    %1575 = vrot.lane.b32.xlu0 %v559, 8
    %v1576 = vpop.permute.xlu0 %1575
    %1577 = vrot.lane.b32.xlu0 %v558, 8
    %v1578 = vpop.permute.xlu0 %1577
    %1579 = vrot.lane.b32.xlu0 %v557, 8
    %v1580 = vpop.permute.xlu0 %1579
    %1581 = vrot.lane.b32.xlu0 %v556, 8
    %v1582 = vpop.permute.xlu0 %1581
    %1583 = vrot.lane.b32.xlu0 %v555, 8
    %v1584 = vpop.permute.xlu0 %1583
    %1585 = vrot.lane.b32.xlu0 %v554, 8
    %v1586 = vpop.permute.xlu0 %1585
    %1587 = vrot.lane.b32.xlu0 %v553, 8
    %v1588 = vpop.permute.xlu0 %1587
    %1589 = vrot.lane.b32.xlu0 %v552, 8
    %v1590 = vpop.permute.xlu0 %1589
    %1591 = vrot.lane.b32.xlu0 %v551, 8
    %v1592 = vpop.permute.xlu0 %1591
    %1593 = vrot.lane.b32.xlu0 %v550, 8
    %v1594 = vpop.permute.xlu0 %1593
    %1595 = vrot.lane.b32.xlu0 %v549, 8
    %v1596 = vpop.permute.xlu0 %1595
    %1597 = vrot.lane.b32.xlu0 %v548, 8
    %v1598 = vpop.permute.xlu0 %1597
    %1599 = vrot.lane.b32.xlu0 %v547, 8
    %v1600 = vpop.permute.xlu0 %1599
    %1601 = vrot.lane.b32.xlu0 %v546, 8
    %v1602 = vpop.permute.xlu0 %1601
    %1603 = vrot.lane.b32.xlu0 %v545, 8
    %v1604 = vpop.permute.xlu0 %1603
    %1605 = vrot.lane.b32.xlu0 %v544, 8
    %v1606 = vpop.permute.xlu0 %1605
    %1607 = vrot.lane.b32.xlu0 %v543, 8
    %v1608 = vpop.permute.xlu0 %1607
    %1609 = vrot.lane.b32.xlu0 %v542, 8
    %v1610 = vpop.permute.xlu0 %1609
    %1611 = vrot.lane.b32.xlu0 %v541, 8
    %v1612 = vpop.permute.xlu0 %1611
    %1613 = vrot.lane.b32.xlu0 %v540, 8
    %v1614 = vpop.permute.xlu0 %1613
    %1615 = vrot.lane.b32.xlu0 %v539, 8
    %v1616 = vpop.permute.xlu0 %1615
    %1617 = vrot.lane.b32.xlu0 %v538, 8
    %v1618 = vpop.permute.xlu0 %1617
    %1619 = vrot.lane.b32.xlu0 %v537, 8
    %v1620 = vpop.permute.xlu0 %1619
    %1621 = vrot.lane.b32.xlu0 %v536, 8
    %v1622 = vpop.permute.xlu0 %1621
    %1623 = vrot.lane.b32.xlu0 %v535, 8
    %v1624 = vpop.permute.xlu0 %1623
    %1625 = vrot.lane.b32.xlu0 %v534, 8
    %v1626 = vpop.permute.xlu0 %1625
    %1627 = vrot.lane.b32.xlu0 %v533, 8
    %v1628 = vpop.permute.xlu0 %1627
    %1629 = vrot.lane.b32.xlu0 %v532, 8
    %v1630 = vpop.permute.xlu0 %1629
    %1631 = vrot.lane.b32.xlu0 %v531, 8
    %v1632 = vpop.permute.xlu0 %1631
    %1633 = vrot.lane.b32.xlu0 %v530, 8
    %v1634 = vpop.permute.xlu0 %1633
    %1635 = vrot.lane.b32.xlu0 %v529, 8
    %v1636 = vpop.permute.xlu0 %1635
    %1637 = vrot.lane.b32.xlu0 %v528, 8
    %v1638 = vpop.permute.xlu0 %1637
    %1639 = vrot.lane.b32.xlu0 %v527, 8
    %v1640 = vpop.permute.xlu0 %1639
    %1641 = vrot.lane.b32.xlu0 %v526, 8
    %v1642 = vpop.permute.xlu0 %1641
    %1643 = vrot.lane.b32.xlu0 %v525, 8
    %v1644 = vpop.permute.xlu0 %1643
    %1645 = vrot.lane.b32.xlu0 %v524, 8
    %v1646 = vpop.permute.xlu0 %1645
    %1647 = vrot.lane.b32.xlu0 %v523, 8
    %v1648 = vpop.permute.xlu0 %1647
    %1649 = vrot.lane.b32.xlu0 %v522, 8
    %v1650 = vpop.permute.xlu0 %1649
    %1651 = vrot.lane.b32.xlu0 %v521, 8
    %v1652 = vpop.permute.xlu0 %1651
    %1653 = vrot.lane.b32.xlu0 %v520, 8
    %v1654 = vpop.permute.xlu0 %1653
    %1736 = vrot.lane.b32.xlu0 %v598, 12
    %v1737 = vpop.permute.xlu0 %1736
    %1738 = vrot.lane.b32.xlu0 %v597, 12
    %v1739 = vpop.permute.xlu0 %1738
    %1740 = vrot.lane.b32.xlu0 %v596, 12
    %v1741 = vpop.permute.xlu0 %1740
    %1742 = vrot.lane.b32.xlu0 %v595, 12
    %v1743 = vpop.permute.xlu0 %1742
    %1744 = vrot.lane.b32.xlu0 %v594, 12
    %v1745 = vpop.permute.xlu0 %1744
    %1746 = vrot.lane.b32.xlu0 %v593, 12
    %v1747 = vpop.permute.xlu0 %1746
    %1748 = vrot.lane.b32.xlu0 %v592, 12
    %v1749 = vpop.permute.xlu0 %1748
    %1750 = vrot.lane.b32.xlu0 %v591, 12
    %v1751 = vpop.permute.xlu0 %1750
    %1752 = vrot.lane.b32.xlu0 %v590, 12
    %v1753 = vpop.permute.xlu0 %1752
    %1754 = vrot.lane.b32.xlu0 %v589, 12
    %v1755 = vpop.permute.xlu0 %1754
    %1756 = vrot.lane.b32.xlu0 %v588, 12
    %v1757 = vpop.permute.xlu0 %1756
    %1758 = vrot.lane.b32.xlu0 %v587, 12
    %v1759 = vpop.permute.xlu0 %1758
    %1760 = vrot.lane.b32.xlu0 %v586, 12
    %v1761 = vpop.permute.xlu0 %1760
    %1762 = vrot.lane.b32.xlu0 %v585, 12
    %v1763 = vpop.permute.xlu0 %1762
    %1764 = vrot.lane.b32.xlu0 %v584, 12
    %v1765 = vpop.permute.xlu0 %1764
    %1766 = vrot.lane.b32.xlu0 %v583, 12
    %v1767 = vpop.permute.xlu0 %1766
    %1768 = vrot.lane.b32.xlu0 %v582, 12
    %v1769 = vpop.permute.xlu0 %1768
    %1770 = vrot.lane.b32.xlu0 %v581, 12
    %v1771 = vpop.permute.xlu0 %1770
    %1772 = vrot.lane.b32.xlu0 %v580, 12
    %v1773 = vpop.permute.xlu0 %1772
    %1774 = vrot.lane.b32.xlu0 %v579, 12
    %v1775 = vpop.permute.xlu0 %1774
    %1776 = vrot.lane.b32.xlu0 %v578, 12
    %v1777 = vpop.permute.xlu0 %1776
    %1778 = vrot.lane.b32.xlu0 %v577, 12
    %v1779 = vpop.permute.xlu0 %1778
    %1780 = vrot.lane.b32.xlu0 %v576, 12
    %v1781 = vpop.permute.xlu0 %1780
    %1782 = vrot.lane.b32.xlu0 %v575, 12
    %v1783 = vpop.permute.xlu0 %1782
    %1784 = vrot.lane.b32.xlu0 %v574, 12
    %v1785 = vpop.permute.xlu0 %1784
    %1786 = vrot.lane.b32.xlu0 %v573, 12
    %v1787 = vpop.permute.xlu0 %1786
    %1788 = vrot.lane.b32.xlu0 %v572, 12
    %v1789 = vpop.permute.xlu0 %1788
    %1790 = vrot.lane.b32.xlu0 %v571, 12
    %v1791 = vpop.permute.xlu0 %1790
    %1792 = vrot.lane.b32.xlu0 %v570, 12
    %v1793 = vpop.permute.xlu0 %1792
    %1794 = vrot.lane.b32.xlu0 %v569, 12
    %v1795 = vpop.permute.xlu0 %1794
    %1796 = vrot.lane.b32.xlu0 %v568, 12
    %v1797 = vpop.permute.xlu0 %1796
    %1798 = vrot.lane.b32.xlu0 %v567, 12
    %v1799 = vpop.permute.xlu0 %1798
    %1800 = vrot.lane.b32.xlu0 %v566, 12
    %v1801 = vpop.permute.xlu0 %1800
    %1802 = vrot.lane.b32.xlu0 %v565, 12
    %v1803 = vpop.permute.xlu0 %1802
    %1804 = vrot.lane.b32.xlu0 %v564, 12
    %v1805 = vpop.permute.xlu0 %1804
    %1806 = vrot.lane.b32.xlu0 %v563, 12
    %v1807 = vpop.permute.xlu0 %1806
    %1808 = vrot.lane.b32.xlu0 %v562, 12
    %v1809 = vpop.permute.xlu0 %1808
    %1810 = vrot.lane.b32.xlu0 %v561, 12
    %v1811 = vpop.permute.xlu0 %1810
    %1812 = vrot.lane.b32.xlu0 %v560, 12
    %v1813 = vpop.permute.xlu0 %1812
    %1814 = vrot.lane.b32.xlu0 %v559, 12
    %v1815 = vpop.permute.xlu0 %1814
    %1816 = vrot.lane.b32.xlu0 %v558, 12
    %v1817 = vpop.permute.xlu0 %1816
    %1818 = vrot.lane.b32.xlu0 %v557, 12
    %v1819 = vpop.permute.xlu0 %1818
    %1820 = vrot.lane.b32.xlu0 %v556, 12
    %v1821 = vpop.permute.xlu0 %1820
    %1822 = vrot.lane.b32.xlu0 %v555, 12
    %v1823 = vpop.permute.xlu0 %1822
    %1824 = vrot.lane.b32.xlu0 %v554, 12
    %v1825 = vpop.permute.xlu0 %1824
    %1826 = vrot.lane.b32.xlu0 %v553, 12
    %v1827 = vpop.permute.xlu0 %1826
    %1828 = vrot.lane.b32.xlu0 %v552, 12
    %v1829 = vpop.permute.xlu0 %1828
    %1830 = vrot.lane.b32.xlu0 %v551, 12
    %v1831 = vpop.permute.xlu0 %1830
    %1832 = vrot.lane.b32.xlu0 %v550, 12
    %v1833 = vpop.permute.xlu0 %1832
    %1834 = vrot.lane.b32.xlu0 %v549, 12
    %v1835 = vpop.permute.xlu0 %1834
    %1836 = vrot.lane.b32.xlu0 %v548, 12
    %v1837 = vpop.permute.xlu0 %1836
    %1838 = vrot.lane.b32.xlu0 %v547, 12
    %v1839 = vpop.permute.xlu0 %1838
    %1840 = vrot.lane.b32.xlu0 %v546, 12
    %v1841 = vpop.permute.xlu0 %1840
    %1842 = vrot.lane.b32.xlu0 %v545, 12
    %v1843 = vpop.permute.xlu0 %1842
    %1844 = vrot.lane.b32.xlu0 %v544, 12
    %v1845 = vpop.permute.xlu0 %1844
    %1846 = vrot.lane.b32.xlu0 %v543, 12
    %v1847 = vpop.permute.xlu0 %1846
    %1848 = vrot.lane.b32.xlu0 %v542, 12
    %v1849 = vpop.permute.xlu0 %1848
    %1850 = vrot.lane.b32.xlu0 %v541, 12
    %v1851 = vpop.permute.xlu0 %1850
    %1852 = vrot.lane.b32.xlu0 %v540, 12
    %v1853 = vpop.permute.xlu0 %1852
    %1854 = vrot.lane.b32.xlu0 %v539, 12
    %v1855 = vpop.permute.xlu0 %1854
    %1856 = vrot.lane.b32.xlu0 %v538, 12
    %v1857 = vpop.permute.xlu0 %1856
    %1858 = vrot.lane.b32.xlu0 %v537, 12
    %v1859 = vpop.permute.xlu0 %1858
    %1860 = vrot.lane.b32.xlu0 %v536, 12
    %v1861 = vpop.permute.xlu0 %1860
    %1862 = vrot.lane.b32.xlu0 %v535, 12
    %v1863 = vpop.permute.xlu0 %1862
    %1864 = vrot.lane.b32.xlu0 %v534, 12
    %v1865 = vpop.permute.xlu0 %1864
    %1866 = vrot.lane.b32.xlu0 %v533, 12
    %v1867 = vpop.permute.xlu0 %1866
    %1868 = vrot.lane.b32.xlu0 %v532, 12
    %v1869 = vpop.permute.xlu0 %1868
    %1870 = vrot.lane.b32.xlu0 %v531, 12
    %v1871 = vpop.permute.xlu0 %1870
    %1872 = vrot.lane.b32.xlu0 %v530, 12
    %v1873 = vpop.permute.xlu0 %1872
    %1874 = vrot.lane.b32.xlu0 %v529, 12
    %v1875 = vpop.permute.xlu0 %1874
    %1876 = vrot.lane.b32.xlu0 %v528, 12
    %v1877 = vpop.permute.xlu0 %1876
    %1878 = vrot.lane.b32.xlu0 %v527, 12
    %v1879 = vpop.permute.xlu0 %1878
    %1880 = vrot.lane.b32.xlu0 %v526, 12
    %v1881 = vpop.permute.xlu0 %1880
    %1882 = vrot.lane.b32.xlu0 %v525, 12
    %v1883 = vpop.permute.xlu0 %1882
    %1884 = vrot.lane.b32.xlu0 %v524, 12
    %v1885 = vpop.permute.xlu0 %1884
    %1886 = vrot.lane.b32.xlu0 %v523, 12
    %v1887 = vpop.permute.xlu0 %1886
    %1888 = vrot.lane.b32.xlu0 %v522, 12
    %v1889 = vpop.permute.xlu0 %1888
    %1890 = vrot.lane.b32.xlu0 %v521, 12
    %v1891 = vpop.permute.xlu0 %1890
    %1892 = vrot.lane.b32.xlu0 %v520, 12
    %v1893 = vpop.permute.xlu0 %1892
    %1894 = vrot.lane.b32.xlu0 %v519, 12
    %v1895 = vpop.permute.xlu0 %1894
    %1896 = vrot.lane.b32.xlu0 %v518, 12
    %v1897 = vpop.permute.xlu0 %1896
    %2060 = vrot.lane.b32.xlu0 %v27, 16
    %v2061 = vpop.permute.xlu0 %2060
    %2062 = vrot.lane.b32.xlu0 %v28, 16
    %v2063 = vpop.permute.xlu0 %2062
    %2064 = vrot.lane.b32.xlu0 %v29, 16
    %v2065 = vpop.permute.xlu0 %2064
    %2066 = vrot.lane.b32.xlu0 %v30, 16
    %v2067 = vpop.permute.xlu0 %2066
    %2068 = vrot.lane.b32.xlu0 %v31, 16
    %v2069 = vpop.permute.xlu0 %2068
    %2070 = vrot.lane.b32.xlu0 %v32, 16
    %v2071 = vpop.permute.xlu0 %2070
    %2072 = vrot.lane.b32.xlu0 %v33, 16
    %v2073 = vpop.permute.xlu0 %2072
    %2074 = vrot.lane.b32.xlu0 %v34, 16
    %v2075 = vpop.permute.xlu0 %2074
    %2076 = vrot.lane.b32.xlu0 %v35, 16
    %v2077 = vpop.permute.xlu0 %2076
    %2078 = vrot.lane.b32.xlu0 %v36, 16
    %v2079 = vpop.permute.xlu0 %2078
    %2080 = vrot.lane.b32.xlu0 %v37, 16
    %v2081 = vpop.permute.xlu0 %2080
    %2082 = vrot.lane.b32.xlu0 %v38, 16
    %v2083 = vpop.permute.xlu0 %2082
    %2084 = vrot.lane.b32.xlu0 %v39, 16
    %v2085 = vpop.permute.xlu0 %2084
    %2086 = vrot.lane.b32.xlu0 %v40, 16
    %v2087 = vpop.permute.xlu0 %2086
    %2088 = vrot.lane.b32.xlu0 %v41, 16
    %v2089 = vpop.permute.xlu0 %2088
    %2090 = vrot.lane.b32.xlu0 %v42, 16
    %v2091 = vpop.permute.xlu0 %2090
    %2092 = vrot.lane.b32.xlu0 %v43, 16
    %v2093 = vpop.permute.xlu0 %2092
    %2094 = vrot.lane.b32.xlu0 %v44, 16
    %v2095 = vpop.permute.xlu0 %2094
    %2096 = vrot.lane.b32.xlu0 %v45, 16
    %v2097 = vpop.permute.xlu0 %2096
    %2098 = vrot.lane.b32.xlu0 %v46, 16
    %v2099 = vpop.permute.xlu0 %2098
    %2100 = vrot.lane.b32.xlu0 %v47, 16
    %v2101 = vpop.permute.xlu0 %2100
    %2102 = vrot.lane.b32.xlu0 %v48, 16
    %v2103 = vpop.permute.xlu0 %2102
    %2104 = vrot.lane.b32.xlu0 %v49, 16
    %v2105 = vpop.permute.xlu0 %2104
    %2106 = vrot.lane.b32.xlu0 %v50, 16
    %v2107 = vpop.permute.xlu0 %2106
    %2108 = vrot.lane.b32.xlu0 %v51, 16
    %v2109 = vpop.permute.xlu0 %2108
    %2110 = vrot.lane.b32.xlu0 %v52, 16
    %v2111 = vpop.permute.xlu0 %2110
    %2112 = vrot.lane.b32.xlu0 %v53, 16
    %v2113 = vpop.permute.xlu0 %2112
    %2114 = vrot.lane.b32.xlu0 %v54, 16
    %v2115 = vpop.permute.xlu0 %2114
    %2116 = vrot.lane.b32.xlu0 %v55, 16
    %v2117 = vpop.permute.xlu0 %2116
    %2118 = vrot.lane.b32.xlu0 %v56, 16
    %v2119 = vpop.permute.xlu0 %2118
    %2120 = vrot.lane.b32.xlu0 %v57, 16
    %v2121 = vpop.permute.xlu0 %2120
    %2122 = vrot.lane.b32.xlu0 %v58, 16
    %v2123 = vpop.permute.xlu0 %2122
    %2124 = vrot.lane.b32.xlu0 %v59, 16
    %v2125 = vpop.permute.xlu0 %2124
    %2126 = vrot.lane.b32.xlu0 %v60, 16
    %v2127 = vpop.permute.xlu0 %2126
    %2128 = vrot.lane.b32.xlu0 %v61, 16
    %v2129 = vpop.permute.xlu0 %2128
    %2130 = vrot.lane.b32.xlu0 %v62, 16
    %v2131 = vpop.permute.xlu0 %2130
    %2132 = vrot.lane.b32.xlu0 %v63, 16
    %v2133 = vpop.permute.xlu0 %2132
    %2134 = vrot.lane.b32.xlu0 %v64, 16
    %v2135 = vpop.permute.xlu0 %2134
    %2136 = vrot.lane.b32.xlu0 %v65, 16
    %v2137 = vpop.permute.xlu0 %2136
    %2138 = vrot.lane.b32.xlu0 %v66, 16
    %v2139 = vpop.permute.xlu0 %2138
    %2140 = vrot.lane.b32.xlu0 %v67, 16
    %v2141 = vpop.permute.xlu0 %2140
    %2142 = vrot.lane.b32.xlu0 %v68, 16
    %v2143 = vpop.permute.xlu0 %2142
    %2144 = vrot.lane.b32.xlu0 %v69, 16
    %v2145 = vpop.permute.xlu0 %2144
    %2146 = vrot.lane.b32.xlu0 %v70, 16
    %v2147 = vpop.permute.xlu0 %2146
    %2148 = vrot.lane.b32.xlu0 %v71, 16
    %v2149 = vpop.permute.xlu0 %2148
    %2150 = vrot.lane.b32.xlu0 %v72, 16
    %v2151 = vpop.permute.xlu0 %2150
    %2152 = vrot.lane.b32.xlu0 %v73, 16
    %v2153 = vpop.permute.xlu0 %2152
    %2154 = vrot.lane.b32.xlu0 %v74, 16
    %v2155 = vpop.permute.xlu0 %2154
    %2156 = vrot.lane.b32.xlu0 %v75, 16
    %v2157 = vpop.permute.xlu0 %2156
    %2158 = vrot.lane.b32.xlu0 %v76, 16
    %v2159 = vpop.permute.xlu0 %2158
    %2160 = vrot.lane.b32.xlu0 %v77, 16
    %v2161 = vpop.permute.xlu0 %2160
    %2162 = vrot.lane.b32.xlu0 %v78, 16
    %v2163 = vpop.permute.xlu0 %2162
    %2164 = vrot.lane.b32.xlu0 %v79, 16
    %v2165 = vpop.permute.xlu0 %2164
    %2166 = vrot.lane.b32.xlu0 %v80, 16
    %v2167 = vpop.permute.xlu0 %2166
    %2168 = vrot.lane.b32.xlu0 %v81, 16
    %v2169 = vpop.permute.xlu0 %2168
    %2170 = vrot.lane.b32.xlu0 %v82, 16
    %v2171 = vpop.permute.xlu0 %2170
    %2172 = vrot.lane.b32.xlu0 %v83, 16
    %v2173 = vpop.permute.xlu0 %2172
    %2174 = vrot.lane.b32.xlu0 %v84, 16
    %v2175 = vpop.permute.xlu0 %2174
    %2176 = vrot.lane.b32.xlu0 %v85, 16
    %v2177 = vpop.permute.xlu0 %2176
    %2178 = vrot.lane.b32.xlu0 %v86, 16
    %v2179 = vpop.permute.xlu0 %2178
    %2180 = vrot.lane.b32.xlu0 %v87, 16
    %v2181 = vpop.permute.xlu0 %2180
    %2182 = vrot.lane.b32.xlu0 %v88, 16
    %v2183 = vpop.permute.xlu0 %2182
    %2184 = vrot.lane.b32.xlu0 %v89, 16
    %v2185 = vpop.permute.xlu0 %2184
    %2186 = vrot.lane.b32.xlu0 %v90, 16
    %v2187 = vpop.permute.xlu0 %2186
    %2188 = vrot.lane.b32.xlu0 %v91, 16
    %v2189 = vpop.permute.xlu0 %2188
    %2190 = vrot.lane.b32.xlu0 %v92, 16
    %v2191 = vpop.permute.xlu0 %2190
    %2192 = vrot.lane.b32.xlu0 %v93, 16
    %v2193 = vpop.permute.xlu0 %2192
    %2194 = vrot.lane.b32.xlu0 %v94, 16
    %v2195 = vpop.permute.xlu0 %2194
    %2196 = vrot.lane.b32.xlu0 %v95, 16
    %v2197 = vpop.permute.xlu0 %2196
    %2198 = vrot.lane.b32.xlu0 %v96, 16
    %v2199 = vpop.permute.xlu0 %2198
    %2200 = vrot.lane.b32.xlu0 %v97, 16
    %v2201 = vpop.permute.xlu0 %2200
    %2202 = vrot.lane.b32.xlu0 %v98, 16
    %v2203 = vpop.permute.xlu0 %2202
    %2204 = vrot.lane.b32.xlu0 %v99, 16
    %v2205 = vpop.permute.xlu0 %2204
    %2206 = vrot.lane.b32.xlu0 %v100, 16
    %v2207 = vpop.permute.xlu0 %2206
    %2208 = vrot.lane.b32.xlu0 %v101, 16
    %v2209 = vpop.permute.xlu0 %2208
    %2210 = vrot.lane.b32.xlu0 %v102, 16
    %v2211 = vpop.permute.xlu0 %2210
    %2212 = vrot.lane.b32.xlu0 %v103, 16
    %v2213 = vpop.permute.xlu0 %2212
    %2214 = vrot.lane.b32.xlu0 %v104, 16
    %v2215 = vpop.permute.xlu0 %2214
    %2216 = vrot.lane.b32.xlu0 %v105, 16
    %v2217 = vpop.permute.xlu0 %2216
    %2218 = vrot.lane.b32.xlu0 %v106, 16
    %v2219 = vpop.permute.xlu0 %2218
    %2220 = vrot.lane.b32.xlu0 %v107, 16
    %v2221 = vpop.permute.xlu0 %2220
    %2384 = vrot.lane.b32.xlu0 %v760, 20
    %v2385 = vpop.permute.xlu0 %2384
    %2386 = vrot.lane.b32.xlu0 %v759, 20
    %v2387 = vpop.permute.xlu0 %2386
    %2388 = vrot.lane.b32.xlu0 %v758, 20
    %v2389 = vpop.permute.xlu0 %2388
    %2390 = vrot.lane.b32.xlu0 %v757, 20
    %v2391 = vpop.permute.xlu0 %2390
    %2392 = vrot.lane.b32.xlu0 %v756, 20
    %v2393 = vpop.permute.xlu0 %2392
    %2394 = vrot.lane.b32.xlu0 %v755, 20
    %v2395 = vpop.permute.xlu0 %2394
    %2396 = vrot.lane.b32.xlu0 %v754, 20
    %v2397 = vpop.permute.xlu0 %2396
    %2398 = vrot.lane.b32.xlu0 %v753, 20
    %v2399 = vpop.permute.xlu0 %2398
    %2400 = vrot.lane.b32.xlu0 %v752, 20
    %v2401 = vpop.permute.xlu0 %2400
    %2402 = vrot.lane.b32.xlu0 %v751, 20
    %v2403 = vpop.permute.xlu0 %2402
    %2404 = vrot.lane.b32.xlu0 %v750, 20
    %v2405 = vpop.permute.xlu0 %2404
    %2406 = vrot.lane.b32.xlu0 %v749, 20
    %v2407 = vpop.permute.xlu0 %2406
    %2408 = vrot.lane.b32.xlu0 %v748, 20
    %v2409 = vpop.permute.xlu0 %2408
    %2410 = vrot.lane.b32.xlu0 %v747, 20
    %v2411 = vpop.permute.xlu0 %2410
    %2412 = vrot.lane.b32.xlu0 %v746, 20
    %v2413 = vpop.permute.xlu0 %2412
    %2414 = vrot.lane.b32.xlu0 %v745, 20
    %v2415 = vpop.permute.xlu0 %2414
    %2416 = vrot.lane.b32.xlu0 %v744, 20
    %v2417 = vpop.permute.xlu0 %2416
    %2418 = vrot.lane.b32.xlu0 %v743, 20
    %v2419 = vpop.permute.xlu0 %2418
    %2420 = vrot.lane.b32.xlu0 %v742, 20
    %v2421 = vpop.permute.xlu0 %2420
    %2422 = vrot.lane.b32.xlu0 %v741, 20
    %v2423 = vpop.permute.xlu0 %2422
    %2424 = vrot.lane.b32.xlu0 %v740, 20
    %v2425 = vpop.permute.xlu0 %2424
    %2426 = vrot.lane.b32.xlu0 %v739, 20
    %v2427 = vpop.permute.xlu0 %2426
    %2428 = vrot.lane.b32.xlu0 %v738, 20
    %v2429 = vpop.permute.xlu0 %2428
    %2430 = vrot.lane.b32.xlu0 %v737, 20
    %v2431 = vpop.permute.xlu0 %2430
    %2432 = vrot.lane.b32.xlu0 %v736, 20
    %v2433 = vpop.permute.xlu0 %2432
    %2434 = vrot.lane.b32.xlu0 %v735, 20
    %v2435 = vpop.permute.xlu0 %2434
    %2436 = vrot.lane.b32.xlu0 %v734, 20
    %v2437 = vpop.permute.xlu0 %2436
    %2438 = vrot.lane.b32.xlu0 %v733, 20
    %v2439 = vpop.permute.xlu0 %2438
    %2440 = vrot.lane.b32.xlu0 %v732, 20
    %v2441 = vpop.permute.xlu0 %2440
    %2442 = vrot.lane.b32.xlu0 %v731, 20
    %v2443 = vpop.permute.xlu0 %2442
    %2444 = vrot.lane.b32.xlu0 %v730, 20
    %v2445 = vpop.permute.xlu0 %2444
    %2446 = vrot.lane.b32.xlu0 %v729, 20
    %v2447 = vpop.permute.xlu0 %2446
    %2448 = vrot.lane.b32.xlu0 %v728, 20
    %v2449 = vpop.permute.xlu0 %2448
    %2450 = vrot.lane.b32.xlu0 %v727, 20
    %v2451 = vpop.permute.xlu0 %2450
    %2452 = vrot.lane.b32.xlu0 %v726, 20
    %v2453 = vpop.permute.xlu0 %2452
    %2454 = vrot.lane.b32.xlu0 %v725, 20
    %v2455 = vpop.permute.xlu0 %2454
    %2456 = vrot.lane.b32.xlu0 %v724, 20
    %v2457 = vpop.permute.xlu0 %2456
    %2458 = vrot.lane.b32.xlu0 %v723, 20
    %v2459 = vpop.permute.xlu0 %2458
    %2460 = vrot.lane.b32.xlu0 %v722, 20
    %v2461 = vpop.permute.xlu0 %2460
    %2462 = vrot.lane.b32.xlu0 %v721, 20
    %v2463 = vpop.permute.xlu0 %2462
    %2464 = vrot.lane.b32.xlu0 %v720, 20
    %v2465 = vpop.permute.xlu0 %2464
    %2466 = vrot.lane.b32.xlu0 %v719, 20
    %v2467 = vpop.permute.xlu0 %2466
    %2468 = vrot.lane.b32.xlu0 %v718, 20
    %v2469 = vpop.permute.xlu0 %2468
    %2470 = vrot.lane.b32.xlu0 %v717, 20
    %v2471 = vpop.permute.xlu0 %2470
    %2472 = vrot.lane.b32.xlu0 %v716, 20
    %v2473 = vpop.permute.xlu0 %2472
    %2474 = vrot.lane.b32.xlu0 %v715, 20
    %v2475 = vpop.permute.xlu0 %2474
    %2476 = vrot.lane.b32.xlu0 %v714, 20
    %v2477 = vpop.permute.xlu0 %2476
    %2478 = vrot.lane.b32.xlu0 %v713, 20
    %v2479 = vpop.permute.xlu0 %2478
    %2480 = vrot.lane.b32.xlu0 %v712, 20
    %v2481 = vpop.permute.xlu0 %2480
    %2482 = vrot.lane.b32.xlu0 %v711, 20
    %v2483 = vpop.permute.xlu0 %2482
    %2484 = vrot.lane.b32.xlu0 %v710, 20
    %v2485 = vpop.permute.xlu0 %2484
    %2486 = vrot.lane.b32.xlu0 %v709, 20
    %v2487 = vpop.permute.xlu0 %2486
    %2488 = vrot.lane.b32.xlu0 %v708, 20
    %v2489 = vpop.permute.xlu0 %2488
    %2490 = vrot.lane.b32.xlu0 %v707, 20
    %v2491 = vpop.permute.xlu0 %2490
    %2492 = vrot.lane.b32.xlu0 %v706, 20
    %v2493 = vpop.permute.xlu0 %2492
    %2494 = vrot.lane.b32.xlu0 %v705, 20
    %v2495 = vpop.permute.xlu0 %2494
    %2496 = vrot.lane.b32.xlu0 %v704, 20
    %v2497 = vpop.permute.xlu0 %2496
    %2498 = vrot.lane.b32.xlu0 %v703, 20
    %v2499 = vpop.permute.xlu0 %2498
    %2500 = vrot.lane.b32.xlu0 %v702, 20
    %v2501 = vpop.permute.xlu0 %2500
    %2502 = vrot.lane.b32.xlu0 %v701, 20
    %v2503 = vpop.permute.xlu0 %2502
    %2504 = vrot.lane.b32.xlu0 %v700, 20
    %v2505 = vpop.permute.xlu0 %2504
    %2506 = vrot.lane.b32.xlu0 %v699, 20
    %v2507 = vpop.permute.xlu0 %2506
    %2508 = vrot.lane.b32.xlu0 %v698, 20
    %v2509 = vpop.permute.xlu0 %2508
    %2510 = vrot.lane.b32.xlu0 %v697, 20
    %v2511 = vpop.permute.xlu0 %2510
    %2512 = vrot.lane.b32.xlu0 %v696, 20
    %v2513 = vpop.permute.xlu0 %2512
    %2514 = vrot.lane.b32.xlu0 %v695, 20
    %v2515 = vpop.permute.xlu0 %2514
    %2516 = vrot.lane.b32.xlu0 %v694, 20
    %v2517 = vpop.permute.xlu0 %2516
    %2518 = vrot.lane.b32.xlu0 %v693, 20
    %v2519 = vpop.permute.xlu0 %2518
    %2520 = vrot.lane.b32.xlu0 %v692, 20
    %v2521 = vpop.permute.xlu0 %2520
    %2522 = vrot.lane.b32.xlu0 %v691, 20
    %v2523 = vpop.permute.xlu0 %2522
    %2524 = vrot.lane.b32.xlu0 %v690, 20
    %v2525 = vpop.permute.xlu0 %2524
    %2526 = vrot.lane.b32.xlu0 %v689, 20
    %v2527 = vpop.permute.xlu0 %2526
    %2528 = vrot.lane.b32.xlu0 %v688, 20
    %v2529 = vpop.permute.xlu0 %2528
    %2530 = vrot.lane.b32.xlu0 %v687, 20
    %v2531 = vpop.permute.xlu0 %2530
    %2532 = vrot.lane.b32.xlu0 %v686, 20
    %v2533 = vpop.permute.xlu0 %2532
    %2534 = vrot.lane.b32.xlu0 %v685, 20
    %v2535 = vpop.permute.xlu0 %2534
    %2536 = vrot.lane.b32.xlu0 %v684, 20
    %v2537 = vpop.permute.xlu0 %2536
    %2538 = vrot.lane.b32.xlu0 %v683, 20
    %v2539 = vpop.permute.xlu0 %2538
    %2540 = vrot.lane.b32.xlu0 %v682, 20
    %v2541 = vpop.permute.xlu0 %2540
    %2542 = vrot.lane.b32.xlu0 %v681, 20
    %v2543 = vpop.permute.xlu0 %2542
    %2544 = vrot.lane.b32.xlu0 %v761, 20
    %v2545 = vpop.permute.xlu0 %2544
    %2627 = vrot.lane.b32.xlu0 %v758, 24
    %v2628 = vpop.permute.xlu0 %2627
    %2629 = vrot.lane.b32.xlu0 %v757, 24
    %v2630 = vpop.permute.xlu0 %2629
    %2631 = vrot.lane.b32.xlu0 %v756, 24
    %v2632 = vpop.permute.xlu0 %2631
    %2633 = vrot.lane.b32.xlu0 %v755, 24
    %v2634 = vpop.permute.xlu0 %2633
    %2635 = vrot.lane.b32.xlu0 %v754, 24
    %v2636 = vpop.permute.xlu0 %2635
    %2637 = vrot.lane.b32.xlu0 %v753, 24
    %v2638 = vpop.permute.xlu0 %2637
    %2639 = vrot.lane.b32.xlu0 %v752, 24
    %v2640 = vpop.permute.xlu0 %2639
    %2641 = vrot.lane.b32.xlu0 %v751, 24
    %v2642 = vpop.permute.xlu0 %2641
    %2643 = vrot.lane.b32.xlu0 %v750, 24
    %v2644 = vpop.permute.xlu0 %2643
    %2645 = vrot.lane.b32.xlu0 %v749, 24
    %v2646 = vpop.permute.xlu0 %2645
    %2647 = vrot.lane.b32.xlu0 %v748, 24
    %v2648 = vpop.permute.xlu0 %2647
    %2649 = vrot.lane.b32.xlu0 %v747, 24
    %v2650 = vpop.permute.xlu0 %2649
    %2651 = vrot.lane.b32.xlu0 %v746, 24
    %v2652 = vpop.permute.xlu0 %2651
    %2653 = vrot.lane.b32.xlu0 %v745, 24
    %v2654 = vpop.permute.xlu0 %2653
    %2655 = vrot.lane.b32.xlu0 %v744, 24
    %v2656 = vpop.permute.xlu0 %2655
    %2657 = vrot.lane.b32.xlu0 %v743, 24
    %v2658 = vpop.permute.xlu0 %2657
    %2659 = vrot.lane.b32.xlu0 %v742, 24
    %v2660 = vpop.permute.xlu0 %2659
    %2661 = vrot.lane.b32.xlu0 %v741, 24
    %v2662 = vpop.permute.xlu0 %2661
    %2663 = vrot.lane.b32.xlu0 %v740, 24
    %v2664 = vpop.permute.xlu0 %2663
    %2665 = vrot.lane.b32.xlu0 %v739, 24
    %v2666 = vpop.permute.xlu0 %2665
    %2667 = vrot.lane.b32.xlu0 %v738, 24
    %v2668 = vpop.permute.xlu0 %2667
    %2669 = vrot.lane.b32.xlu0 %v737, 24
    %v2670 = vpop.permute.xlu0 %2669
    %2671 = vrot.lane.b32.xlu0 %v736, 24
    %v2672 = vpop.permute.xlu0 %2671
    %2673 = vrot.lane.b32.xlu0 %v735, 24
    %v2674 = vpop.permute.xlu0 %2673
    %2675 = vrot.lane.b32.xlu0 %v734, 24
    %v2676 = vpop.permute.xlu0 %2675
    %2677 = vrot.lane.b32.xlu0 %v733, 24
    %v2678 = vpop.permute.xlu0 %2677
    %2679 = vrot.lane.b32.xlu0 %v732, 24
    %v2680 = vpop.permute.xlu0 %2679
    %2681 = vrot.lane.b32.xlu0 %v731, 24
    %v2682 = vpop.permute.xlu0 %2681
    %2683 = vrot.lane.b32.xlu0 %v730, 24
    %v2684 = vpop.permute.xlu0 %2683
    %2685 = vrot.lane.b32.xlu0 %v729, 24
    %v2686 = vpop.permute.xlu0 %2685
    %2687 = vrot.lane.b32.xlu0 %v728, 24
    %v2688 = vpop.permute.xlu0 %2687
    %2689 = vrot.lane.b32.xlu0 %v727, 24
    %v2690 = vpop.permute.xlu0 %2689
    %2691 = vrot.lane.b32.xlu0 %v726, 24
    %v2692 = vpop.permute.xlu0 %2691
    %2693 = vrot.lane.b32.xlu0 %v725, 24
    %v2694 = vpop.permute.xlu0 %2693
    %2695 = vrot.lane.b32.xlu0 %v724, 24
    %v2696 = vpop.permute.xlu0 %2695
    %2697 = vrot.lane.b32.xlu0 %v723, 24
    %v2698 = vpop.permute.xlu0 %2697
    %2699 = vrot.lane.b32.xlu0 %v722, 24
    %v2700 = vpop.permute.xlu0 %2699
    %2701 = vrot.lane.b32.xlu0 %v721, 24
    %v2702 = vpop.permute.xlu0 %2701
    %2703 = vrot.lane.b32.xlu0 %v720, 24
    %v2704 = vpop.permute.xlu0 %2703
    %2705 = vrot.lane.b32.xlu0 %v719, 24
    %v2706 = vpop.permute.xlu0 %2705
    %2707 = vrot.lane.b32.xlu0 %v718, 24
    %v2708 = vpop.permute.xlu0 %2707
    %2709 = vrot.lane.b32.xlu0 %v717, 24
    %v2710 = vpop.permute.xlu0 %2709
    %2711 = vrot.lane.b32.xlu0 %v716, 24
    %v2712 = vpop.permute.xlu0 %2711
    %2713 = vrot.lane.b32.xlu0 %v715, 24
    %v2714 = vpop.permute.xlu0 %2713
    %2715 = vrot.lane.b32.xlu0 %v714, 24
    %v2716 = vpop.permute.xlu0 %2715
    %2717 = vrot.lane.b32.xlu0 %v713, 24
    %v2718 = vpop.permute.xlu0 %2717
    %2719 = vrot.lane.b32.xlu0 %v712, 24
    %v2720 = vpop.permute.xlu0 %2719
    %2721 = vrot.lane.b32.xlu0 %v711, 24
    %v2722 = vpop.permute.xlu0 %2721
    %2723 = vrot.lane.b32.xlu0 %v710, 24
    %v2724 = vpop.permute.xlu0 %2723
    %2725 = vrot.lane.b32.xlu0 %v709, 24
    %v2726 = vpop.permute.xlu0 %2725
    %2727 = vrot.lane.b32.xlu0 %v708, 24
    %v2728 = vpop.permute.xlu0 %2727
    %2729 = vrot.lane.b32.xlu0 %v707, 24
    %v2730 = vpop.permute.xlu0 %2729
    %2731 = vrot.lane.b32.xlu0 %v706, 24
    %v2732 = vpop.permute.xlu0 %2731
    %2733 = vrot.lane.b32.xlu0 %v705, 24
    %v2734 = vpop.permute.xlu0 %2733
    %2735 = vrot.lane.b32.xlu0 %v704, 24
    %v2736 = vpop.permute.xlu0 %2735
    %2737 = vrot.lane.b32.xlu0 %v703, 24
    %v2738 = vpop.permute.xlu0 %2737
    %2739 = vrot.lane.b32.xlu0 %v702, 24
    %v2740 = vpop.permute.xlu0 %2739
    %2741 = vrot.lane.b32.xlu0 %v701, 24
    %v2742 = vpop.permute.xlu0 %2741
    %2743 = vrot.lane.b32.xlu0 %v700, 24
    %v2744 = vpop.permute.xlu0 %2743
    %2745 = vrot.lane.b32.xlu0 %v699, 24
    %v2746 = vpop.permute.xlu0 %2745
    %2747 = vrot.lane.b32.xlu0 %v698, 24
    %v2748 = vpop.permute.xlu0 %2747
    %2749 = vrot.lane.b32.xlu0 %v697, 24
    %v2750 = vpop.permute.xlu0 %2749
    %2751 = vrot.lane.b32.xlu0 %v696, 24
    %v2752 = vpop.permute.xlu0 %2751
    %2753 = vrot.lane.b32.xlu0 %v695, 24
    %v2754 = vpop.permute.xlu0 %2753
    %2755 = vrot.lane.b32.xlu0 %v694, 24
    %v2756 = vpop.permute.xlu0 %2755
    %2757 = vrot.lane.b32.xlu0 %v693, 24
    %v2758 = vpop.permute.xlu0 %2757
    %2759 = vrot.lane.b32.xlu0 %v692, 24
    %v2760 = vpop.permute.xlu0 %2759
    %2761 = vrot.lane.b32.xlu0 %v691, 24
    %v2762 = vpop.permute.xlu0 %2761
    %2763 = vrot.lane.b32.xlu0 %v690, 24
    %v2764 = vpop.permute.xlu0 %2763
    %2765 = vrot.lane.b32.xlu0 %v689, 24
    %v2766 = vpop.permute.xlu0 %2765
    %2767 = vrot.lane.b32.xlu0 %v688, 24
    %v2768 = vpop.permute.xlu0 %2767
    %2769 = vrot.lane.b32.xlu0 %v687, 24
    %v2770 = vpop.permute.xlu0 %2769
    %2771 = vrot.lane.b32.xlu0 %v686, 24
    %v2772 = vpop.permute.xlu0 %2771
    %2773 = vrot.lane.b32.xlu0 %v685, 24
    %v2774 = vpop.permute.xlu0 %2773
    %2775 = vrot.lane.b32.xlu0 %v684, 24
    %v2776 = vpop.permute.xlu0 %2775
    %2777 = vrot.lane.b32.xlu0 %v683, 24
    %v2778 = vpop.permute.xlu0 %2777
    %2779 = vrot.lane.b32.xlu0 %v682, 24
    %v2780 = vpop.permute.xlu0 %2779
    %2781 = vrot.lane.b32.xlu0 %v681, 24
    %v2782 = vpop.permute.xlu0 %2781
    %2783 = vrot.lane.b32.xlu0 %v761, 24
    %v2784 = vpop.permute.xlu0 %2783
    %2785 = vrot.lane.b32.xlu0 %v760, 24
    %v2786 = vpop.permute.xlu0 %2785
    %2787 = vrot.lane.b32.xlu0 %v759, 24
    %v2788 = vpop.permute.xlu0 %2787
    %2951 = vrot.lane.b32.xlu0 %v921, 28
    %v2952 = vpop.permute.xlu0 %2951
    %2953 = vrot.lane.b32.xlu0 %v920, 28
    %v2954 = vpop.permute.xlu0 %2953
    %2955 = vrot.lane.b32.xlu0 %v919, 28
    %v2956 = vpop.permute.xlu0 %2955
    %2957 = vrot.lane.b32.xlu0 %v918, 28
    %v2958 = vpop.permute.xlu0 %2957
    %2959 = vrot.lane.b32.xlu0 %v917, 28
    %v2960 = vpop.permute.xlu0 %2959
    %2961 = vrot.lane.b32.xlu0 %v916, 28
    %v2962 = vpop.permute.xlu0 %2961
    %2963 = vrot.lane.b32.xlu0 %v915, 28
    %v2964 = vpop.permute.xlu0 %2963
    %2965 = vrot.lane.b32.xlu0 %v914, 28
    %v2966 = vpop.permute.xlu0 %2965
    %2967 = vrot.lane.b32.xlu0 %v913, 28
    %v2968 = vpop.permute.xlu0 %2967
    %2969 = vrot.lane.b32.xlu0 %v912, 28
    %v2970 = vpop.permute.xlu0 %2969
    %2971 = vrot.lane.b32.xlu0 %v911, 28
    %v2972 = vpop.permute.xlu0 %2971
    %2973 = vrot.lane.b32.xlu0 %v910, 28
    %v2974 = vpop.permute.xlu0 %2973
    %2975 = vrot.lane.b32.xlu0 %v909, 28
    %v2976 = vpop.permute.xlu0 %2975
    %2977 = vrot.lane.b32.xlu0 %v908, 28
    %v2978 = vpop.permute.xlu0 %2977
    %2979 = vrot.lane.b32.xlu0 %v907, 28
    %v2980 = vpop.permute.xlu0 %2979
    %2981 = vrot.lane.b32.xlu0 %v906, 28
    %v2982 = vpop.permute.xlu0 %2981
    %2983 = vrot.lane.b32.xlu0 %v905, 28
    %v2984 = vpop.permute.xlu0 %2983
    %2985 = vrot.lane.b32.xlu0 %v904, 28
    %v2986 = vpop.permute.xlu0 %2985
    %2987 = vrot.lane.b32.xlu0 %v903, 28
    %v2988 = vpop.permute.xlu0 %2987
    %2989 = vrot.lane.b32.xlu0 %v902, 28
    %v2990 = vpop.permute.xlu0 %2989
    %2991 = vrot.lane.b32.xlu0 %v901, 28
    %v2992 = vpop.permute.xlu0 %2991
    %2993 = vrot.lane.b32.xlu0 %v900, 28
    %v2994 = vpop.permute.xlu0 %2993
    %2995 = vrot.lane.b32.xlu0 %v899, 28
    %v2996 = vpop.permute.xlu0 %2995
    %2997 = vrot.lane.b32.xlu0 %v898, 28
    %v2998 = vpop.permute.xlu0 %2997
    %2999 = vrot.lane.b32.xlu0 %v897, 28
    %v3000 = vpop.permute.xlu0 %2999
    %3001 = vrot.lane.b32.xlu0 %v896, 28
    %v3002 = vpop.permute.xlu0 %3001
    %3003 = vrot.lane.b32.xlu0 %v895, 28
    %v3004 = vpop.permute.xlu0 %3003
    %3005 = vrot.lane.b32.xlu0 %v894, 28
    %v3006 = vpop.permute.xlu0 %3005
    %3007 = vrot.lane.b32.xlu0 %v893, 28
    %v3008 = vpop.permute.xlu0 %3007
    %3009 = vrot.lane.b32.xlu0 %v892, 28
    %v3010 = vpop.permute.xlu0 %3009
    %3011 = vrot.lane.b32.xlu0 %v891, 28
    %v3012 = vpop.permute.xlu0 %3011
    %3013 = vrot.lane.b32.xlu0 %v890, 28
    %v3014 = vpop.permute.xlu0 %3013
    %3015 = vrot.lane.b32.xlu0 %v889, 28
    %v3016 = vpop.permute.xlu0 %3015
    %3017 = vrot.lane.b32.xlu0 %v888, 28
    %v3018 = vpop.permute.xlu0 %3017
    %3019 = vrot.lane.b32.xlu0 %v887, 28
    %v3020 = vpop.permute.xlu0 %3019
    %3021 = vrot.lane.b32.xlu0 %v886, 28
    %v3022 = vpop.permute.xlu0 %3021
    %3023 = vrot.lane.b32.xlu0 %v885, 28
    %v3024 = vpop.permute.xlu0 %3023
    %3025 = vrot.lane.b32.xlu0 %v884, 28
    %v3026 = vpop.permute.xlu0 %3025
    %3027 = vrot.lane.b32.xlu0 %v883, 28
    %v3028 = vpop.permute.xlu0 %3027
    %3029 = vrot.lane.b32.xlu0 %v882, 28
    %v3030 = vpop.permute.xlu0 %3029
    %3031 = vrot.lane.b32.xlu0 %v881, 28
    %v3032 = vpop.permute.xlu0 %3031
    %3033 = vrot.lane.b32.xlu0 %v880, 28
    %v3034 = vpop.permute.xlu0 %3033
    %3035 = vrot.lane.b32.xlu0 %v879, 28
    %v3036 = vpop.permute.xlu0 %3035
    %3037 = vrot.lane.b32.xlu0 %v878, 28
    %v3038 = vpop.permute.xlu0 %3037
    %3039 = vrot.lane.b32.xlu0 %v877, 28
    %v3040 = vpop.permute.xlu0 %3039
    %3041 = vrot.lane.b32.xlu0 %v876, 28
    %v3042 = vpop.permute.xlu0 %3041
    %3043 = vrot.lane.b32.xlu0 %v875, 28
    %v3044 = vpop.permute.xlu0 %3043
    %3045 = vrot.lane.b32.xlu0 %v874, 28
    %v3046 = vpop.permute.xlu0 %3045
    %3047 = vrot.lane.b32.xlu0 %v873, 28
    %v3048 = vpop.permute.xlu0 %3047
    %3049 = vrot.lane.b32.xlu0 %v872, 28
    %v3050 = vpop.permute.xlu0 %3049
    %3051 = vrot.lane.b32.xlu0 %v871, 28
    %v3052 = vpop.permute.xlu0 %3051
    %3053 = vrot.lane.b32.xlu0 %v870, 28
    %v3054 = vpop.permute.xlu0 %3053
    %3055 = vrot.lane.b32.xlu0 %v869, 28
    %v3056 = vpop.permute.xlu0 %3055
    %3057 = vrot.lane.b32.xlu0 %v868, 28
    %v3058 = vpop.permute.xlu0 %3057
    %3059 = vrot.lane.b32.xlu0 %v867, 28
    %v3060 = vpop.permute.xlu0 %3059
    %3061 = vrot.lane.b32.xlu0 %v866, 28
    %v3062 = vpop.permute.xlu0 %3061
    %3063 = vrot.lane.b32.xlu0 %v865, 28
    %v3064 = vpop.permute.xlu0 %3063
    %3065 = vrot.lane.b32.xlu0 %v864, 28
    %v3066 = vpop.permute.xlu0 %3065
    %3067 = vrot.lane.b32.xlu0 %v863, 28
    %v3068 = vpop.permute.xlu0 %3067
    %3069 = vrot.lane.b32.xlu0 %v862, 28
    %v3070 = vpop.permute.xlu0 %3069
    %3071 = vrot.lane.b32.xlu0 %v861, 28
    %v3072 = vpop.permute.xlu0 %3071
    %3073 = vrot.lane.b32.xlu0 %v860, 28
    %v3074 = vpop.permute.xlu0 %3073
    %3075 = vrot.lane.b32.xlu0 %v859, 28
    %v3076 = vpop.permute.xlu0 %3075
    %3077 = vrot.lane.b32.xlu0 %v858, 28
    %v3078 = vpop.permute.xlu0 %3077
    %3079 = vrot.lane.b32.xlu0 %v857, 28
    %v3080 = vpop.permute.xlu0 %3079
    %3081 = vrot.lane.b32.xlu0 %v856, 28
    %v3082 = vpop.permute.xlu0 %3081
    %3083 = vrot.lane.b32.xlu0 %v855, 28
    %v3084 = vpop.permute.xlu0 %3083
    %3085 = vrot.lane.b32.xlu0 %v854, 28
    %v3086 = vpop.permute.xlu0 %3085
    %3087 = vrot.lane.b32.xlu0 %v853, 28
    %v3088 = vpop.permute.xlu0 %3087
    %3089 = vrot.lane.b32.xlu0 %v852, 28
    %v3090 = vpop.permute.xlu0 %3089
    %3091 = vrot.lane.b32.xlu0 %v851, 28
    %v3092 = vpop.permute.xlu0 %3091
    %3093 = vrot.lane.b32.xlu0 %v850, 28
    %v3094 = vpop.permute.xlu0 %3093
    %3095 = vrot.lane.b32.xlu0 %v849, 28
    %v3096 = vpop.permute.xlu0 %3095
    %3097 = vrot.lane.b32.xlu0 %v848, 28
    %v3098 = vpop.permute.xlu0 %3097
    %3099 = vrot.lane.b32.xlu0 %v847, 28
    %v3100 = vpop.permute.xlu0 %3099
    %3101 = vrot.lane.b32.xlu0 %v846, 28
    %v3102 = vpop.permute.xlu0 %3101
    %3103 = vrot.lane.b32.xlu0 %v845, 28
    %v3104 = vpop.permute.xlu0 %3103
    %3105 = vrot.lane.b32.xlu0 %v844, 28
    %v3106 = vpop.permute.xlu0 %3105
    %3107 = vrot.lane.b32.xlu0 %v924, 28
    %v3108 = vpop.permute.xlu0 %3107
    %3109 = vrot.lane.b32.xlu0 %v923, 28
    %v3110 = vpop.permute.xlu0 %3109
    %3111 = vrot.lane.b32.xlu0 %v922, 28
    %v3112 = vpop.permute.xlu0 %3111
    %3275 = vrot.lane.b32.xlu0 %v1084, 32
    %v3276 = vpop.permute.xlu0 %3275
    %3277 = vrot.lane.b32.xlu0 %v1083, 32
    %v3278 = vpop.permute.xlu0 %3277
    %3279 = vrot.lane.b32.xlu0 %v1082, 32
    %v3280 = vpop.permute.xlu0 %3279
    %3281 = vrot.lane.b32.xlu0 %v1081, 32
    %v3282 = vpop.permute.xlu0 %3281
    %3283 = vrot.lane.b32.xlu0 %v1080, 32
    %v3284 = vpop.permute.xlu0 %3283
    %3285 = vrot.lane.b32.xlu0 %v1079, 32
    %v3286 = vpop.permute.xlu0 %3285
    %3287 = vrot.lane.b32.xlu0 %v1078, 32
    %v3288 = vpop.permute.xlu0 %3287
    %3289 = vrot.lane.b32.xlu0 %v1077, 32
    %v3290 = vpop.permute.xlu0 %3289
    %3291 = vrot.lane.b32.xlu0 %v1076, 32
    %v3292 = vpop.permute.xlu0 %3291
    %3293 = vrot.lane.b32.xlu0 %v1075, 32
    %v3294 = vpop.permute.xlu0 %3293
    %3295 = vrot.lane.b32.xlu0 %v1074, 32
    %v3296 = vpop.permute.xlu0 %3295
    %3297 = vrot.lane.b32.xlu0 %v1073, 32
    %v3298 = vpop.permute.xlu0 %3297
    %3299 = vrot.lane.b32.xlu0 %v1072, 32
    %v3300 = vpop.permute.xlu0 %3299
    %3301 = vrot.lane.b32.xlu0 %v1071, 32
    %v3302 = vpop.permute.xlu0 %3301
    %3303 = vrot.lane.b32.xlu0 %v1070, 32
    %v3304 = vpop.permute.xlu0 %3303
    %3305 = vrot.lane.b32.xlu0 %v1069, 32
    %v3306 = vpop.permute.xlu0 %3305
    %3307 = vrot.lane.b32.xlu0 %v1068, 32
    %v3308 = vpop.permute.xlu0 %3307
    %3309 = vrot.lane.b32.xlu0 %v1067, 32
    %v3310 = vpop.permute.xlu0 %3309
    %3311 = vrot.lane.b32.xlu0 %v1066, 32
    %v3312 = vpop.permute.xlu0 %3311
    %3313 = vrot.lane.b32.xlu0 %v1065, 32
    %v3314 = vpop.permute.xlu0 %3313
    %3315 = vrot.lane.b32.xlu0 %v1064, 32
    %v3316 = vpop.permute.xlu0 %3315
    %3317 = vrot.lane.b32.xlu0 %v1063, 32
    %v3318 = vpop.permute.xlu0 %3317
    %3319 = vrot.lane.b32.xlu0 %v1062, 32
    %v3320 = vpop.permute.xlu0 %3319
    %3321 = vrot.lane.b32.xlu0 %v1061, 32
    %v3322 = vpop.permute.xlu0 %3321
    %3323 = vrot.lane.b32.xlu0 %v1060, 32
    %v3324 = vpop.permute.xlu0 %3323
    %3325 = vrot.lane.b32.xlu0 %v1059, 32
    %v3326 = vpop.permute.xlu0 %3325
    %3327 = vrot.lane.b32.xlu0 %v1058, 32
    %v3328 = vpop.permute.xlu0 %3327
    %3329 = vrot.lane.b32.xlu0 %v1057, 32
    %v3330 = vpop.permute.xlu0 %3329
    %3331 = vrot.lane.b32.xlu0 %v1056, 32
    %v3332 = vpop.permute.xlu0 %3331
    %3333 = vrot.lane.b32.xlu0 %v1055, 32
    %v3334 = vpop.permute.xlu0 %3333
    %3335 = vrot.lane.b32.xlu0 %v1054, 32
    %v3336 = vpop.permute.xlu0 %3335
    %3337 = vrot.lane.b32.xlu0 %v1053, 32
    %v3338 = vpop.permute.xlu0 %3337
    %3339 = vrot.lane.b32.xlu0 %v1052, 32
    %v3340 = vpop.permute.xlu0 %3339
    %3341 = vrot.lane.b32.xlu0 %v1051, 32
    %v3342 = vpop.permute.xlu0 %3341
    %3343 = vrot.lane.b32.xlu0 %v1050, 32
    %v3344 = vpop.permute.xlu0 %3343
    %3345 = vrot.lane.b32.xlu0 %v1049, 32
    %v3346 = vpop.permute.xlu0 %3345
    %3347 = vrot.lane.b32.xlu0 %v1048, 32
    %v3348 = vpop.permute.xlu0 %3347
    %3349 = vrot.lane.b32.xlu0 %v1047, 32
    %v3350 = vpop.permute.xlu0 %3349
    %3351 = vrot.lane.b32.xlu0 %v1046, 32
    %v3352 = vpop.permute.xlu0 %3351
    %3353 = vrot.lane.b32.xlu0 %v1045, 32
    %v3354 = vpop.permute.xlu0 %3353
    %3355 = vrot.lane.b32.xlu0 %v1044, 32
    %v3356 = vpop.permute.xlu0 %3355
    %3357 = vrot.lane.b32.xlu0 %v1043, 32
    %v3358 = vpop.permute.xlu0 %3357
    %3359 = vrot.lane.b32.xlu0 %v1042, 32
    %v3360 = vpop.permute.xlu0 %3359
    %3361 = vrot.lane.b32.xlu0 %v1041, 32
    %v3362 = vpop.permute.xlu0 %3361
    %3363 = vrot.lane.b32.xlu0 %v1040, 32
    %v3364 = vpop.permute.xlu0 %3363
    %3365 = vrot.lane.b32.xlu0 %v1039, 32
    %v3366 = vpop.permute.xlu0 %3365
    %3367 = vrot.lane.b32.xlu0 %v1038, 32
    %v3368 = vpop.permute.xlu0 %3367
    %3369 = vrot.lane.b32.xlu0 %v1037, 32
    %v3370 = vpop.permute.xlu0 %3369
    %3371 = vrot.lane.b32.xlu0 %v1036, 32
    %v3372 = vpop.permute.xlu0 %3371
    %3373 = vrot.lane.b32.xlu0 %v1035, 32
    %v3374 = vpop.permute.xlu0 %3373
    %3375 = vrot.lane.b32.xlu0 %v1034, 32
    %v3376 = vpop.permute.xlu0 %3375
    %3377 = vrot.lane.b32.xlu0 %v1033, 32
    %v3378 = vpop.permute.xlu0 %3377
    %3379 = vrot.lane.b32.xlu0 %v1032, 32
    %v3380 = vpop.permute.xlu0 %3379
    %3381 = vrot.lane.b32.xlu0 %v1031, 32
    %v3382 = vpop.permute.xlu0 %3381
    %3383 = vrot.lane.b32.xlu0 %v1030, 32
    %v3384 = vpop.permute.xlu0 %3383
    %3385 = vrot.lane.b32.xlu0 %v1029, 32
    %v3386 = vpop.permute.xlu0 %3385
    %3387 = vrot.lane.b32.xlu0 %v1028, 32
    %v3388 = vpop.permute.xlu0 %3387
    %3389 = vrot.lane.b32.xlu0 %v1027, 32
    %v3390 = vpop.permute.xlu0 %3389
    %3391 = vrot.lane.b32.xlu0 %v1026, 32
    %v3392 = vpop.permute.xlu0 %3391
    %3393 = vrot.lane.b32.xlu0 %v1025, 32
    %v3394 = vpop.permute.xlu0 %3393
    %3395 = vrot.lane.b32.xlu0 %v1024, 32
    %v3396 = vpop.permute.xlu0 %3395
    %3397 = vrot.lane.b32.xlu0 %v1023, 32
    %v3398 = vpop.permute.xlu0 %3397
    %3399 = vrot.lane.b32.xlu0 %v1022, 32
    %v3400 = vpop.permute.xlu0 %3399
    %3401 = vrot.lane.b32.xlu0 %v1021, 32
    %v3402 = vpop.permute.xlu0 %3401
    %3403 = vrot.lane.b32.xlu0 %v1020, 32
    %v3404 = vpop.permute.xlu0 %3403
    %3405 = vrot.lane.b32.xlu0 %v1019, 32
    %v3406 = vpop.permute.xlu0 %3405
    %3407 = vrot.lane.b32.xlu0 %v1018, 32
    %v3408 = vpop.permute.xlu0 %3407
    %3409 = vrot.lane.b32.xlu0 %v1017, 32
    %v3410 = vpop.permute.xlu0 %3409
    %3411 = vrot.lane.b32.xlu0 %v1016, 32
    %v3412 = vpop.permute.xlu0 %3411
    %3413 = vrot.lane.b32.xlu0 %v1015, 32
    %v3414 = vpop.permute.xlu0 %3413
    %3415 = vrot.lane.b32.xlu0 %v1014, 32
    %v3416 = vpop.permute.xlu0 %3415
    %3417 = vrot.lane.b32.xlu0 %v1013, 32
    %v3418 = vpop.permute.xlu0 %3417
    %3419 = vrot.lane.b32.xlu0 %v1012, 32
    %v3420 = vpop.permute.xlu0 %3419
    %3421 = vrot.lane.b32.xlu0 %v1011, 32
    %v3422 = vpop.permute.xlu0 %3421
    %3423 = vrot.lane.b32.xlu0 %v1010, 32
    %v3424 = vpop.permute.xlu0 %3423
    %3425 = vrot.lane.b32.xlu0 %v1009, 32
    %v3426 = vpop.permute.xlu0 %3425
    %3427 = vrot.lane.b32.xlu0 %v1008, 32
    %v3428 = vpop.permute.xlu0 %3427
    %3429 = vrot.lane.b32.xlu0 %v1007, 32
    %v3430 = vpop.permute.xlu0 %3429
    %3431 = vrot.lane.b32.xlu0 %v1087, 32
    %v3432 = vpop.permute.xlu0 %3431
    %3433 = vrot.lane.b32.xlu0 %v1086, 32
    %v3434 = vpop.permute.xlu0 %3433
    %3435 = vrot.lane.b32.xlu0 %v1085, 32
    %v3436 = vpop.permute.xlu0 %3435
    %vm3518 = vcmask 31744
    %v3519 = vsel %vm3518, %v193, %v1170
    %v3520 = vsel %vm3518, %v192, %v1172
    %v3521 = vsel %vm3518, %v272, %v1174
    %v3522 = vsel %vm3518, %v271, %v1176
    %v3523 = vsel %vm3518, %v270, %v1178
    %v3524 = vsel %vm3518, %v269, %v1180
    %v3525 = vsel %vm3518, %v268, %v1182
    %v3526 = vsel %vm3518, %v267, %v1184
    %v3527 = vsel %vm3518, %v266, %v1186
    %v3528 = vsel %vm3518, %v265, %v1188
    %v3529 = vsel %vm3518, %v264, %v1190
    %v3530 = vsel %vm3518, %v263, %v1192
    %v3531 = vsel %vm3518, %v262, %v1194
    %v3532 = vsel %vm3518, %v261, %v1196
    %v3533 = vsel %vm3518, %v260, %v1198
    %v3534 = vsel %vm3518, %v259, %v1200
    %v3535 = vsel %vm3518, %v258, %v1202
    %v3536 = vsel %vm3518, %v257, %v1204
    %v3537 = vsel %vm3518, %v256, %v1206
    %v3538 = vsel %vm3518, %v255, %v1208
    %v3539 = vsel %vm3518, %v254, %v1210
    %v3540 = vsel %vm3518, %v253, %v1212
    %v3541 = vsel %vm3518, %v252, %v1214
    %v3542 = vsel %vm3518, %v251, %v1216
    %v3543 = vsel %vm3518, %v250, %v1218
    %v3544 = vsel %vm3518, %v249, %v1220
    %v3545 = vsel %vm3518, %v248, %v1222
    %v3546 = vsel %vm3518, %v247, %v1224
    %v3547 = vsel %vm3518, %v246, %v1226
    %v3548 = vsel %vm3518, %v245, %v1228
    %v3549 = vsel %vm3518, %v244, %v1230
    %v3550 = vsel %vm3518, %v243, %v1232
    %v3551 = vsel %vm3518, %v242, %v1234
    %v3552 = vsel %vm3518, %v241, %v1236
    %v3553 = vsel %vm3518, %v240, %v1238
    %v3554 = vsel %vm3518, %v239, %v1240
    %v3555 = vsel %vm3518, %v238, %v1242
    %v3556 = vsel %vm3518, %v237, %v1244
    %v3557 = vsel %vm3518, %v236, %v1246
    %v3558 = vsel %vm3518, %v235, %v1248
    %v3559 = vsel %vm3518, %v234, %v1250
    %v3560 = vsel %vm3518, %v233, %v1252
    %v3561 = vsel %vm3518, %v232, %v1254
    %v3562 = vsel %vm3518, %v231, %v1256
    %v3563 = vsel %vm3518, %v230, %v1258
    %v3564 = vsel %vm3518, %v229, %v1260
    %v3565 = vsel %vm3518, %v228, %v1262
    %v3566 = vsel %vm3518, %v227, %v1264
    %v3567 = vsel %vm3518, %v226, %v1266
    %v3568 = vsel %vm3518, %v225, %v1268
    %v3569 = vsel %vm3518, %v224, %v1270
    %v3570 = vsel %vm3518, %v223, %v1272
    %v3571 = vsel %vm3518, %v222, %v1274
    %v3572 = vsel %vm3518, %v221, %v1276
    %v3573 = vsel %vm3518, %v220, %v1278
    %v3574 = vsel %vm3518, %v219, %v1280
    %v3575 = vsel %vm3518, %v218, %v1282
    %v3576 = vsel %vm3518, %v217, %v1284
    %v3577 = vsel %vm3518, %v216, %v1286
    %v3578 = vsel %vm3518, %v215, %v1288
    %v3579 = vsel %vm3518, %v214, %v1290
    %v3580 = vsel %vm3518, %v213, %v1292
    %v3581 = vsel %vm3518, %v212, %v1294
    %v3582 = vsel %vm3518, %v211, %v1296
    %v3583 = vsel %vm3518, %v210, %v1298
    %v3584 = vsel %vm3518, %v209, %v1300
    %v3585 = vsel %vm3518, %v208, %v1302
    %v3586 = vsel %vm3518, %v207, %v1304
    %v3587 = vsel %vm3518, %v206, %v1306
    %v3588 = vsel %vm3518, %v205, %v1308
    %v3589 = vsel %vm3518, %v204, %v1310
    %v3590 = vsel %vm3518, %v203, %v1312
    %v3591 = vsel %vm3518, %v202, %v1314
    %v3592 = vsel %vm3518, %v201, %v1316
    %v3593 = vsel %vm3518, %v200, %v1318
    %v3594 = vsel %vm3518, %v199, %v1320
    %v3595 = vsel %vm3518, %v198, %v1322
    %v3596 = vsel %vm3518, %v197, %v1324
    %v3597 = vsel %vm3518, %v196, %v1326
    %v3598 = vsel %vm3518, %v195, %v1328
    %v3599 = vsel %vm3518, %v194, %v1330
    %vm3600 = vcmask 64512
    %v3601 = vsel %vm3600, %v3519, %v1494
    %v3602 = vsel %vm3600, %v3520, %v1496
    %v3603 = vsel %vm3600, %v3521, %v1498
    %v3604 = vsel %vm3600, %v3522, %v1500
    %v3605 = vsel %vm3600, %v3523, %v1502
    %v3606 = vsel %vm3600, %v3524, %v1504
    %v3607 = vsel %vm3600, %v3525, %v1506
    %v3608 = vsel %vm3600, %v3526, %v1508
    %v3609 = vsel %vm3600, %v3527, %v1510
    %v3610 = vsel %vm3600, %v3528, %v1512
    %v3611 = vsel %vm3600, %v3529, %v1514
    %v3612 = vsel %vm3600, %v3530, %v1516
    %v3613 = vsel %vm3600, %v3531, %v1518
    %v3614 = vsel %vm3600, %v3532, %v1520
    %v3615 = vsel %vm3600, %v3533, %v1522
    %v3616 = vsel %vm3600, %v3534, %v1524
    %v3617 = vsel %vm3600, %v3535, %v1526
    %v3618 = vsel %vm3600, %v3536, %v1528
    %v3619 = vsel %vm3600, %v3537, %v1530
    %v3620 = vsel %vm3600, %v3538, %v1532
    %v3621 = vsel %vm3600, %v3539, %v1534
    %v3622 = vsel %vm3600, %v3540, %v1536
    %v3623 = vsel %vm3600, %v3541, %v1538
    %v3624 = vsel %vm3600, %v3542, %v1540
    %v3625 = vsel %vm3600, %v3543, %v1542
    %v3626 = vsel %vm3600, %v3544, %v1544
    %v3627 = vsel %vm3600, %v3545, %v1546
    %v3628 = vsel %vm3600, %v3546, %v1548
    %v3629 = vsel %vm3600, %v3547, %v1550
    %v3630 = vsel %vm3600, %v3548, %v1552
    %v3631 = vsel %vm3600, %v3549, %v1554
    %v3632 = vsel %vm3600, %v3550, %v1556
    %v3633 = vsel %vm3600, %v3551, %v1558
    %v3634 = vsel %vm3600, %v3552, %v1560
    %v3635 = vsel %vm3600, %v3553, %v1562
    %v3636 = vsel %vm3600, %v3554, %v1564
    %v3637 = vsel %vm3600, %v3555, %v1566
    %v3638 = vsel %vm3600, %v3556, %v1568
    %v3639 = vsel %vm3600, %v3557, %v1570
    %v3640 = vsel %vm3600, %v3558, %v1572
    %v3641 = vsel %vm3600, %v3559, %v1574
    %v3642 = vsel %vm3600, %v3560, %v1576
    %v3643 = vsel %vm3600, %v3561, %v1578
    %v3644 = vsel %vm3600, %v3562, %v1580
    %v3645 = vsel %vm3600, %v3563, %v1582
    %v3646 = vsel %vm3600, %v3564, %v1584
    %v3647 = vsel %vm3600, %v3565, %v1586
    %v3648 = vsel %vm3600, %v3566, %v1588
    %v3649 = vsel %vm3600, %v3567, %v1590
    %v3650 = vsel %vm3600, %v3568, %v1592
    %v3651 = vsel %vm3600, %v3569, %v1594
    %v3652 = vsel %vm3600, %v3570, %v1596
    %v3653 = vsel %vm3600, %v3571, %v1598
    %v3654 = vsel %vm3600, %v3572, %v1600
    %v3655 = vsel %vm3600, %v3573, %v1602
    %v3656 = vsel %vm3600, %v3574, %v1604
    %v3657 = vsel %vm3600, %v3575, %v1606
    %v3658 = vsel %vm3600, %v3576, %v1608
    %v3659 = vsel %vm3600, %v3577, %v1610
    %v3660 = vsel %vm3600, %v3578, %v1612
    %v3661 = vsel %vm3600, %v3579, %v1614
    %v3662 = vsel %vm3600, %v3580, %v1616
    %v3663 = vsel %vm3600, %v3581, %v1618
    %v3664 = vsel %vm3600, %v3582, %v1620
    %v3665 = vsel %vm3600, %v3583, %v1622
    %v3666 = vsel %vm3600, %v3584, %v1624
    %v3667 = vsel %vm3600, %v3585, %v1626
    %v3668 = vsel %vm3600, %v3586, %v1628
    %v3669 = vsel %vm3600, %v3587, %v1630
    %v3670 = vsel %vm3600, %v3588, %v1632
    %v3671 = vsel %vm3600, %v3589, %v1634
    %v3672 = vsel %vm3600, %v3590, %v1636
    %v3673 = vsel %vm3600, %v3591, %v1638
    %v3674 = vsel %vm3600, %v3592, %v1640
    %v3675 = vsel %vm3600, %v3593, %v1642
    %v3676 = vsel %vm3600, %v3594, %v1644
    %v3677 = vsel %vm3600, %v3595, %v1646
    %v3678 = vsel %vm3600, %v3596, %v1648
    %v3679 = vsel %vm3600, %v3597, %v1650
    %v3680 = vsel %vm3600, %v3598, %v1652
    %v3681 = vsel %vm3600, %v3599, %v1654
    %vm3682 = vcmask 97280
    %v3683 = vsel %vm3682, %v3601, %v1737
    %v3684 = vsel %vm3682, %v3602, %v1739
    %v3685 = vsel %vm3682, %v3603, %v1741
    %v3686 = vsel %vm3682, %v3604, %v1743
    %v3687 = vsel %vm3682, %v3605, %v1745
    %v3688 = vsel %vm3682, %v3606, %v1747
    %v3689 = vsel %vm3682, %v3607, %v1749
    %v3690 = vsel %vm3682, %v3608, %v1751
    %v3691 = vsel %vm3682, %v3609, %v1753
    %v3692 = vsel %vm3682, %v3610, %v1755
    %v3693 = vsel %vm3682, %v3611, %v1757
    %v3694 = vsel %vm3682, %v3612, %v1759
    %v3695 = vsel %vm3682, %v3613, %v1761
    %v3696 = vsel %vm3682, %v3614, %v1763
    %v3697 = vsel %vm3682, %v3615, %v1765
    %v3698 = vsel %vm3682, %v3616, %v1767
    %v3699 = vsel %vm3682, %v3617, %v1769
    %v3700 = vsel %vm3682, %v3618, %v1771
    %v3701 = vsel %vm3682, %v3619, %v1773
    %v3702 = vsel %vm3682, %v3620, %v1775
    %v3703 = vsel %vm3682, %v3621, %v1777
    %v3704 = vsel %vm3682, %v3622, %v1779
    %v3705 = vsel %vm3682, %v3623, %v1781
    %v3706 = vsel %vm3682, %v3624, %v1783
    %v3707 = vsel %vm3682, %v3625, %v1785
    %v3708 = vsel %vm3682, %v3626, %v1787
    %v3709 = vsel %vm3682, %v3627, %v1789
    %v3710 = vsel %vm3682, %v3628, %v1791
    %v3711 = vsel %vm3682, %v3629, %v1793
    %v3712 = vsel %vm3682, %v3630, %v1795
    %v3713 = vsel %vm3682, %v3631, %v1797
    %v3714 = vsel %vm3682, %v3632, %v1799
    %v3715 = vsel %vm3682, %v3633, %v1801
    %v3716 = vsel %vm3682, %v3634, %v1803
    %v3717 = vsel %vm3682, %v3635, %v1805
    %v3718 = vsel %vm3682, %v3636, %v1807
    %v3719 = vsel %vm3682, %v3637, %v1809
    %v3720 = vsel %vm3682, %v3638, %v1811
    %v3721 = vsel %vm3682, %v3639, %v1813
    %v3722 = vsel %vm3682, %v3640, %v1815
    %v3723 = vsel %vm3682, %v3641, %v1817
    %v3724 = vsel %vm3682, %v3642, %v1819
    %v3725 = vsel %vm3682, %v3643, %v1821
    %v3726 = vsel %vm3682, %v3644, %v1823
    %v3727 = vsel %vm3682, %v3645, %v1825
    %v3728 = vsel %vm3682, %v3646, %v1827
    %v3729 = vsel %vm3682, %v3647, %v1829
    %v3730 = vsel %vm3682, %v3648, %v1831
    %v3731 = vsel %vm3682, %v3649, %v1833
    %v3732 = vsel %vm3682, %v3650, %v1835
    %v3733 = vsel %vm3682, %v3651, %v1837
    %v3734 = vsel %vm3682, %v3652, %v1839
    %v3735 = vsel %vm3682, %v3653, %v1841
    %v3736 = vsel %vm3682, %v3654, %v1843
    %v3737 = vsel %vm3682, %v3655, %v1845
    %v3738 = vsel %vm3682, %v3656, %v1847
    %v3739 = vsel %vm3682, %v3657, %v1849
    %v3740 = vsel %vm3682, %v3658, %v1851
    %v3741 = vsel %vm3682, %v3659, %v1853
    %v3742 = vsel %vm3682, %v3660, %v1855
    %v3743 = vsel %vm3682, %v3661, %v1857
    %v3744 = vsel %vm3682, %v3662, %v1859
    %v3745 = vsel %vm3682, %v3663, %v1861
    %v3746 = vsel %vm3682, %v3664, %v1863
    %v3747 = vsel %vm3682, %v3665, %v1865
    %v3748 = vsel %vm3682, %v3666, %v1867
    %v3749 = vsel %vm3682, %v3667, %v1869
    %v3750 = vsel %vm3682, %v3668, %v1871
    %v3751 = vsel %vm3682, %v3669, %v1873
    %v3752 = vsel %vm3682, %v3670, %v1875
    %v3753 = vsel %vm3682, %v3671, %v1877
    %v3754 = vsel %vm3682, %v3672, %v1879
    %v3755 = vsel %vm3682, %v3673, %v1881
    %v3756 = vsel %vm3682, %v3674, %v1883
    %v3757 = vsel %vm3682, %v3675, %v1885
    %v3758 = vsel %vm3682, %v3676, %v1887
    %v3759 = vsel %vm3682, %v3677, %v1889
    %v3760 = vsel %vm3682, %v3678, %v1891
    %v3761 = vsel %vm3682, %v3679, %v1893
    %v3762 = vsel %vm3682, %v3680, %v1895
    %v3763 = vsel %vm3682, %v3681, %v1897
    %vm3764 = vcmask 130048
    %v3765 = vsel %vm3764, %v3683, %v2061
    %v3766 = vsel %vm3764, %v3684, %v2063
    %v3767 = vsel %vm3764, %v3685, %v2065
    %v3768 = vsel %vm3764, %v3686, %v2067
    %v3769 = vsel %vm3764, %v3687, %v2069
    %v3770 = vsel %vm3764, %v3688, %v2071
    %v3771 = vsel %vm3764, %v3689, %v2073
    %v3772 = vsel %vm3764, %v3690, %v2075
    %v3773 = vsel %vm3764, %v3691, %v2077
    %v3774 = vsel %vm3764, %v3692, %v2079
    %v3775 = vsel %vm3764, %v3693, %v2081
    %v3776 = vsel %vm3764, %v3694, %v2083
    %v3777 = vsel %vm3764, %v3695, %v2085
    %v3778 = vsel %vm3764, %v3696, %v2087
    %v3779 = vsel %vm3764, %v3697, %v2089
    %v3780 = vsel %vm3764, %v3698, %v2091
    %v3781 = vsel %vm3764, %v3699, %v2093
    %v3782 = vsel %vm3764, %v3700, %v2095
    %v3783 = vsel %vm3764, %v3701, %v2097
    %v3784 = vsel %vm3764, %v3702, %v2099
    %v3785 = vsel %vm3764, %v3703, %v2101
    %v3786 = vsel %vm3764, %v3704, %v2103
    %v3787 = vsel %vm3764, %v3705, %v2105
    %v3788 = vsel %vm3764, %v3706, %v2107
    %v3789 = vsel %vm3764, %v3707, %v2109
    %v3790 = vsel %vm3764, %v3708, %v2111
    %v3791 = vsel %vm3764, %v3709, %v2113
    %v3792 = vsel %vm3764, %v3710, %v2115
    %v3793 = vsel %vm3764, %v3711, %v2117
    %v3794 = vsel %vm3764, %v3712, %v2119
    %v3795 = vsel %vm3764, %v3713, %v2121
    %v3796 = vsel %vm3764, %v3714, %v2123
    %v3797 = vsel %vm3764, %v3715, %v2125
    %v3798 = vsel %vm3764, %v3716, %v2127
    %v3799 = vsel %vm3764, %v3717, %v2129
    %v3800 = vsel %vm3764, %v3718, %v2131
    %v3801 = vsel %vm3764, %v3719, %v2133
    %v3802 = vsel %vm3764, %v3720, %v2135
    %v3803 = vsel %vm3764, %v3721, %v2137
    %v3804 = vsel %vm3764, %v3722, %v2139
    %v3805 = vsel %vm3764, %v3723, %v2141
    %v3806 = vsel %vm3764, %v3724, %v2143
    %v3807 = vsel %vm3764, %v3725, %v2145
    %v3808 = vsel %vm3764, %v3726, %v2147
    %v3809 = vsel %vm3764, %v3727, %v2149
    %v3810 = vsel %vm3764, %v3728, %v2151
    %v3811 = vsel %vm3764, %v3729, %v2153
    %v3812 = vsel %vm3764, %v3730, %v2155
    %v3813 = vsel %vm3764, %v3731, %v2157
    %v3814 = vsel %vm3764, %v3732, %v2159
    %v3815 = vsel %vm3764, %v3733, %v2161
    %v3816 = vsel %vm3764, %v3734, %v2163
    %v3817 = vsel %vm3764, %v3735, %v2165
    %v3818 = vsel %vm3764, %v3736, %v2167
    %v3819 = vsel %vm3764, %v3737, %v2169
    %v3820 = vsel %vm3764, %v3738, %v2171
    %v3821 = vsel %vm3764, %v3739, %v2173
    %v3822 = vsel %vm3764, %v3740, %v2175
    %v3823 = vsel %vm3764, %v3741, %v2177
    %v3824 = vsel %vm3764, %v3742, %v2179
    %v3825 = vsel %vm3764, %v3743, %v2181
    %v3826 = vsel %vm3764, %v3744, %v2183
    %v3827 = vsel %vm3764, %v3745, %v2185
    %v3828 = vsel %vm3764, %v3746, %v2187
    %v3829 = vsel %vm3764, %v3747, %v2189
    %v3830 = vsel %vm3764, %v3748, %v2191
    %v3831 = vsel %vm3764, %v3749, %v2193
    %v3832 = vsel %vm3764, %v3750, %v2195
    %v3833 = vsel %vm3764, %v3751, %v2197
    %v3834 = vsel %vm3764, %v3752, %v2199
    %v3835 = vsel %vm3764, %v3753, %v2201
    %v3836 = vsel %vm3764, %v3754, %v2203
    %v3837 = vsel %vm3764, %v3755, %v2205
    %v3838 = vsel %vm3764, %v3756, %v2207
    %v3839 = vsel %vm3764, %v3757, %v2209
    %v3840 = vsel %vm3764, %v3758, %v2211
    %v3841 = vsel %vm3764, %v3759, %v2213
    %v3842 = vsel %vm3764, %v3760, %v2215
    %v3843 = vsel %vm3764, %v3761, %v2217
    %v3844 = vsel %vm3764, %v3762, %v2219
    %v3845 = vsel %vm3764, %v3763, %v2221
    %vm3846 = vcmask 162816
    %v3847 = vsel %vm3846, %v3765, %v2385
    %v3848 = vsel %vm3846, %v3766, %v2387
    %v3849 = vsel %vm3846, %v3767, %v2389
    %v3850 = vsel %vm3846, %v3768, %v2391
    %v3851 = vsel %vm3846, %v3769, %v2393
    %v3852 = vsel %vm3846, %v3770, %v2395
    %v3853 = vsel %vm3846, %v3771, %v2397
    %v3854 = vsel %vm3846, %v3772, %v2399
    %v3855 = vsel %vm3846, %v3773, %v2401
    %v3856 = vsel %vm3846, %v3774, %v2403
    %v3857 = vsel %vm3846, %v3775, %v2405
    %v3858 = vsel %vm3846, %v3776, %v2407
    %v3859 = vsel %vm3846, %v3777, %v2409
    %v3860 = vsel %vm3846, %v3778, %v2411
    %v3861 = vsel %vm3846, %v3779, %v2413
    %v3862 = vsel %vm3846, %v3780, %v2415
    %v3863 = vsel %vm3846, %v3781, %v2417
    %v3864 = vsel %vm3846, %v3782, %v2419
    %v3865 = vsel %vm3846, %v3783, %v2421
    %v3866 = vsel %vm3846, %v3784, %v2423
    %v3867 = vsel %vm3846, %v3785, %v2425
    %v3868 = vsel %vm3846, %v3786, %v2427
    %v3869 = vsel %vm3846, %v3787, %v2429
    %v3870 = vsel %vm3846, %v3788, %v2431
    %v3871 = vsel %vm3846, %v3789, %v2433
    %v3872 = vsel %vm3846, %v3790, %v2435
    %v3873 = vsel %vm3846, %v3791, %v2437
    %v3874 = vsel %vm3846, %v3792, %v2439
    %v3875 = vsel %vm3846, %v3793, %v2441
    %v3876 = vsel %vm3846, %v3794, %v2443
    %v3877 = vsel %vm3846, %v3795, %v2445
    %v3878 = vsel %vm3846, %v3796, %v2447
    %v3879 = vsel %vm3846, %v3797, %v2449
    %v3880 = vsel %vm3846, %v3798, %v2451
    %v3881 = vsel %vm3846, %v3799, %v2453
    %v3882 = vsel %vm3846, %v3800, %v2455
    %v3883 = vsel %vm3846, %v3801, %v2457
    %v3884 = vsel %vm3846, %v3802, %v2459
    %v3885 = vsel %vm3846, %v3803, %v2461
    %v3886 = vsel %vm3846, %v3804, %v2463
    %v3887 = vsel %vm3846, %v3805, %v2465
    %v3888 = vsel %vm3846, %v3806, %v2467
    %v3889 = vsel %vm3846, %v3807, %v2469
    %v3890 = vsel %vm3846, %v3808, %v2471
    %v3891 = vsel %vm3846, %v3809, %v2473
    %v3892 = vsel %vm3846, %v3810, %v2475
    %v3893 = vsel %vm3846, %v3811, %v2477
    %v3894 = vsel %vm3846, %v3812, %v2479
    %v3895 = vsel %vm3846, %v3813, %v2481
    %v3896 = vsel %vm3846, %v3814, %v2483
    %v3897 = vsel %vm3846, %v3815, %v2485
    %v3898 = vsel %vm3846, %v3816, %v2487
    %v3899 = vsel %vm3846, %v3817, %v2489
    %v3900 = vsel %vm3846, %v3818, %v2491
    %v3901 = vsel %vm3846, %v3819, %v2493
    %v3902 = vsel %vm3846, %v3820, %v2495
    %v3903 = vsel %vm3846, %v3821, %v2497
    %v3904 = vsel %vm3846, %v3822, %v2499
    %v3905 = vsel %vm3846, %v3823, %v2501
    %v3906 = vsel %vm3846, %v3824, %v2503
    %v3907 = vsel %vm3846, %v3825, %v2505
    %v3908 = vsel %vm3846, %v3826, %v2507
    %v3909 = vsel %vm3846, %v3827, %v2509
    %v3910 = vsel %vm3846, %v3828, %v2511
    %v3911 = vsel %vm3846, %v3829, %v2513
    %v3912 = vsel %vm3846, %v3830, %v2515
    %v3913 = vsel %vm3846, %v3831, %v2517
    %v3914 = vsel %vm3846, %v3832, %v2519
    %v3915 = vsel %vm3846, %v3833, %v2521
    %v3916 = vsel %vm3846, %v3834, %v2523
    %v3917 = vsel %vm3846, %v3835, %v2525
    %v3918 = vsel %vm3846, %v3836, %v2527
    %v3919 = vsel %vm3846, %v3837, %v2529
    %v3920 = vsel %vm3846, %v3838, %v2531
    %v3921 = vsel %vm3846, %v3839, %v2533
    %v3922 = vsel %vm3846, %v3840, %v2535
    %v3923 = vsel %vm3846, %v3841, %v2537
    %v3924 = vsel %vm3846, %v3842, %v2539
    %v3925 = vsel %vm3846, %v3843, %v2541
    %v3926 = vsel %vm3846, %v3844, %v2543
    %v3927 = vsel %vm3846, %v3845, %v2545
    %vm3928 = vcmask 195584
    %v3929 = vsel %vm3928, %v3847, %v2628
    %v3930 = vsel %vm3928, %v3848, %v2630
    %v3931 = vsel %vm3928, %v3849, %v2632
    %v3932 = vsel %vm3928, %v3850, %v2634
    %v3933 = vsel %vm3928, %v3851, %v2636
    %v3934 = vsel %vm3928, %v3852, %v2638
    %v3935 = vsel %vm3928, %v3853, %v2640
    %v3936 = vsel %vm3928, %v3854, %v2642
    %v3937 = vsel %vm3928, %v3855, %v2644
    %v3938 = vsel %vm3928, %v3856, %v2646
    %v3939 = vsel %vm3928, %v3857, %v2648
    %v3940 = vsel %vm3928, %v3858, %v2650
    %v3941 = vsel %vm3928, %v3859, %v2652
    %v3942 = vsel %vm3928, %v3860, %v2654
    %v3943 = vsel %vm3928, %v3861, %v2656
    %v3944 = vsel %vm3928, %v3862, %v2658
    %v3945 = vsel %vm3928, %v3863, %v2660
    %v3946 = vsel %vm3928, %v3864, %v2662
    %v3947 = vsel %vm3928, %v3865, %v2664
    %v3948 = vsel %vm3928, %v3866, %v2666
    %v3949 = vsel %vm3928, %v3867, %v2668
    %v3950 = vsel %vm3928, %v3868, %v2670
    %v3951 = vsel %vm3928, %v3869, %v2672
    %v3952 = vsel %vm3928, %v3870, %v2674
    %v3953 = vsel %vm3928, %v3871, %v2676
    %v3954 = vsel %vm3928, %v3872, %v2678
    %v3955 = vsel %vm3928, %v3873, %v2680
    %v3956 = vsel %vm3928, %v3874, %v2682
    %v3957 = vsel %vm3928, %v3875, %v2684
    %v3958 = vsel %vm3928, %v3876, %v2686
    %v3959 = vsel %vm3928, %v3877, %v2688
    %v3960 = vsel %vm3928, %v3878, %v2690
    %v3961 = vsel %vm3928, %v3879, %v2692
    %v3962 = vsel %vm3928, %v3880, %v2694
    %v3963 = vsel %vm3928, %v3881, %v2696
    %v3964 = vsel %vm3928, %v3882, %v2698
    %v3965 = vsel %vm3928, %v3883, %v2700
    %v3966 = vsel %vm3928, %v3884, %v2702
    %v3967 = vsel %vm3928, %v3885, %v2704
    %v3968 = vsel %vm3928, %v3886, %v2706
    %v3969 = vsel %vm3928, %v3887, %v2708
    %v3970 = vsel %vm3928, %v3888, %v2710
    %v3971 = vsel %vm3928, %v3889, %v2712
    %v3972 = vsel %vm3928, %v3890, %v2714
    %v3973 = vsel %vm3928, %v3891, %v2716
    %v3974 = vsel %vm3928, %v3892, %v2718
    %v3975 = vsel %vm3928, %v3893, %v2720
    %v3976 = vsel %vm3928, %v3894, %v2722
    %v3977 = vsel %vm3928, %v3895, %v2724
    %v3978 = vsel %vm3928, %v3896, %v2726
    %v3979 = vsel %vm3928, %v3897, %v2728
    %v3980 = vsel %vm3928, %v3898, %v2730
    %v3981 = vsel %vm3928, %v3899, %v2732
    %v3982 = vsel %vm3928, %v3900, %v2734
    %v3983 = vsel %vm3928, %v3901, %v2736
    %v3984 = vsel %vm3928, %v3902, %v2738
    %v3985 = vsel %vm3928, %v3903, %v2740
    %v3986 = vsel %vm3928, %v3904, %v2742
    %v3987 = vsel %vm3928, %v3905, %v2744
    %v3988 = vsel %vm3928, %v3906, %v2746
    %v3989 = vsel %vm3928, %v3907, %v2748
    %v3990 = vsel %vm3928, %v3908, %v2750
    %v3991 = vsel %vm3928, %v3909, %v2752
    %v3992 = vsel %vm3928, %v3910, %v2754
    %v3993 = vsel %vm3928, %v3911, %v2756
    %v3994 = vsel %vm3928, %v3912, %v2758
    %v3995 = vsel %vm3928, %v3913, %v2760
    %v3996 = vsel %vm3928, %v3914, %v2762
    %v3997 = vsel %vm3928, %v3915, %v2764
    %v3998 = vsel %vm3928, %v3916, %v2766
    %v3999 = vsel %vm3928, %v3917, %v2768
    %v4000 = vsel %vm3928, %v3918, %v2770
    %v4001 = vsel %vm3928, %v3919, %v2772
    %v4002 = vsel %vm3928, %v3920, %v2774
    %v4003 = vsel %vm3928, %v3921, %v2776
    %v4004 = vsel %vm3928, %v3922, %v2778
    %v4005 = vsel %vm3928, %v3923, %v2780
    %v4006 = vsel %vm3928, %v3924, %v2782
    %v4007 = vsel %vm3928, %v3925, %v2784
    %v4008 = vsel %vm3928, %v3926, %v2786
    %v4009 = vsel %vm3928, %v3927, %v2788
    %vm4010 = vcmask 228352
    %v4011 = vsel %vm4010, %v3929, %v2952
    %v4012 = vsel %vm4010, %v3930, %v2954
    %v4013 = vsel %vm4010, %v3931, %v2956
    %v4014 = vsel %vm4010, %v3932, %v2958
    %v4015 = vsel %vm4010, %v3933, %v2960
    %v4016 = vsel %vm4010, %v3934, %v2962
    %v4017 = vsel %vm4010, %v3935, %v2964
    %v4018 = vsel %vm4010, %v3936, %v2966
    %v4019 = vsel %vm4010, %v3937, %v2968
    %v4020 = vsel %vm4010, %v3938, %v2970
    %v4021 = vsel %vm4010, %v3939, %v2972
    %v4022 = vsel %vm4010, %v3940, %v2974
    %v4023 = vsel %vm4010, %v3941, %v2976
    %v4024 = vsel %vm4010, %v3942, %v2978
    %v4025 = vsel %vm4010, %v3943, %v2980
    %v4026 = vsel %vm4010, %v3944, %v2982
    %v4027 = vsel %vm4010, %v3945, %v2984
    %v4028 = vsel %vm4010, %v3946, %v2986
    %v4029 = vsel %vm4010, %v3947, %v2988
    %v4030 = vsel %vm4010, %v3948, %v2990
    %v4031 = vsel %vm4010, %v3949, %v2992
    %v4032 = vsel %vm4010, %v3950, %v2994
    %v4033 = vsel %vm4010, %v3951, %v2996
    %v4034 = vsel %vm4010, %v3952, %v2998
    %v4035 = vsel %vm4010, %v3953, %v3000
    %v4036 = vsel %vm4010, %v3954, %v3002
    %v4037 = vsel %vm4010, %v3955, %v3004
    %v4038 = vsel %vm4010, %v3956, %v3006
    %v4039 = vsel %vm4010, %v3957, %v3008
    %v4040 = vsel %vm4010, %v3958, %v3010
    %v4041 = vsel %vm4010, %v3959, %v3012
    %v4042 = vsel %vm4010, %v3960, %v3014
    %v4043 = vsel %vm4010, %v3961, %v3016
    %v4044 = vsel %vm4010, %v3962, %v3018
    %v4045 = vsel %vm4010, %v3963, %v3020
    %v4046 = vsel %vm4010, %v3964, %v3022
    %v4047 = vsel %vm4010, %v3965, %v3024
    %v4048 = vsel %vm4010, %v3966, %v3026
    %v4049 = vsel %vm4010, %v3967, %v3028
    %v4050 = vsel %vm4010, %v3968, %v3030
    %v4051 = vsel %vm4010, %v3969, %v3032
    %v4052 = vsel %vm4010, %v3970, %v3034
    %v4053 = vsel %vm4010, %v3971, %v3036
    %v4054 = vsel %vm4010, %v3972, %v3038
    %v4055 = vsel %vm4010, %v3973, %v3040
    %v4056 = vsel %vm4010, %v3974, %v3042
    %v4057 = vsel %vm4010, %v3975, %v3044
    %v4058 = vsel %vm4010, %v3976, %v3046
    %v4059 = vsel %vm4010, %v3977, %v3048
    %v4060 = vsel %vm4010, %v3978, %v3050
    %v4061 = vsel %vm4010, %v3979, %v3052
    %v4062 = vsel %vm4010, %v3980, %v3054
    %v4063 = vsel %vm4010, %v3981, %v3056
    %v4064 = vsel %vm4010, %v3982, %v3058
    %v4065 = vsel %vm4010, %v3983, %v3060
    %v4066 = vsel %vm4010, %v3984, %v3062
    %v4067 = vsel %vm4010, %v3985, %v3064
    %v4068 = vsel %vm4010, %v3986, %v3066
    %v4069 = vsel %vm4010, %v3987, %v3068
    %v4070 = vsel %vm4010, %v3988, %v3070
    %v4071 = vsel %vm4010, %v3989, %v3072
    %v4072 = vsel %vm4010, %v3990, %v3074
    %v4073 = vsel %vm4010, %v3991, %v3076
    %v4074 = vsel %vm4010, %v3992, %v3078
    %v4075 = vsel %vm4010, %v3993, %v3080
    %v4076 = vsel %vm4010, %v3994, %v3082
    %v4077 = vsel %vm4010, %v3995, %v3084
    %v4078 = vsel %vm4010, %v3996, %v3086
    %v4079 = vsel %vm4010, %v3997, %v3088
    %v4080 = vsel %vm4010, %v3998, %v3090
    %v4081 = vsel %vm4010, %v3999, %v3092
    %v4082 = vsel %vm4010, %v4000, %v3094
    %v4083 = vsel %vm4010, %v4001, %v3096
    %v4084 = vsel %vm4010, %v4002, %v3098
    %v4085 = vsel %vm4010, %v4003, %v3100
    %v4086 = vsel %vm4010, %v4004, %v3102
    %v4087 = vsel %vm4010, %v4005, %v3104
    %v4088 = vsel %vm4010, %v4006, %v3106
    %v4089 = vsel %vm4010, %v4007, %v3108
    %v4090 = vsel %vm4010, %v4008, %v3110
    %v4091 = vsel %vm4010, %v4009, %v3112
    %vm4092 = vcmask 261120
    %v4093 = vsel %vm4092, %v4011, %v3276
    %v4094 = vsel %vm4092, %v4012, %v3278
    %v4095 = vsel %vm4092, %v4013, %v3280
    %v4096 = vsel %vm4092, %v4014, %v3282
    %v4097 = vsel %vm4092, %v4015, %v3284
    %v4098 = vsel %vm4092, %v4016, %v3286
    %v4099 = vsel %vm4092, %v4017, %v3288
    %v4100 = vsel %vm4092, %v4018, %v3290
    %v4101 = vsel %vm4092, %v4019, %v3292
    %v4102 = vsel %vm4092, %v4020, %v3294
    %v4103 = vsel %vm4092, %v4021, %v3296
    %v4104 = vsel %vm4092, %v4022, %v3298
    %v4105 = vsel %vm4092, %v4023, %v3300
    %v4106 = vsel %vm4092, %v4024, %v3302
    %v4107 = vsel %vm4092, %v4025, %v3304
    %v4108 = vsel %vm4092, %v4026, %v3306
    %v4109 = vsel %vm4092, %v4027, %v3308
    %v4110 = vsel %vm4092, %v4028, %v3310
    %v4111 = vsel %vm4092, %v4029, %v3312
    %v4112 = vsel %vm4092, %v4030, %v3314
    %v4113 = vsel %vm4092, %v4031, %v3316
    %v4114 = vsel %vm4092, %v4032, %v3318
    %v4115 = vsel %vm4092, %v4033, %v3320
    %v4116 = vsel %vm4092, %v4034, %v3322
    %v4117 = vsel %vm4092, %v4035, %v3324
    %v4118 = vsel %vm4092, %v4036, %v3326
    %v4119 = vsel %vm4092, %v4037, %v3328
    %v4120 = vsel %vm4092, %v4038, %v3330
    %v4121 = vsel %vm4092, %v4039, %v3332
    %v4122 = vsel %vm4092, %v4040, %v3334
    %v4123 = vsel %vm4092, %v4041, %v3336
    %v4124 = vsel %vm4092, %v4042, %v3338
    %v4125 = vsel %vm4092, %v4043, %v3340
    %v4126 = vsel %vm4092, %v4044, %v3342
    %v4127 = vsel %vm4092, %v4045, %v3344
    %v4128 = vsel %vm4092, %v4046, %v3346
    %v4129 = vsel %vm4092, %v4047, %v3348
    %v4130 = vsel %vm4092, %v4048, %v3350
    %v4131 = vsel %vm4092, %v4049, %v3352
    %v4132 = vsel %vm4092, %v4050, %v3354
    %v4133 = vsel %vm4092, %v4051, %v3356
    %v4134 = vsel %vm4092, %v4052, %v3358
    %v4135 = vsel %vm4092, %v4053, %v3360
    %v4136 = vsel %vm4092, %v4054, %v3362
    %v4137 = vsel %vm4092, %v4055, %v3364
    %v4138 = vsel %vm4092, %v4056, %v3366
    %v4139 = vsel %vm4092, %v4057, %v3368
    %v4140 = vsel %vm4092, %v4058, %v3370
    %v4141 = vsel %vm4092, %v4059, %v3372
    %v4142 = vsel %vm4092, %v4060, %v3374
    %v4143 = vsel %vm4092, %v4061, %v3376
    %v4144 = vsel %vm4092, %v4062, %v3378
    %v4145 = vsel %vm4092, %v4063, %v3380
    %v4146 = vsel %vm4092, %v4064, %v3382
    %v4147 = vsel %vm4092, %v4065, %v3384
    %v4148 = vsel %vm4092, %v4066, %v3386
    %v4149 = vsel %vm4092, %v4067, %v3388
    %v4150 = vsel %vm4092, %v4068, %v3390
    %v4151 = vsel %vm4092, %v4069, %v3392
    %v4152 = vsel %vm4092, %v4070, %v3394
    %v4153 = vsel %vm4092, %v4071, %v3396
    %v4154 = vsel %vm4092, %v4072, %v3398
    %v4155 = vsel %vm4092, %v4073, %v3400
    %v4156 = vsel %vm4092, %v4074, %v3402
    %v4157 = vsel %vm4092, %v4075, %v3404
    %v4158 = vsel %vm4092, %v4076, %v3406
    %v4159 = vsel %vm4092, %v4077, %v3408
    %v4160 = vsel %vm4092, %v4078, %v3410
    %v4161 = vsel %vm4092, %v4079, %v3412
    %v4162 = vsel %vm4092, %v4080, %v3414
    %v4163 = vsel %vm4092, %v4081, %v3416
    %v4164 = vsel %vm4092, %v4082, %v3418
    %v4165 = vsel %vm4092, %v4083, %v3420
    %v4166 = vsel %vm4092, %v4084, %v3422
    %v4167 = vsel %vm4092, %v4085, %v3424
    %v4168 = vsel %vm4092, %v4086, %v3426
    %v4169 = vsel %vm4092, %v4087, %v3428
    %v4170 = vsel %vm4092, %v4088, %v3430
    %v4171 = vsel %vm4092, %v4089, %v3432
    %v4172 = vsel %vm4092, %v4090, %v3434
    %v4173 = vsel %vm4092, %v4091, %v3436
    %v4174 = vld [vmem:[%s1] sm:$0xff]
    %v4175 = vld [vmem:[%s1 + $0x8] sm:$0xff]
    %v4176 = vld [vmem:[%s1 + $0x10] sm:$0xff]
    %v4177 = vld [vmem:[%s1 + $0x18] sm:$0xff]
    %v4178 = vld [vmem:[%s1 + $0x20] sm:$0xf]
    %v4179 = vld [vmem:[%s2] sm:$0x1]
    %v4181 = vlaneseq
    %v4182 = vshrl.u32 %v4181, 7
    %v4183 = vsub.s32 0, %v4182
    %v4184 = vrot.slane %v4179, %v4183
    %vm4186 = vcmask 293888
    %v4188 = vsel %vm4186, %v4093, 0
    %v4191 = vsel %vm4186, %v4094, 0
    %v4194 = vsel %vm4186, %v4095, 0
    %v4197 = vsel %vm4186, %v4096, 0
    %v4200 = vsel %vm4186, %v4097, 0
    %v4203 = vsel %vm4186, %v4098, 0
    %v4206 = vsel %vm4186, %v4099, 0
    %v4209 = vsel %vm4186, %v4100, 0
    %v4212 = vsel %vm4186, %v4101, 0
    %v4215 = vsel %vm4186, %v4102, 0
    %v4218 = vsel %vm4186, %v4103, 0
    %v4221 = vsel %vm4186, %v4104, 0
    %v4224 = vsel %vm4186, %v4105, 0
    %v4227 = vsel %vm4186, %v4106, 0
    %v4230 = vsel %vm4186, %v4107, 0
    %v4233 = vsel %vm4186, %v4108, 0
    %v4236 = vsel %vm4186, %v4109, 0
    %v4239 = vsel %vm4186, %v4110, 0
    %v4242 = vsel %vm4186, %v4111, 0
    %v4245 = vsel %vm4186, %v4112, 0
    %v4248 = vsel %vm4186, %v4113, 0
    %v4251 = vsel %vm4186, %v4114, 0
    %v4254 = vsel %vm4186, %v4115, 0
    %v4257 = vsel %vm4186, %v4116, 0
    %v4260 = vsel %vm4186, %v4117, 0
    %v4263 = vsel %vm4186, %v4118, 0
    %v4266 = vsel %vm4186, %v4119, 0
    %v4269 = vsel %vm4186, %v4120, 0
    %v4272 = vsel %vm4186, %v4121, 0
    %v4275 = vsel %vm4186, %v4122, 0
    %v4278 = vsel %vm4186, %v4123, 0
    %v4281 = vsel %vm4186, %v4124, 0
    %v4284 = vsel %vm4186, %v4125, 0
    %v4287 = vsel %vm4186, %v4126, 0
    %v4290 = vsel %vm4186, %v4127, 0
    %v4293 = vsel %vm4186, %v4128, 0
    %v4296 = vsel %vm4186, %v4129, 0
    %v4299 = vsel %vm4186, %v4130, 0
    %v4302 = vsel %vm4186, %v4131, 0
    %v4305 = vsel %vm4186, %v4132, 0
    %v4308 = vsel %vm4186, %v4133, 0
    %v4311 = vsel %vm4186, %v4134, 0
    %v4314 = vsel %vm4186, %v4135, 0
    %v4317 = vsel %vm4186, %v4136, 0
    %v4320 = vsel %vm4186, %v4137, 0
    %v4323 = vsel %vm4186, %v4138, 0
    %v4326 = vsel %vm4186, %v4139, 0
    %v4329 = vsel %vm4186, %v4140, 0
    %v4332 = vsel %vm4186, %v4141, 0
    %v4335 = vsel %vm4186, %v4142, 0
    %v4338 = vsel %vm4186, %v4143, 0
    %v4341 = vsel %vm4186, %v4144, 0
    %v4344 = vsel %vm4186, %v4145, 0
    %v4347 = vsel %vm4186, %v4146, 0
    %v4350 = vsel %vm4186, %v4147, 0
    %v4353 = vsel %vm4186, %v4148, 0
    %v4356 = vsel %vm4186, %v4149, 0
    %v4359 = vsel %vm4186, %v4150, 0
    %v4362 = vsel %vm4186, %v4151, 0
    %v4365 = vsel %vm4186, %v4152, 0
    %v4368 = vsel %vm4186, %v4153, 0
    %v4371 = vsel %vm4186, %v4154, 0
    %v4374 = vsel %vm4186, %v4155, 0
    %v4377 = vsel %vm4186, %v4156, 0
    %v4380 = vsel %vm4186, %v4157, 0
    %v4383 = vsel %vm4186, %v4158, 0
    %v4386 = vsel %vm4186, %v4159, 0
    %v4389 = vsel %vm4186, %v4160, 0
    %v4392 = vsel %vm4186, %v4161, 0
    %v4395 = vsel %vm4186, %v4162, 0
    %v4398 = vsel %vm4186, %v4163, 0
    %v4401 = vsel %vm4186, %v4164, 0
    %v4404 = vsel %vm4186, %v4165, 0
    %v4407 = vsel %vm4186, %v4166, 0
    %v4410 = vsel %vm4186, %v4167, 0
    %v4413 = vsel %vm4186, %v4168, 0
    %v4416 = vsel %vm4186, %v4169, 0
    %v4419 = vsel %vm4186, %v4170, 0
    %v4422 = vsel %vm4186, %v4171, 0
    %v4425 = vsel %vm4186, %v4172, 0
    %v4428 = vsel %vm4186, %v4173, 0
    %vm4430 = vcmask 1043456
    %v4432 = vsel %vm4430, %v4178, 0
    %4434 = vmatprep.subr.mxu0 0.0
    %4435 = vmatpush1.msra.mxu0 %v4174
    %4436 = vmatprep.subr.mxu0 0.0
    %4437 = vmatpush1.msra.mxu0 %v4175
    %4438 = vmatprep.subr.mxu0 0.0
    %4439 = vmatpush1.msra.mxu0 %v4176
    %4440 = vmatprep.subr.mxu0 0.0
    %4441 = vmatpush1.msra.mxu0 %v4177
    %4442 = vmatprep.subr.mxu0 0.0
    %4443 = vmatpush1.msra.mxu0 %v4432
    %4444 = vmatprep.subr.mxu0 0.0
    %4445 = vmatpush1.msra.mxu0 0.0
    %4446 = vmatprep.subr.mxu0 0.0
    %4447 = vmatpush1.msra.mxu0 0.0
    %4448 = vmatprep.subr.mxu0 0.0
    %4449 = vmatpush1.msra.mxu0 0.0
    %4450 = vmatprep.subr.mxu0 0.0
    %4451 = vmatpush1.msra.mxu0 0.0
    %4452 = vmatprep.subr.mxu0 0.0
    %4453 = vmatpush1.msra.mxu0 0.0
    %4454 = vmatprep.subr.mxu0 0.0
    %4455 = vmatpush1.msra.mxu0 0.0
    %4456 = vmatprep.subr.mxu0 0.0
    %4457 = vmatpush1.msra.mxu0 0.0
    %4458 = vmatprep.subr.mxu0 0.0
    %4459 = vmatpush1.msra.mxu0 0.0
    %4460 = vmatprep.subr.mxu0 0.0
    %4461 = vmatpush1.msra.mxu0 0.0
    %4462 = vmatprep.subr.mxu0 0.0
    %4463 = vmatpush1.msra.mxu0 0.0
    %4464 = vmatprep.subr.mxu0 0.0
    %4465 = vmatpush1.msra.mxu0 0.0
    %4466 = vmatprep.subr.mxu0 0.0
    %4467 = vmatpush1.msra.mxu0 0.0
    %4468 = vmatprep.subr.mxu0 0.0
    %4469 = vmatpush1.msra.mxu0 0.0
    %4470 = vmatprep.subr.mxu0 0.0
    %4471 = vmatpush1.msra.mxu0 0.0
    %4472 = vmatprep.subr.mxu0 0.0
    %4473 = vmatpush1.msra.mxu0 0.0
    %4474 = vmatprep.subr.mxu0 0.0
    %4475 = vmatpush1.msra.mxu0 0.0
    %4476 = vmatprep.subr.mxu0 0.0
    %4477 = vmatpush1.msra.mxu0 0.0
    %4478 = vmatprep.subr.mxu0 0.0
    %4479 = vmatpush1.msra.mxu0 0.0
    %4480 = vmatprep.subr.mxu0 0.0
    %4481 = vmatpush1.msra.mxu0 0.0
    %4482 = vmatprep.subr.mxu0 0.0
    %4483 = vmatpush1.msra.mxu0 0.0
    %4484 = vmatprep.subr.mxu0 0.0
    %4485 = vmatpush1.msra.mxu0 0.0
    %4486 = vmatprep.subr.mxu0 0.0
    %4487 = vmatpush1.msra.mxu0 0.0
    %4488 = vmatprep.subr.mxu0 0.0
    %4489 = vmatpush1.msra.mxu0 0.0
    %4490 = vmatprep.subr.mxu0 0.0
    %4491 = vmatpush1.msra.mxu0 0.0
    %4492 = vmatprep.subr.mxu0 0.0
    %4493 = vmatpush1.msra.mxu0 0.0
    %4494 = vmatprep.subr.mxu0 0.0
    %4495 = vmatpush1.msra.mxu0 0.0
    %4496 = vmatprep.subr.mxu0 0.0
    %4497 = vmatpush1.msra.mxu0 0.0
    %4498 = vmatprep.mubr.f32.mxu0 0.0
    %4499 = vmatmul.mubr.f32.gmra.mrb[0].mxu0 %v4188
    %v4500 = vpop.f32.mrb[0].mxu0
    %v4501 = vadd.f32 %v4184, %v4500
    %v4502 = vpop.f32.mrb[0].mxu0
    %4503 = vmatprep.mubr.f32.mxu0 0.0
    %4504 = vmatmul.mubr.f32.gmra.mrb[0].mxu0 %v4191
    %v4505 = vpop.f32.mrb[0].mxu0
    %v4506 = vadd.f32 %v4184, %v4505
    %v4507 = vpop.f32.mrb[0].mxu0
    %4508 = vmatprep.mubr.f32.mxu0 0.0
    %4509 = vmatmul.mubr.f32.gmra.mrb[0].mxu0 %v4194
    %v4510 = vpop.f32.mrb[0].mxu0
    %v4511 = vadd.f32 %v4184, %v4510
    %v4512 = vpop.f32.mrb[0].mxu0
    %4513 = vmatprep.mubr.f32.mxu0 0.0
    %4514 = vmatmul.mubr.f32.gmra.mrb[0].mxu0 %v4197
    %v4515 = vpop.f32.mrb[0].mxu0
    %v4516 = vadd.f32 %v4184, %v4515
    %v4517 = vpop.f32.mrb[0].mxu0
    %4518 = vmatprep.mubr.f32.mxu0 0.0
    %4519 = vmatmul.mubr.f32.gmra.mrb[0].mxu0 %v4200
    %v4520 = vpop.f32.mrb[0].mxu0
    %v4521 = vadd.f32 %v4184, %v4520
    %v4522 = vpop.f32.mrb[0].mxu0
    %4523 = vmatprep.mubr.f32.mxu0 0.0
    %4524 = vmatmul.mubr.f32.gmra.mrb[0].mxu0 %v4203
    %v4525 = vpop.f32.mrb[0].mxu0
    %v4526 = vadd.f32 %v4184, %v4525
    %v4527 = vpop.f32.mrb[0].mxu0
    %4528 = vmatprep.mubr.f32.mxu0 0.0
    %4529 = vmatmul.mubr.f32.gmra.mrb[0].mxu0 %v4206
    %v4530 = vpop.f32.mrb[0].mxu0
    %v4531 = vadd.f32 %v4184, %v4530
    %v4532 = vpop.f32.mrb[0].mxu0
    %4533 = vmatprep.mubr.f32.mxu0 0.0
    %4534 = vmatmul.mubr.f32.gmra.mrb[0].mxu0 %v4209
    %v4535 = vpop.f32.mrb[0].mxu0
    %v4536 = vadd.f32 %v4184, %v4535
    %v4537 = vpop.f32.mrb[0].mxu0
    %4538 = vmatprep.mubr.f32.mxu0 0.0
    %4539 = vmatmul.mubr.f32.gmra.mrb[0].mxu0 %v4212
    %v4540 = vpop.f32.mrb[0].mxu0
    %v4541 = vadd.f32 %v4184, %v4540
    %v4542 = vpop.f32.mrb[0].mxu0
    %4543 = vmatprep.mubr.f32.mxu0 0.0
    %4544 = vmatmul.mubr.f32.gmra.mrb[0].mxu0 %v4215
    %v4545 = vpop.f32.mrb[0].mxu0
    %v4546 = vadd.f32 %v4184, %v4545
    %v4547 = vpop.f32.mrb[0].mxu0
    %4548 = vmatprep.mubr.f32.mxu0 0.0
    %4549 = vmatmul.mubr.f32.gmra.mrb[0].mxu0 %v4218
    %v4550 = vpop.f32.mrb[0].mxu0
    %v4551 = vadd.f32 %v4184, %v4550
    %v4552 = vpop.f32.mrb[0].mxu0
    %4553 = vmatprep.mubr.f32.mxu0 0.0
    %4554 = vmatmul.mubr.f32.gmra.mrb[0].mxu0 %v4221
    %v4555 = vpop.f32.mrb[0].mxu0
    %v4556 = vadd.f32 %v4184, %v4555
    %v4557 = vpop.f32.mrb[0].mxu0
    %4558 = vmatprep.mubr.f32.mxu0 0.0
    %4559 = vmatmul.mubr.f32.gmra.mrb[0].mxu0 %v4224
    %v4560 = vpop.f32.mrb[0].mxu0
    %v4561 = vadd.f32 %v4184, %v4560
    %v4562 = vpop.f32.mrb[0].mxu0
    %4563 = vmatprep.mubr.f32.mxu0 0.0
    %4564 = vmatmul.mubr.f32.gmra.mrb[0].mxu0 %v4227
    %v4565 = vpop.f32.mrb[0].mxu0
    %v4566 = vadd.f32 %v4184, %v4565
    %v4567 = vpop.f32.mrb[0].mxu0
    %4568 = vmatprep.mubr.f32.mxu0 0.0
    %4569 = vmatmul.mubr.f32.gmra.mrb[0].mxu0 %v4230
    %v4570 = vpop.f32.mrb[0].mxu0
    %v4571 = vadd.f32 %v4184, %v4570
    %v4572 = vpop.f32.mrb[0].mxu0
    %4573 = vmatprep.mubr.f32.mxu0 0.0
    %4574 = vmatmul.mubr.f32.gmra.mrb[0].mxu0 %v4233
    %v4575 = vpop.f32.mrb[0].mxu0
    %v4576 = vadd.f32 %v4184, %v4575
    %v4577 = vpop.f32.mrb[0].mxu0
    %4578 = vmatprep.mubr.f32.mxu0 0.0
    %4579 = vmatmul.mubr.f32.gmra.mrb[0].mxu0 %v4236
    %v4580 = vpop.f32.mrb[0].mxu0
    %v4581 = vadd.f32 %v4184, %v4580
    %v4582 = vpop.f32.mrb[0].mxu0
    %4583 = vmatprep.mubr.f32.mxu0 0.0
    %4584 = vmatmul.mubr.f32.gmra.mrb[0].mxu0 %v4239
    %v4585 = vpop.f32.mrb[0].mxu0
    %v4586 = vadd.f32 %v4184, %v4585
    %v4587 = vpop.f32.mrb[0].mxu0
    %4588 = vmatprep.mubr.f32.mxu0 0.0
    %4589 = vmatmul.mubr.f32.gmra.mrb[0].mxu0 %v4242
    %v4590 = vpop.f32.mrb[0].mxu0
    %v4591 = vadd.f32 %v4184, %v4590
    %v4592 = vpop.f32.mrb[0].mxu0
    %4593 = vmatprep.mubr.f32.mxu0 0.0
    %4594 = vmatmul.mubr.f32.gmra.mrb[0].mxu0 %v4245
    %v4595 = vpop.f32.mrb[0].mxu0
    %v4596 = vadd.f32 %v4184, %v4595
    %v4597 = vpop.f32.mrb[0].mxu0
    %4598 = vmatprep.mubr.f32.mxu0 0.0
    %4599 = vmatmul.mubr.f32.gmra.mrb[0].mxu0 %v4248
    %v4600 = vpop.f32.mrb[0].mxu0
    %v4601 = vadd.f32 %v4184, %v4600
    %v4602 = vpop.f32.mrb[0].mxu0
    %4603 = vmatprep.mubr.f32.mxu0 0.0
    %4604 = vmatmul.mubr.f32.gmra.mrb[0].mxu0 %v4251
    %v4605 = vpop.f32.mrb[0].mxu0
    %v4606 = vadd.f32 %v4184, %v4605
    %v4607 = vpop.f32.mrb[0].mxu0
    %4608 = vmatprep.mubr.f32.mxu0 0.0
    %4609 = vmatmul.mubr.f32.gmra.mrb[0].mxu0 %v4254
    %v4610 = vpop.f32.mrb[0].mxu0
    %v4611 = vadd.f32 %v4184, %v4610
    %v4612 = vpop.f32.mrb[0].mxu0
    %4613 = vmatprep.mubr.f32.mxu0 0.0
    %4614 = vmatmul.mubr.f32.gmra.mrb[0].mxu0 %v4257
    %v4615 = vpop.f32.mrb[0].mxu0
    %v4616 = vadd.f32 %v4184, %v4615
    %v4617 = vpop.f32.mrb[0].mxu0
    %4618 = vmatprep.mubr.f32.mxu0 0.0
    %4619 = vmatmul.mubr.f32.gmra.mrb[0].mxu0 %v4260
    %v4620 = vpop.f32.mrb[0].mxu0
    %v4621 = vadd.f32 %v4184, %v4620
    %v4622 = vpop.f32.mrb[0].mxu0
    %4623 = vmatprep.mubr.f32.mxu0 0.0
    %4624 = vmatmul.mubr.f32.gmra.mrb[0].mxu0 %v4263
    %v4625 = vpop.f32.mrb[0].mxu0
    %v4626 = vadd.f32 %v4184, %v4625
    %v4627 = vpop.f32.mrb[0].mxu0
    %4628 = vmatprep.mubr.f32.mxu0 0.0
    %4629 = vmatmul.mubr.f32.gmra.mrb[0].mxu0 %v4266
    %v4630 = vpop.f32.mrb[0].mxu0
    %v4631 = vadd.f32 %v4184, %v4630
    %v4632 = vpop.f32.mrb[0].mxu0
    %4633 = vmatprep.mubr.f32.mxu0 0.0
    %4634 = vmatmul.mubr.f32.gmra.mrb[0].mxu0 %v4269
    %v4635 = vpop.f32.mrb[0].mxu0
    %v4636 = vadd.f32 %v4184, %v4635
    %v4637 = vpop.f32.mrb[0].mxu0
    %4638 = vmatprep.mubr.f32.mxu0 0.0
    %4639 = vmatmul.mubr.f32.gmra.mrb[0].mxu0 %v4272
    %v4640 = vpop.f32.mrb[0].mxu0
    %v4641 = vadd.f32 %v4184, %v4640
    %v4642 = vpop.f32.mrb[0].mxu0
    %4643 = vmatprep.mubr.f32.mxu0 0.0
    %4644 = vmatmul.mubr.f32.gmra.mrb[0].mxu0 %v4275
    %v4645 = vpop.f32.mrb[0].mxu0
    %v4646 = vadd.f32 %v4184, %v4645
    %v4647 = vpop.f32.mrb[0].mxu0
    %4648 = vmatprep.mubr.f32.mxu0 0.0
    %4649 = vmatmul.mubr.f32.gmra.mrb[0].mxu0 %v4278
    %v4650 = vpop.f32.mrb[0].mxu0
    %v4651 = vadd.f32 %v4184, %v4650
    %v4652 = vpop.f32.mrb[0].mxu0
    %4653 = vmatprep.mubr.f32.mxu0 0.0
    %4654 = vmatmul.mubr.f32.gmra.mrb[0].mxu0 %v4281
    %v4655 = vpop.f32.mrb[0].mxu0
    %v4656 = vadd.f32 %v4184, %v4655
    %v4657 = vpop.f32.mrb[0].mxu0
    %4658 = vmatprep.mubr.f32.mxu0 0.0
    %4659 = vmatmul.mubr.f32.gmra.mrb[0].mxu0 %v4284
    %v4660 = vpop.f32.mrb[0].mxu0
    %v4661 = vadd.f32 %v4184, %v4660
    %v4662 = vpop.f32.mrb[0].mxu0
    %4663 = vmatprep.mubr.f32.mxu0 0.0
    %4664 = vmatmul.mubr.f32.gmra.mrb[0].mxu0 %v4287
    %v4665 = vpop.f32.mrb[0].mxu0
    %v4666 = vadd.f32 %v4184, %v4665
    %v4667 = vpop.f32.mrb[0].mxu0
    %4668 = vmatprep.mubr.f32.mxu0 0.0
    %4669 = vmatmul.mubr.f32.gmra.mrb[0].mxu0 %v4290
    %v4670 = vpop.f32.mrb[0].mxu0
    %v4671 = vadd.f32 %v4184, %v4670
    %v4672 = vpop.f32.mrb[0].mxu0
    %4673 = vmatprep.mubr.f32.mxu0 0.0
    %4674 = vmatmul.mubr.f32.gmra.mrb[0].mxu0 %v4293
    %v4675 = vpop.f32.mrb[0].mxu0
    %v4676 = vadd.f32 %v4184, %v4675
    %v4677 = vpop.f32.mrb[0].mxu0
    %4678 = vmatprep.mubr.f32.mxu0 0.0
    %4679 = vmatmul.mubr.f32.gmra.mrb[0].mxu0 %v4296
    %v4680 = vpop.f32.mrb[0].mxu0
    %v4681 = vadd.f32 %v4184, %v4680
    %v4682 = vpop.f32.mrb[0].mxu0
    %4683 = vmatprep.mubr.f32.mxu0 0.0
    %4684 = vmatmul.mubr.f32.gmra.mrb[0].mxu0 %v4299
    %v4685 = vpop.f32.mrb[0].mxu0
    %v4686 = vadd.f32 %v4184, %v4685
    %v4687 = vpop.f32.mrb[0].mxu0
    %4688 = vmatprep.mubr.f32.mxu0 0.0
    %4689 = vmatmul.mubr.f32.gmra.mrb[0].mxu0 %v4302
    %v4690 = vpop.f32.mrb[0].mxu0
    %v4691 = vadd.f32 %v4184, %v4690
    %v4692 = vpop.f32.mrb[0].mxu0
    %4693 = vmatprep.mubr.f32.mxu0 0.0
    %4694 = vmatmul.mubr.f32.gmra.mrb[0].mxu0 %v4305
    %v4695 = vpop.f32.mrb[0].mxu0
    %v4696 = vadd.f32 %v4184, %v4695
    %v4697 = vpop.f32.mrb[0].mxu0
    %4698 = vmatprep.mubr.f32.mxu0 0.0
    %4699 = vmatmul.mubr.f32.gmra.mrb[0].mxu0 %v4308
    %v4700 = vpop.f32.mrb[0].mxu0
    %v4701 = vadd.f32 %v4184, %v4700
    %v4702 = vpop.f32.mrb[0].mxu0
    %4703 = vmatprep.mubr.f32.mxu0 0.0
    %4704 = vmatmul.mubr.f32.gmra.mrb[0].mxu0 %v4311
    %v4705 = vpop.f32.mrb[0].mxu0
    %v4706 = vadd.f32 %v4184, %v4705
    %v4707 = vpop.f32.mrb[0].mxu0
    %4708 = vmatprep.mubr.f32.mxu0 0.0
    %4709 = vmatmul.mubr.f32.gmra.mrb[0].mxu0 %v4314
    %v4710 = vpop.f32.mrb[0].mxu0
    %v4711 = vadd.f32 %v4184, %v4710
    %v4712 = vpop.f32.mrb[0].mxu0
    %4713 = vmatprep.mubr.f32.mxu0 0.0
    %4714 = vmatmul.mubr.f32.gmra.mrb[0].mxu0 %v4317
    %v4715 = vpop.f32.mrb[0].mxu0
    %v4716 = vadd.f32 %v4184, %v4715
    %v4717 = vpop.f32.mrb[0].mxu0
    %4718 = vmatprep.mubr.f32.mxu0 0.0
    %4719 = vmatmul.mubr.f32.gmra.mrb[0].mxu0 %v4320
    %v4720 = vpop.f32.mrb[0].mxu0
    %v4721 = vadd.f32 %v4184, %v4720
    %v4722 = vpop.f32.mrb[0].mxu0
    %4723 = vmatprep.mubr.f32.mxu0 0.0
    %4724 = vmatmul.mubr.f32.gmra.mrb[0].mxu0 %v4323
    %v4725 = vpop.f32.mrb[0].mxu0
    %v4726 = vadd.f32 %v4184, %v4725
    %v4727 = vpop.f32.mrb[0].mxu0
    %4728 = vmatprep.mubr.f32.mxu0 0.0
    %4729 = vmatmul.mubr.f32.gmra.mrb[0].mxu0 %v4326
    %v4730 = vpop.f32.mrb[0].mxu0
    %v4731 = vadd.f32 %v4184, %v4730
    %v4732 = vpop.f32.mrb[0].mxu0
    %4733 = vmatprep.mubr.f32.mxu0 0.0
    %4734 = vmatmul.mubr.f32.gmra.mrb[0].mxu0 %v4329
    %v4735 = vpop.f32.mrb[0].mxu0
    %v4736 = vadd.f32 %v4184, %v4735
    %v4737 = vpop.f32.mrb[0].mxu0
    %4738 = vmatprep.mubr.f32.mxu0 0.0
    %4739 = vmatmul.mubr.f32.gmra.mrb[0].mxu0 %v4332
    %v4740 = vpop.f32.mrb[0].mxu0
    %v4741 = vadd.f32 %v4184, %v4740
    %v4742 = vpop.f32.mrb[0].mxu0
    %4743 = vmatprep.mubr.f32.mxu0 0.0
    %4744 = vmatmul.mubr.f32.gmra.mrb[0].mxu0 %v4335
    %v4745 = vpop.f32.mrb[0].mxu0
    %v4746 = vadd.f32 %v4184, %v4745
    %v4747 = vpop.f32.mrb[0].mxu0
    %4748 = vmatprep.mubr.f32.mxu0 0.0
    %4749 = vmatmul.mubr.f32.gmra.mrb[0].mxu0 %v4338
    %v4750 = vpop.f32.mrb[0].mxu0
    %v4751 = vadd.f32 %v4184, %v4750
    %v4752 = vpop.f32.mrb[0].mxu0
    %4753 = vmatprep.mubr.f32.mxu0 0.0
    %4754 = vmatmul.mubr.f32.gmra.mrb[0].mxu0 %v4341
    %v4755 = vpop.f32.mrb[0].mxu0
    %v4756 = vadd.f32 %v4184, %v4755
    %v4757 = vpop.f32.mrb[0].mxu0
    %4758 = vmatprep.mubr.f32.mxu0 0.0
    %4759 = vmatmul.mubr.f32.gmra.mrb[0].mxu0 %v4344
    %v4760 = vpop.f32.mrb[0].mxu0
    %v4761 = vadd.f32 %v4184, %v4760
    %v4762 = vpop.f32.mrb[0].mxu0
    %4763 = vmatprep.mubr.f32.mxu0 0.0
    %4764 = vmatmul.mubr.f32.gmra.mrb[0].mxu0 %v4347
    %v4765 = vpop.f32.mrb[0].mxu0
    %v4766 = vadd.f32 %v4184, %v4765
    %v4767 = vpop.f32.mrb[0].mxu0
    %4768 = vmatprep.mubr.f32.mxu0 0.0
    %4769 = vmatmul.mubr.f32.gmra.mrb[0].mxu0 %v4350
    %v4770 = vpop.f32.mrb[0].mxu0
    %v4771 = vadd.f32 %v4184, %v4770
    %v4772 = vpop.f32.mrb[0].mxu0
    %4773 = vmatprep.mubr.f32.mxu0 0.0
    %4774 = vmatmul.mubr.f32.gmra.mrb[0].mxu0 %v4353
    %v4775 = vpop.f32.mrb[0].mxu0
    %v4776 = vadd.f32 %v4184, %v4775
    %v4777 = vpop.f32.mrb[0].mxu0
    %4778 = vmatprep.mubr.f32.mxu0 0.0
    %4779 = vmatmul.mubr.f32.gmra.mrb[0].mxu0 %v4356
    %v4780 = vpop.f32.mrb[0].mxu0
    %v4781 = vadd.f32 %v4184, %v4780
    %v4782 = vpop.f32.mrb[0].mxu0
    %4783 = vmatprep.mubr.f32.mxu0 0.0
    %4784 = vmatmul.mubr.f32.gmra.mrb[0].mxu0 %v4359
    %v4785 = vpop.f32.mrb[0].mxu0
    %v4786 = vadd.f32 %v4184, %v4785
    %v4787 = vpop.f32.mrb[0].mxu0
    %4788 = vmatprep.mubr.f32.mxu0 0.0
    %4789 = vmatmul.mubr.f32.gmra.mrb[0].mxu0 %v4362
    %v4790 = vpop.f32.mrb[0].mxu0
    %v4791 = vadd.f32 %v4184, %v4790
    %v4792 = vpop.f32.mrb[0].mxu0
    %4793 = vmatprep.mubr.f32.mxu0 0.0
    %4794 = vmatmul.mubr.f32.gmra.mrb[0].mxu0 %v4365
    %v4795 = vpop.f32.mrb[0].mxu0
    %v4796 = vadd.f32 %v4184, %v4795
    %v4797 = vpop.f32.mrb[0].mxu0
    %4798 = vmatprep.mubr.f32.mxu0 0.0
    %4799 = vmatmul.mubr.f32.gmra.mrb[0].mxu0 %v4368
    %v4800 = vpop.f32.mrb[0].mxu0
    %v4801 = vadd.f32 %v4184, %v4800
    %v4802 = vpop.f32.mrb[0].mxu0
    %4803 = vmatprep.mubr.f32.mxu0 0.0
    %4804 = vmatmul.mubr.f32.gmra.mrb[0].mxu0 %v4371
    %v4805 = vpop.f32.mrb[0].mxu0
    %v4806 = vadd.f32 %v4184, %v4805
    %v4807 = vpop.f32.mrb[0].mxu0
    %4808 = vmatprep.mubr.f32.mxu0 0.0
    %4809 = vmatmul.mubr.f32.gmra.mrb[0].mxu0 %v4374
    %v4810 = vpop.f32.mrb[0].mxu0
    %v4811 = vadd.f32 %v4184, %v4810
    %v4812 = vpop.f32.mrb[0].mxu0
    %4813 = vmatprep.mubr.f32.mxu0 0.0
    %4814 = vmatmul.mubr.f32.gmra.mrb[0].mxu0 %v4377
    %v4815 = vpop.f32.mrb[0].mxu0
    %v4816 = vadd.f32 %v4184, %v4815
    %v4817 = vpop.f32.mrb[0].mxu0
    %4818 = vmatprep.mubr.f32.mxu0 0.0
    %4819 = vmatmul.mubr.f32.gmra.mrb[0].mxu0 %v4380
    %v4820 = vpop.f32.mrb[0].mxu0
    %v4821 = vadd.f32 %v4184, %v4820
    %v4822 = vpop.f32.mrb[0].mxu0
    %4823 = vmatprep.mubr.f32.mxu0 0.0
    %4824 = vmatmul.mubr.f32.gmra.mrb[0].mxu0 %v4383
    %v4825 = vpop.f32.mrb[0].mxu0
    %v4826 = vadd.f32 %v4184, %v4825
    %v4827 = vpop.f32.mrb[0].mxu0
    %4828 = vmatprep.mubr.f32.mxu0 0.0
    %4829 = vmatmul.mubr.f32.gmra.mrb[0].mxu0 %v4386
    %v4830 = vpop.f32.mrb[0].mxu0
    %v4831 = vadd.f32 %v4184, %v4830
    %v4832 = vpop.f32.mrb[0].mxu0
    %4833 = vmatprep.mubr.f32.mxu0 0.0
    %4834 = vmatmul.mubr.f32.gmra.mrb[0].mxu0 %v4389
    %v4835 = vpop.f32.mrb[0].mxu0
    %v4836 = vadd.f32 %v4184, %v4835
    %v4837 = vpop.f32.mrb[0].mxu0
    %4838 = vmatprep.mubr.f32.mxu0 0.0
    %4839 = vmatmul.mubr.f32.gmra.mrb[0].mxu0 %v4392
    %v4840 = vpop.f32.mrb[0].mxu0
    %v4841 = vadd.f32 %v4184, %v4840
    %v4842 = vpop.f32.mrb[0].mxu0
    %4843 = vmatprep.mubr.f32.mxu0 0.0
    %4844 = vmatmul.mubr.f32.gmra.mrb[0].mxu0 %v4395
    %v4845 = vpop.f32.mrb[0].mxu0
    %v4846 = vadd.f32 %v4184, %v4845
    %v4847 = vpop.f32.mrb[0].mxu0
    %4848 = vmatprep.mubr.f32.mxu0 0.0
    %4849 = vmatmul.mubr.f32.gmra.mrb[0].mxu0 %v4398
    %v4850 = vpop.f32.mrb[0].mxu0
    %v4851 = vadd.f32 %v4184, %v4850
    %v4852 = vpop.f32.mrb[0].mxu0
    %4853 = vmatprep.mubr.f32.mxu0 0.0
    %4854 = vmatmul.mubr.f32.gmra.mrb[0].mxu0 %v4401
    %v4855 = vpop.f32.mrb[0].mxu0
    %v4856 = vadd.f32 %v4184, %v4855
    %v4857 = vpop.f32.mrb[0].mxu0
    %4858 = vmatprep.mubr.f32.mxu0 0.0
    %4859 = vmatmul.mubr.f32.gmra.mrb[0].mxu0 %v4404
    %v4860 = vpop.f32.mrb[0].mxu0
    %v4861 = vadd.f32 %v4184, %v4860
    %v4862 = vpop.f32.mrb[0].mxu0
    %4863 = vmatprep.mubr.f32.mxu0 0.0
    %4864 = vmatmul.mubr.f32.gmra.mrb[0].mxu0 %v4407
    %v4865 = vpop.f32.mrb[0].mxu0
    %v4866 = vadd.f32 %v4184, %v4865
    %v4867 = vpop.f32.mrb[0].mxu0
    %4868 = vmatprep.mubr.f32.mxu0 0.0
    %4869 = vmatmul.mubr.f32.gmra.mrb[0].mxu0 %v4410
    %v4870 = vpop.f32.mrb[0].mxu0
    %v4871 = vadd.f32 %v4184, %v4870
    %v4872 = vpop.f32.mrb[0].mxu0
    %4873 = vmatprep.mubr.f32.mxu0 0.0
    %4874 = vmatmul.mubr.f32.gmra.mrb[0].mxu0 %v4413
    %v4875 = vpop.f32.mrb[0].mxu0
    %v4876 = vadd.f32 %v4184, %v4875
    %v4877 = vpop.f32.mrb[0].mxu0
    %4878 = vmatprep.mubr.f32.mxu0 0.0
    %4879 = vmatmul.mubr.f32.gmra.mrb[0].mxu0 %v4416
    %v4880 = vpop.f32.mrb[0].mxu0
    %v4881 = vadd.f32 %v4184, %v4880
    %v4882 = vpop.f32.mrb[0].mxu0
    %4883 = vmatprep.mubr.f32.mxu0 0.0
    %4884 = vmatmul.mubr.f32.gmra.mrb[0].mxu0 %v4419
    %v4885 = vpop.f32.mrb[0].mxu0
    %v4886 = vadd.f32 %v4184, %v4885
    %v4887 = vpop.f32.mrb[0].mxu0
    %4888 = vmatprep.mubr.f32.mxu0 0.0
    %4889 = vmatmul.mubr.f32.gmra.mrb[0].mxu0 %v4422
    %v4890 = vpop.f32.mrb[0].mxu0
    %v4891 = vadd.f32 %v4184, %v4890
    %v4892 = vpop.f32.mrb[0].mxu0
    %4893 = vmatprep.mubr.f32.mxu0 0.0
    %4894 = vmatmul.mubr.f32.gmra.mrb[0].mxu0 %v4425
    %v4895 = vpop.f32.mrb[0].mxu0
    %v4896 = vadd.f32 %v4184, %v4895
    %v4897 = vpop.f32.mrb[0].mxu0
    %4898 = vmatprep.mubr.f32.mxu0 0.0
    %4899 = vmatmul.mubr.f32.gmra.mrb[0].mxu0 %v4428
    %v4900 = vpop.f32.mrb[0].mxu0
    %v4901 = vadd.f32 %v4184, %v4900
    %v4902 = vpop.f32.mrb[0].mxu0
    %4903 = vdwg.mxu0
    %v4904 = vmax.f32 %v4501, 0.0
    %v4905 = vmax.f32 %v4506, 0.0
    %v4906 = vmax.f32 %v4511, 0.0
    %v4907 = vmax.f32 %v4516, 0.0
    %v4908 = vmax.f32 %v4521, 0.0
    %v4909 = vmax.f32 %v4526, 0.0
    %v4910 = vmax.f32 %v4531, 0.0
    %v4911 = vmax.f32 %v4536, 0.0
    %v4912 = vmax.f32 %v4541, 0.0
    %v4913 = vmax.f32 %v4546, 0.0
    %v4914 = vmax.f32 %v4551, 0.0
    %v4915 = vmax.f32 %v4556, 0.0
    %v4916 = vmax.f32 %v4561, 0.0
    %v4917 = vmax.f32 %v4566, 0.0
    %v4918 = vmax.f32 %v4571, 0.0
    %v4919 = vmax.f32 %v4576, 0.0
    %v4920 = vmax.f32 %v4581, 0.0
    %v4921 = vmax.f32 %v4586, 0.0
    %v4922 = vmax.f32 %v4591, 0.0
    %v4923 = vmax.f32 %v4596, 0.0
    %v4924 = vmax.f32 %v4601, 0.0
    %v4925 = vmax.f32 %v4606, 0.0
    %v4926 = vmax.f32 %v4611, 0.0
    %v4927 = vmax.f32 %v4616, 0.0
    %v4928 = vmax.f32 %v4621, 0.0
    %v4929 = vmax.f32 %v4626, 0.0
    %v4930 = vmax.f32 %v4631, 0.0
    %v4931 = vmax.f32 %v4636, 0.0
    %v4932 = vmax.f32 %v4641, 0.0
    %v4933 = vmax.f32 %v4646, 0.0
    %v4934 = vmax.f32 %v4651, 0.0
    %v4935 = vmax.f32 %v4656, 0.0
    %v4936 = vmax.f32 %v4661, 0.0
    %v4937 = vmax.f32 %v4666, 0.0
    %v4938 = vmax.f32 %v4671, 0.0
    %v4939 = vmax.f32 %v4676, 0.0
    %v4940 = vmax.f32 %v4681, 0.0
    %v4941 = vmax.f32 %v4686, 0.0
    %v4942 = vmax.f32 %v4691, 0.0
    %v4943 = vmax.f32 %v4696, 0.0
    %v4944 = vmax.f32 %v4701, 0.0
    %v4945 = vmax.f32 %v4706, 0.0
    %v4946 = vmax.f32 %v4711, 0.0
    %v4947 = vmax.f32 %v4716, 0.0
    %v4948 = vmax.f32 %v4721, 0.0
    %v4949 = vmax.f32 %v4726, 0.0
    %v4950 = vmax.f32 %v4731, 0.0
    %v4951 = vmax.f32 %v4736, 0.0
    %v4952 = vmax.f32 %v4741, 0.0
    %v4953 = vmax.f32 %v4746, 0.0
    %v4954 = vmax.f32 %v4751, 0.0
    %v4955 = vmax.f32 %v4756, 0.0
    %v4956 = vmax.f32 %v4761, 0.0
    %v4957 = vmax.f32 %v4766, 0.0
    %v4958 = vmax.f32 %v4771, 0.0
    %v4959 = vmax.f32 %v4776, 0.0
    %v4960 = vmax.f32 %v4781, 0.0
    %v4961 = vmax.f32 %v4786, 0.0
    %v4962 = vmax.f32 %v4791, 0.0
    %v4963 = vmax.f32 %v4796, 0.0
    %v4964 = vmax.f32 %v4801, 0.0
    %v4965 = vmax.f32 %v4806, 0.0
    %v4966 = vmax.f32 %v4811, 0.0
    %v4967 = vmax.f32 %v4816, 0.0
    %v4968 = vmax.f32 %v4821, 0.0
    %v4969 = vmax.f32 %v4826, 0.0
    %v4970 = vmax.f32 %v4831, 0.0
    %v4971 = vmax.f32 %v4836, 0.0
    %v4972 = vmax.f32 %v4841, 0.0
    %v4973 = vmax.f32 %v4846, 0.0
    %v4974 = vmax.f32 %v4851, 0.0
    %v4975 = vmax.f32 %v4856, 0.0
    %v4976 = vmax.f32 %v4861, 0.0
    %v4977 = vmax.f32 %v4866, 0.0
    %v4978 = vmax.f32 %v4871, 0.0
    %v4979 = vmax.f32 %v4876, 0.0
    %v4980 = vmax.f32 %v4881, 0.0
    %v4981 = vmax.f32 %v4886, 0.0
    %v4982 = vmax.f32 %v4891, 0.0
    %v4983 = vmax.f32 %v4896, 0.0
    %v4984 = vmax.f32 %v4901, 0.0
    %v4985 = vld [vmem:[%s3] sm:$0xff]
    %v4986 = vld [vmem:[%s3 + $0x8] sm:$0xf]
    %v4989 = vcombine.high %v4985, %v4985
    %v4991 = vunpack.c.l.s4 1983009808
    %v4992 = vunpack.c.0.s8 %v4991
    %v4993 = vlaneseq
    %v4994 = vshrl.u32 %v4993, 7
    %v4995 = vsub.s32 %v4992, %v4994
    %v4996 = vrot.slane %v4985, %v4995
    %v4998 = vunpack.c.l.s4 1983009808
    %v4999 = vunpack.c.0.s8 %v4998
    %v5000 = vlaneseq
    %v5001 = vshrl.u32 %v5000, 7
    %v5002 = vsub.s32 %v4999, %v5001
    %v5003 = vrot.slane %v4989, %v5002
    %v5004 = vcombine.high %v4996, %v4996
    %v5005 = vcombine.high %v5003, %v5003
    %v5007 = vunpack.c.l.s4 1983009808
    %v5008 = vunpack.c.0.s8 %v5007
    %v5009 = vlaneseq
    %v5010 = vshrl.u32 %v5009, 7
    %v5011 = vsub.s32 %v5008, %v5010
    %v5012 = vrot.slane %v4986, %v5011
    %v5013 = vcombine.high %v5012, %v5012
    %v5019 = vsel %vm3600, %v5013, 0
    %5021 = vmatprep.subr.mxu0 0.0
    %5022 = vmatpush1.msra.mxu0 %v4904
    %5023 = vmatprep.subr.mxu0 0.0
    %5024 = vmatpush1.msra.mxu0 %v4905
    %5025 = vmatprep.subr.mxu0 0.0
    %5026 = vmatpush1.msra.mxu0 %v4906
    %5027 = vmatprep.subr.mxu0 0.0
    %5028 = vmatpush1.msra.mxu0 %v4907
    %5029 = vmatprep.subr.mxu0 0.0
    %5030 = vmatpush1.msra.mxu0 %v4908
    %5031 = vmatprep.subr.mxu0 0.0
    %5032 = vmatpush1.msra.mxu0 %v4909
    %5033 = vmatprep.subr.mxu0 0.0
    %5034 = vmatpush1.msra.mxu0 %v4910
    %5035 = vmatprep.subr.mxu0 0.0
    %5036 = vmatpush1.msra.mxu0 %v4911
    %5037 = vmatprep.subr.mxu0 0.0
    %5038 = vmatpush1.msra.mxu0 %v4912
    %5039 = vmatprep.subr.mxu0 0.0
    %5040 = vmatpush1.msra.mxu0 %v4913
    %5041 = vmatprep.subr.mxu0 0.0
    %5042 = vmatpush1.msra.mxu0 %v4914
    %5043 = vmatprep.subr.mxu0 0.0
    %5044 = vmatpush1.msra.mxu0 %v4915
    %5045 = vmatprep.subr.mxu0 0.0
    %5046 = vmatpush1.msra.mxu0 %v4916
    %5047 = vmatprep.subr.mxu0 0.0
    %5048 = vmatpush1.msra.mxu0 %v4917
    %5049 = vmatprep.subr.mxu0 0.0
    %5050 = vmatpush1.msra.mxu0 %v4918
    %5051 = vmatprep.subr.mxu0 0.0
    %5052 = vmatpush1.msra.mxu0 %v4919
    %5053 = vmatprep.subr.mxu0 0.0
    %5054 = vmatpush1.msra.mxu0 %v4920
    %5055 = vmatprep.subr.mxu0 0.0
    %5056 = vmatpush1.msra.mxu0 %v4921
    %5057 = vmatprep.subr.mxu0 0.0
    %5058 = vmatpush1.msra.mxu0 %v4922
    %5059 = vmatprep.subr.mxu0 0.0
    %5060 = vmatpush1.msra.mxu0 %v4923
    %5061 = vmatprep.subr.mxu0 0.0
    %5062 = vmatpush1.msra.mxu0 %v4924
    %5063 = vmatprep.subr.mxu0 0.0
    %5064 = vmatpush1.msra.mxu0 %v4925
    %5065 = vmatprep.subr.mxu0 0.0
    %5066 = vmatpush1.msra.mxu0 %v4926
    %5067 = vmatprep.subr.mxu0 0.0
    %5068 = vmatpush1.msra.mxu0 %v4927
    %5069 = vmatprep.subr.mxu0 0.0
    %5070 = vmatpush1.msra.mxu0 %v4928
    %5071 = vmatprep.subr.mxu0 0.0
    %5072 = vmatpush1.msra.mxu0 %v4929
    %5073 = vmatprep.subr.mxu0 0.0
    %5074 = vmatpush1.msra.mxu0 %v4930
    %5075 = vmatprep.subr.mxu0 0.0
    %5076 = vmatpush1.msra.mxu0 %v4931
    %5077 = vmatprep.subr.mxu0 0.0
    %5078 = vmatpush1.msra.mxu0 %v4932
    %5079 = vmatprep.subr.mxu0 0.0
    %5080 = vmatpush1.msra.mxu0 %v4933
    %5081 = vmatprep.subr.mxu0 0.0
    %5082 = vmatpush1.msra.mxu0 %v4934
    %5083 = vmatprep.subr.mxu0 0.0
    %5084 = vmatpush1.msra.mxu0 %v4935
    %5085 = vmatprep.mubr.f32.mxu0 %v5004
    %5086 = vmatmul.mubr.f32.gmra.mrb[0].mxu0 %v4996
    %v5087 = vpop.f32.mrb[0].mxu0
    %v5088 = vadd.f32 0.0, %v5087
    %v5089 = vpop.f32.mrb[0].mxu0
    %5090 = vdwg.mxu0
    %5091 = vmatprep.subr.mxu0 0.0
    %5092 = vmatpush1.msra.mxu0 %v4936
    %5093 = vmatprep.subr.mxu0 0.0
    %5094 = vmatpush1.msra.mxu0 %v4937
    %5095 = vmatprep.subr.mxu0 0.0
    %5096 = vmatpush1.msra.mxu0 %v4938
    %5097 = vmatprep.subr.mxu0 0.0
    %5098 = vmatpush1.msra.mxu0 %v4939
    %5099 = vmatprep.subr.mxu0 0.0
    %5100 = vmatpush1.msra.mxu0 %v4940
    %5101 = vmatprep.subr.mxu0 0.0
    %5102 = vmatpush1.msra.mxu0 %v4941
    %5103 = vmatprep.subr.mxu0 0.0
    %5104 = vmatpush1.msra.mxu0 %v4942
    %5105 = vmatprep.subr.mxu0 0.0
    %5106 = vmatpush1.msra.mxu0 %v4943
    %5107 = vmatprep.subr.mxu0 0.0
    %5108 = vmatpush1.msra.mxu0 %v4944
    %5109 = vmatprep.subr.mxu0 0.0
    %5110 = vmatpush1.msra.mxu0 %v4945
    %5111 = vmatprep.subr.mxu0 0.0
    %5112 = vmatpush1.msra.mxu0 %v4946
    %5113 = vmatprep.subr.mxu0 0.0
    %5114 = vmatpush1.msra.mxu0 %v4947
    %5115 = vmatprep.subr.mxu0 0.0
    %5116 = vmatpush1.msra.mxu0 %v4948
    %5117 = vmatprep.subr.mxu0 0.0
    %5118 = vmatpush1.msra.mxu0 %v4949
    %5119 = vmatprep.subr.mxu0 0.0
    %5120 = vmatpush1.msra.mxu0 %v4950
    %5121 = vmatprep.subr.mxu0 0.0
    %5122 = vmatpush1.msra.mxu0 %v4951
    %5123 = vmatprep.subr.mxu0 0.0
    %5124 = vmatpush1.msra.mxu0 %v4952
    %5125 = vmatprep.subr.mxu0 0.0
    %5126 = vmatpush1.msra.mxu0 %v4953
    %5127 = vmatprep.subr.mxu0 0.0
    %5128 = vmatpush1.msra.mxu0 %v4954
    %5129 = vmatprep.subr.mxu0 0.0
    %5130 = vmatpush1.msra.mxu0 %v4955
    %5131 = vmatprep.subr.mxu0 0.0
    %5132 = vmatpush1.msra.mxu0 %v4956
    %5133 = vmatprep.subr.mxu0 0.0
    %5134 = vmatpush1.msra.mxu0 %v4957
    %5135 = vmatprep.subr.mxu0 0.0
    %5136 = vmatpush1.msra.mxu0 %v4958
    %5137 = vmatprep.subr.mxu0 0.0
    %5138 = vmatpush1.msra.mxu0 %v4959
    %5139 = vmatprep.subr.mxu0 0.0
    %5140 = vmatpush1.msra.mxu0 %v4960
    %5141 = vmatprep.subr.mxu0 0.0
    %5142 = vmatpush1.msra.mxu0 %v4961
    %5143 = vmatprep.subr.mxu0 0.0
    %5144 = vmatpush1.msra.mxu0 %v4962
    %5145 = vmatprep.subr.mxu0 0.0
    %5146 = vmatpush1.msra.mxu0 %v4963
    %5147 = vmatprep.subr.mxu0 0.0
    %5148 = vmatpush1.msra.mxu0 %v4964
    %5149 = vmatprep.subr.mxu0 0.0
    %5150 = vmatpush1.msra.mxu0 %v4965
    %5151 = vmatprep.subr.mxu0 0.0
    %5152 = vmatpush1.msra.mxu0 %v4966
    %5153 = vmatprep.subr.mxu0 0.0
    %5154 = vmatpush1.msra.mxu0 %v4967
    %5155 = vmatprep.mubr.f32.mxu0 %v5005
    %5156 = vmatmul.mubr.f32.gmra.mrb[0].mxu0 %v5003
    %v5157 = vpop.f32.mrb[0].mxu0
    %v5158 = vadd.f32 %v5088, %v5157
    %v5159 = vpop.f32.mrb[0].mxu0
    %5160 = vdwg.mxu0
    %5161 = vmatprep.subr.mxu0 0.0
    %5162 = vmatpush1.msra.mxu0 %v4968
    %5163 = vmatprep.subr.mxu0 0.0
    %5164 = vmatpush1.msra.mxu0 %v4969
    %5165 = vmatprep.subr.mxu0 0.0
    %5166 = vmatpush1.msra.mxu0 %v4970
    %5167 = vmatprep.subr.mxu0 0.0
    %5168 = vmatpush1.msra.mxu0 %v4971
    %5169 = vmatprep.subr.mxu0 0.0
    %5170 = vmatpush1.msra.mxu0 %v4972
    %5171 = vmatprep.subr.mxu0 0.0
    %5172 = vmatpush1.msra.mxu0 %v4973
    %5173 = vmatprep.subr.mxu0 0.0
    %5174 = vmatpush1.msra.mxu0 %v4974
    %5175 = vmatprep.subr.mxu0 0.0
    %5176 = vmatpush1.msra.mxu0 %v4975
    %5177 = vmatprep.subr.mxu0 0.0
    %5178 = vmatpush1.msra.mxu0 %v4976
    %5179 = vmatprep.subr.mxu0 0.0
    %5180 = vmatpush1.msra.mxu0 %v4977
    %5181 = vmatprep.subr.mxu0 0.0
    %5182 = vmatpush1.msra.mxu0 %v4978
    %5183 = vmatprep.subr.mxu0 0.0
    %5184 = vmatpush1.msra.mxu0 %v4979
    %5185 = vmatprep.subr.mxu0 0.0
    %5186 = vmatpush1.msra.mxu0 %v4980
    %5187 = vmatprep.subr.mxu0 0.0
    %5188 = vmatpush1.msra.mxu0 %v4981
    %5189 = vmatprep.subr.mxu0 0.0
    %5190 = vmatpush1.msra.mxu0 %v4982
    %5191 = vmatprep.subr.mxu0 0.0
    %5192 = vmatpush1.msra.mxu0 %v4983
    %5193 = vmatprep.subr.mxu0 0.0
    %5194 = vmatpush1.msra.mxu0 %v4984
    %5195 = vmatprep.subr.mxu0 0.0
    %5196 = vmatpush1.msra.mxu0 0.0
    %5197 = vmatprep.subr.mxu0 0.0
    %5198 = vmatpush1.msra.mxu0 0.0
    %5199 = vmatprep.subr.mxu0 0.0
    %5200 = vmatpush1.msra.mxu0 0.0
    %5201 = vmatprep.subr.mxu0 0.0
    %5202 = vmatpush1.msra.mxu0 0.0
    %5203 = vmatprep.subr.mxu0 0.0
    %5204 = vmatpush1.msra.mxu0 0.0
    %5205 = vmatprep.subr.mxu0 0.0
    %5206 = vmatpush1.msra.mxu0 0.0
    %5207 = vmatprep.subr.mxu0 0.0
    %5208 = vmatpush1.msra.mxu0 0.0
    %5209 = vmatprep.subr.mxu0 0.0
    %5210 = vmatpush1.msra.mxu0 0.0
    %5211 = vmatprep.subr.mxu0 0.0
    %5212 = vmatpush1.msra.mxu0 0.0
    %5213 = vmatprep.subr.mxu0 0.0
    %5214 = vmatpush1.msra.mxu0 0.0
    %5215 = vmatprep.subr.mxu0 0.0
    %5216 = vmatpush1.msra.mxu0 0.0
    %5217 = vmatprep.subr.mxu0 0.0
    %5218 = vmatpush1.msra.mxu0 0.0
    %5219 = vmatprep.subr.mxu0 0.0
    %5220 = vmatpush1.msra.mxu0 0.0
    %5221 = vmatprep.subr.mxu0 0.0
    %5222 = vmatpush1.msra.mxu0 0.0
    %5223 = vmatprep.subr.mxu0 0.0
    %5224 = vmatpush1.msra.mxu0 0.0
    %5225 = vmatprep.mubr.f32.mxu0 %v5019
    %5226 = vmatmul.mubr.f32.gmra.mrb[0].mxu0 %v5012
    %v5227 = vpop.f32.mrb[0].mxu0
    %v5228 = vadd.f32 %v5158, %v5227
    %v5229 = vpop.f32.mrb[0].mxu0
    %5230 = vdwg.mxu0
    %vm5231 = vcmask 25600
    %5232 = vst.msk [vmem:[#allocation4] sm:$0x3] %vm5231, %v5228
    %v5233 = vld [vmem:[%s4] sm:$0xf]
    %v5234 = vld [vmem:[%s5] sm:$0x1]
    %v5236 = vlaneseq
    %v5237 = vshrl.u32 %v5236, 7
    %v5238 = vsub.s32 0, %v5237
    %v5239 = vrot.slane %v5234, %v5238
    %v5242 = vsel %vm3518, %v5228, 0
    %v5245 = vsel %vm4430, %v5233, 0
    %5247 = vmatprep.subr.mxu0 0.0
    %5248 = vmatpush1.msra.mxu0 %v5245
    %5249 = vmatprep.subr.mxu0 0.0
    %5250 = vmatpush1.msra.mxu0 0.0
    %5251 = vmatprep.subr.mxu0 0.0
    %5252 = vmatpush1.msra.mxu0 0.0
    %5253 = vmatprep.subr.mxu0 0.0
    %5254 = vmatpush1.msra.mxu0 0.0
    %5255 = vmatprep.subr.mxu0 0.0
    %5256 = vmatpush1.msra.mxu0 0.0
    %5257 = vmatprep.subr.mxu0 0.0
    %5258 = vmatpush1.msra.mxu0 0.0
    %5259 = vmatprep.subr.mxu0 0.0
    %5260 = vmatpush1.msra.mxu0 0.0
    %5261 = vmatprep.subr.mxu0 0.0
    %5262 = vmatpush1.msra.mxu0 0.0
    %5263 = vmatprep.subr.mxu0 0.0
    %5264 = vmatpush1.msra.mxu0 0.0
    %5265 = vmatprep.subr.mxu0 0.0
    %5266 = vmatpush1.msra.mxu0 0.0
    %5267 = vmatprep.subr.mxu0 0.0
    %5268 = vmatpush1.msra.mxu0 0.0
    %5269 = vmatprep.subr.mxu0 0.0
    %5270 = vmatpush1.msra.mxu0 0.0
    %5271 = vmatprep.subr.mxu0 0.0
    %5272 = vmatpush1.msra.mxu0 0.0
    %5273 = vmatprep.subr.mxu0 0.0
    %5274 = vmatpush1.msra.mxu0 0.0
    %5275 = vmatprep.subr.mxu0 0.0
    %5276 = vmatpush1.msra.mxu0 0.0
    %5277 = vmatprep.subr.mxu0 0.0
    %5278 = vmatpush1.msra.mxu0 0.0
    %5279 = vmatprep.subr.mxu0 0.0
    %5280 = vmatpush1.msra.mxu0 0.0
    %5281 = vmatprep.subr.mxu0 0.0
    %5282 = vmatpush1.msra.mxu0 0.0
    %5283 = vmatprep.subr.mxu0 0.0
    %5284 = vmatpush1.msra.mxu0 0.0
    %5285 = vmatprep.subr.mxu0 0.0
    %5286 = vmatpush1.msra.mxu0 0.0
    %5287 = vmatprep.subr.mxu0 0.0
    %5288 = vmatpush1.msra.mxu0 0.0
    %5289 = vmatprep.subr.mxu0 0.0
    %5290 = vmatpush1.msra.mxu0 0.0
    %5291 = vmatprep.subr.mxu0 0.0
    %5292 = vmatpush1.msra.mxu0 0.0
    %5293 = vmatprep.subr.mxu0 0.0
    %5294 = vmatpush1.msra.mxu0 0.0
    %5295 = vmatprep.subr.mxu0 0.0
    %5296 = vmatpush1.msra.mxu0 0.0
    %5297 = vmatprep.subr.mxu0 0.0
    %5298 = vmatpush1.msra.mxu0 0.0
    %5299 = vmatprep.subr.mxu0 0.0
    %5300 = vmatpush1.msra.mxu0 0.0
    %5301 = vmatprep.subr.mxu0 0.0
    %5302 = vmatpush1.msra.mxu0 0.0
    %5303 = vmatprep.subr.mxu0 0.0
    %5304 = vmatpush1.msra.mxu0 0.0
    %5305 = vmatprep.subr.mxu0 0.0
    %5306 = vmatpush1.msra.mxu0 0.0
    %5307 = vmatprep.subr.mxu0 0.0
    %5308 = vmatpush1.msra.mxu0 0.0
    %5309 = vmatprep.subr.mxu0 0.0
    %5310 = vmatpush1.msra.mxu0 0.0
    %5311 = vmatprep.mubr.f32.mxu0 0.0
    %5312 = vmatmul.mubr.f32.gmra.mrb[0].mxu0 %v5242
    %v5313 = vpop.f32.mrb[0].mxu0
    %v5314 = vadd.f32 %v5239, %v5313
    %v5315 = vpop.f32.mrb[0].mxu0
    %5316 = vdwg.mxu0
    %v5317 = vxor.u32 %v5314, 2147483648
    %v5318 = vmul.f32 %v5317, 1.442695
    %v5319 = vpow.pop %v5318
    %v5320 = vadd.f32 %v5319, 1.0
    %v5321 = vrcp.pop %v5320
    %v5322 = vmul.f32 1.0, %v5321
    %vm5323 = vcmask 17408
    %5324 = vst.msk [vmem:[#allocation2] sm:$0x3] %vm5323, %v5322
    // Predicated region
    $region26: #{regressor_forward.1} parent=1 // pred_check
      _
    $region27: #{regressor_forward.1} parent=1 // pred_check_branch
      %5326 = sbr.rel (0) target = $region29
    $region28: #{regressor_forward.1} parent=1 // pred_region
      %s5328 = ssub.s32 32, 32
      %5329 = vsyncadd [#allocation3], %s5328
      %s5331 = sshll.u32 [#allocation2], 4
      %s5332 = int_to_ptr.vmem [resolvable:$true] %s5331
      %5334 = dma.vmem_to_hbm [thread:$0]  %s5332, 32, %s6, [#allocation3]
    $region29: #{regressor_forward.1} parent=1 // pred_fallthru
      _
    // Predicated region
    $region30: #{regressor_forward.1} parent=1 // pred_check
      _
    $region31: #{regressor_forward.1} parent=1 // pred_check_branch
      %5336 = sbr.rel (0) target = $region33
    $region32: #{regressor_forward.1} parent=1 // pred_region
      %s5338 = ssub.s32 32, 32
      %5339 = vsyncadd [#allocation5], %s5338
      %s5341 = sshll.u32 [#allocation4], 4
      %s5342 = int_to_ptr.vmem [resolvable:$true] %s5341
      %5344 = dma.vmem_to_hbm [thread:$0]  %s5342, 32, %s7, [#allocation5]
    $region33: #{regressor_forward.1} parent=1 // pred_fallthru
      _
    // Predicated region
    $region34: #{regressor_forward.1} parent=1 // pred_check
      _
    $region35: #{regressor_forward.1} parent=1 // pred_check_branch
      %5346 = sbr.rel (0) target = $region37
    $region36: #{regressor_forward.1} parent=1 // pred_region
      %5347 = dma.done [#allocation3], 32
    $region37: #{regressor_forward.1} parent=1 // pred_fallthru
      _
    // Predicated region
    $region38: #{regressor_forward.1} parent=1 // pred_check
      _
    $region39: #{regressor_forward.1} parent=1 // pred_check_branch
      %5349 = sbr.rel (0) target = $region41
    $region40: #{regressor_forward.1} parent=1 // pred_region
      %5350 = dma.done [#allocation5], 32
    $region41: #{regressor_forward.1} parent=1 // pred_fallthru
      _
    %5351 = vsyncpa [#allocation3], 1
    %5352 = vsyncpa [#allocation5], 1

</llo_original>
